<compile_context>
chip_gen: v5e
topology: v5e:2x2
jax: 0.10.0
libtpu: 0.0.40
codegen_flags: <defaults>
</compile_context>

<pallas_src>
import functools

import jax
import jax.numpy as jnp
from jax.experimental import pallas as pl
from jax.experimental.pallas import tpu as pltpu


def _round_up(v, a):
    return -(-v // a) * a


def _conv_bn_relu_kernel(x_ref, w_ref, b_ref, o_ref, *scratch,
                         KH, KW, Cin, TH, Wo_p):
    """One (batch, row-tile, cout-tile) grid step.

    x_ref:  (Hp_pad, Wp_pad, Cin)   bf16 padded image, resident per batch element
    w_ref:  (K, TC)                 bf16 weights with BN scale folded in
    b_ref:  (1, TC)                 f32  BN bias (beta - mean*scale)
    o_ref:  (TH*Wo_p, TC)           bf16 flattened output pixels for this tile
    scratch: optional (TH*Wo_p, K)  bf16 im2col patch (absent for 1x1 convs)
    """
    t = pl.program_id(1)
    row0 = pl.multiple_of(t * TH, TH)

    if KH == 1 and KW == 1:
        # 1x1 fast path: the input rows already ARE the im2col matrix (K = Cin).
        # Wo_p % 8 == 0 -> merging (TH, Wo_p) is a free, tile-aligned view.
        lhs = x_ref[pl.ds(row0, TH), :, :].reshape(TH * Wo_p, Cin)
    else:
        patch_ref = scratch[0]

        # Build the im2col patch once per row tile; it persists in scratch across
        # the innermost ("arbitrary") Cout-tile axis, so it is NOT rebuilt per c.
        @pl.when(pl.program_id(2) == 0)
        def _build_patch():
            for kh in range(KH):
                for kw in range(KW):
                    tap = kh * KW + kw
                    # TODO(synk): for small-Cin stem layers these are lane-masked
                    # stores; packing (kw, Cin) jointly / pltpu.roll would widen them.
                    patch_ref[:, tap * Cin:(tap + 1) * Cin] = (
                        x_ref[pl.ds(row0 + kh, TH), kw:kw + Wo_p, :]
                        .reshape(TH * Wo_p, Cin))

        lhs = patch_ref[...]

    # Single MXU matmul with contraction K = KH*KW*Cin, f32 accumulation.
    acc = jnp.dot(lhs, w_ref[...], preferred_element_type=jnp.float32)
    o_ref[...] = jnp.maximum(acc + b_ref[...], 0.0).astype(o_ref.dtype)


def _pick_row_tile(ho, wo_p, n_batch, target_m=512):
    """Rows per tile so M = TH*Wo_p ~ target_m, keeping >=2 parallel grid points."""
    th = max(1, min(ho, target_m // wo_p))
    n_tiles = -(-ho // th)
    if n_batch * n_tiles < 2 and ho > 1:
        th = -(-ho // 2)          # v7x: 2 TensorCores/chip — don't serialize onto one
    return th


def _vmem_estimate_bytes(hp_pad, wp_pad, cin, m, k, tc, is_1x1):
    img = 2 * hp_pad * _round_up(wp_pad, 8) * _round_up(cin, 128) * 2   # bf16, x2 bufs
    wgt = 2 * _round_up(k, 8) * tc * 2
    bias = 2 * 8 * tc * 4
    outb = 2 * m * tc * 2
    patch = 0 if is_1x1 else m * _round_up(k, 128) * 2
    return img + wgt + bias + outb + patch


def basic_conv2d(x_nchw, weight_oihw, gamma, beta, running_mean, running_var,
                 *, padding=0, eps=1e-3):
    """Fused Conv2d(bias=False, stride=1) + BatchNorm2d(eval) + ReLU. NCHW in/out."""
    N, Cin, H, W = x_nchw.shape
    Cout, Cin_w, KH, KW = weight_oihw.shape
    assert Cin == Cin_w
    Hp, Wp = H + 2 * padding, W + 2 * padding
    Ho, Wo = Hp - KH + 1, Wp - KW + 1
    K = KH * KW * Cin
    is_1x1 = (KH == 1 and KW == 1)

    LANE = 128
    Cout_p = _round_up(Cout, LANE)                   # lane-dense output channels

    # Spatial padding: Wo_p multiple of 8 (free reshape views, unmasked stores);
    # Ho_p multiple of TH (padded-Ho grid, garbage rows sliced off in wrapper).
    Wo_p = _round_up(Wo, 8)
    TH = _pick_row_tile(Ho, Wo_p, N)
    Ho_p = _round_up(Ho, TH)
    Hp_pad = Ho_p + KH - 1
    Wp_pad = Wo_p + KW - 1
    M = TH * Wo_p

    # Cout tile: fold the whole Cout axis into one tile when VMEM allows (weights
    # resident, patch built once per row tile); else 256 (v6e/v7x MXU width) or 128.
    VMEM_BUDGET = 44 * 1024 * 1024
    TC = 128
    for cand in (Cout_p, 256, 128):
        if (cand <= Cout_p and Cout_p % cand == 0 and
                _vmem_estimate_bytes(Hp_pad, Wp_pad, Cin, M, K, cand, is_1x1)
                <= VMEM_BUDGET):
            TC = cand
            break
    est = _vmem_estimate_bytes(Hp_pad, Wp_pad, Cin, M, K, TC, is_1x1)
    vmem_limit = int(min(56 * 1024 * 1024, max(32 * 1024 * 1024, 2 * est)))

    # ---- wrapper glue (plain JAX; XLA fuses transpose + pad + bf16 cast) ----
    x_nhwc = jnp.transpose(x_nchw, (0, 2, 3, 1)).astype(jnp.bfloat16)
    x_pad = jnp.pad(
        x_nhwc,
        ((0, 0),
         (padding, Hp_pad - H - padding),
         (padding, Wp_pad - W - padding),
         (0, 0)))

    scale = gamma / jnp.sqrt(running_var + eps)                     # (Cout,)
    bias = beta - running_mean * scale                              # (Cout,)
    # Fold BN scale into the conv weights -> kernel only adds bias and applies ReLU.
    # TODO(synk): (w*scale) is quantized to bf16 rather than w; within bf16 tolerance.
    w_hwio = jnp.transpose(weight_oihw, (2, 3, 1, 0)) * scale       # (KH,KW,Cin,Cout)
    w_mat = w_hwio.reshape(K, Cout)
    w_mat = jnp.pad(w_mat, ((0, 0), (0, Cout_p - Cout))).astype(jnp.bfloat16)
    bias_p = jnp.pad(bias, (0, Cout_p - Cout)).reshape(1, Cout_p).astype(jnp.float32)

    kernel = functools.partial(_conv_bn_relu_kernel,
                               KH=KH, KW=KW, Cin=Cin, TH=TH, Wo_p=Wo_p)
    scratch_shapes = [] if is_1x1 else [pltpu.VMEM((M, K), jnp.bfloat16)]

    cost = pl.CostEstimate(
        flops=2 * N * Ho * Wo * Cout * K,
        transcendentals=0,
        bytes_accessed=int(x_pad.size * 2 + w_mat.size * 2 + bias_p.size * 4
                           + N * Ho_p * Wo_p * Cout_p * 2),
    )

    out_flat = pl.pallas_call(
        kernel,
        out_shape=jax.ShapeDtypeStruct((N, Ho_p * Wo_p, Cout_p), jnp.bfloat16),
        grid_spec=pltpu.PrefetchScalarGridSpec(
            num_scalar_prefetch=0,
            grid=(N, Ho_p // TH, Cout_p // TC),
            in_specs=[
                # Whole padded image per batch element; block index constant across
                # (t, c) so it stays resident instead of being re-DMA'd.
                pl.BlockSpec((None, Hp_pad, Wp_pad, Cin),
                             lambda n, t, c: (n, 0, 0, 0)),
                pl.BlockSpec((K, TC), lambda n, t, c: (0, c)),
                pl.BlockSpec((1, TC), lambda n, t, c: (0, c)),
            ],
            out_specs=pl.BlockSpec((None, M, TC), lambda n, t, c: (n, t, c)),
            scratch_shapes=scratch_shapes,
        ),
        compiler_params=pltpu.CompilerParams(
            dimension_semantics=("parallel", "parallel", "arbitrary"),
            vmem_limit_bytes=vmem_limit),
        cost_estimate=cost,
    )(x_pad, w_mat, bias_p)

    out = out_flat.reshape(N, Ho_p, Wo_p, Cout_p)[:, :Ho, :Wo, :Cout]
    # bf16 slice + NCHW transpose; cast up to f32 last (module's output dtype).
    return jnp.transpose(out, (0, 3, 1, 2)).astype(jnp.float32)


def _reference(x, w, gamma, beta, mean, var, *, padding, eps=1e-3):
    # Pure-f32 module semantics (kernel runs bf16 -> compare at bf16 tolerance).
    y = jax.lax.conv_general_dilated(
        x, w, window_strides=(1, 1), padding=[(padding, padding)] * 2,
        dimension_numbers=("NCHW", "OIHW", "NCHW"))
    s = (gamma / jnp.sqrt(var + eps)).reshape(1, -1, 1, 1)
    b = (beta - mean * (gamma / jnp.sqrt(var + eps))).reshape(1, -1, 1, 1)
    return jnp.maximum(y * s + b, 0.0)


if __name__ == "__main__":
    # BasicConv2d(in_channels=4, out_channels=8, kernel_size=3, padding=1)
    N, Cin, H, W = 2, 4, 16, 16
    Cout, KH, KW = 8, 3, 3
    padding = 1

    key = jax.random.PRNGKey(0)
    kx, kw_, kg, kb, km, kv = jax.random.split(key, 6)
    x = jax.random.normal(kx, (N, Cin, H, W), jnp.float32)
    weight = jax.random.normal(kw_, (Cout, Cin, KH, KW), jnp.float32) * 0.1
    gamma = 1.0 + 0.1 * jax.random.normal(kg, (Cout,), jnp.float32)
    beta = 0.1 * jax.random.normal(kb, (Cout,), jnp.float32)
    running_mean = 0.1 * jax.random.normal(km, (Cout,), jnp.float32)
    running_var = 1.0 + 0.1 * jax.random.uniform(kv, (Cout,), jnp.float32)

    out = basic_conv2d(x, weight, gamma, beta, running_mean, running_var,
                       padding=padding, eps=1e-3)
    out = jax.block_until_ready(out)

    ref = _reference(x, weight, gamma, beta, running_mean, running_var,
                     padding=padding, eps=1e-3)
    assert out.shape == (N, Cout, H, W)
    max_err = float(jnp.max(jnp.abs(out - ref)))
    assert jnp.allclose(out, ref, rtol=5e-2, atol=5e-2), \
        f"mismatch vs reference (max abs err {max_err})"

    print("KERNEL_OK")
</pallas_src>

<mosaic_0001>
module attributes {stable_mosaic.version = 11 : i64} {
  func.func @_conv_bn_relu_kernel(%arg0: i32, %arg1: i32, %arg2: i32, %arg3: memref<1x18x18x4xbf16, #tpu.memory_space<vmem>>, %arg4: memref<36x128xbf16, #tpu.memory_space<vmem>>, %arg5: memref<1x128xf32, #tpu.memory_space<vmem>>, %arg6: memref<1x256x128xbf16, #tpu.memory_space<vmem>>, %arg7: memref<256x36xbf16, #tpu.memory_space<vmem>>) attributes {dimension_semantics = [#tpu.dimension_semantics<parallel>, #tpu.dimension_semantics<parallel>, #tpu.dimension_semantics<arbitrary>], iteration_bounds = array<i64: 2, 1, 1>, scalar_prefetch = 0 : i64, scratch_operands = 1 : i64, tpu.core_type = #tpu.core_type<tc>, window_params = [{transform_indices = @transform_0, window_bounds = array<i64: 1, 18, 18, 4>}, {transform_indices = @transform_1, window_bounds = array<i64: 36, 128>}, {transform_indices = @transform_2, window_bounds = array<i64: 1, 128>}, {transform_indices = @transform_3, window_bounds = array<i64: 1, 256, 128>}]} {
    %c16_i32 = arith.constant 16 : i32
    %0 = arith.muli %arg1, %c16_i32 : i32
    %1 = tpu.assume_multiple %0, 16 : i32
    %c0_i32 = arith.constant 0 : i32
    %2 = arith.cmpi eq, %arg2, %c0_i32 : i32
    %3 = arith.extui %2 : i1 to i32
    %c0_i32_0 = arith.constant 0 : i32
    %4 = arith.cmpi ne, %3, %c0_i32_0 : i32
    scf.if %4 {
      %c0_i32_10 = arith.constant 0 : i32
      %17 = arith.addi %1, %c0_i32_10 : i32
      %c0_11 = arith.constant 0 : index
      %18 = arith.index_cast %17 : i32 to index
      %c0_12 = arith.constant 0 : index
      %c0_13 = arith.constant 0 : index
      %19 = vector.load %arg3[%c0_11, %18, %c0_12, %c0_13] : memref<1x18x18x4xbf16, #tpu.memory_space<vmem>>, vector<1x16x16x4xbf16>
      %20 = vector.shape_cast %19 : vector<1x16x16x4xbf16> to vector<16x16x4xbf16>
      %21 = vector.shape_cast %20 : vector<16x16x4xbf16> to vector<256x4xbf16>
      %c0_14 = arith.constant 0 : index
      %c0_15 = arith.constant 0 : index
      %22 = vector.load %arg7[%c0_14, %c0_15] : memref<256x36xbf16, #tpu.memory_space<vmem>>, vector<256x4xbf16>
      tpu.vector_store %arg7[%c0_14, %c0_15], %21 {strides = array<i32>} : memref<256x36xbf16, #tpu.memory_space<vmem>>, vector<256x4xbf16>,
      %c0_i32_16 = arith.constant 0 : i32
      %23 = arith.addi %1, %c0_i32_16 : i32
      %c0_17 = arith.constant 0 : index
      %24 = arith.index_cast %23 : i32 to index
      %c1 = arith.constant 1 : index
      %c0_18 = arith.constant 0 : index
      %25 = vector.load %arg3[%c0_17, %24, %c1, %c0_18] : memref<1x18x18x4xbf16, #tpu.memory_space<vmem>>, vector<1x16x16x4xbf16>
      %26 = vector.shape_cast %25 : vector<1x16x16x4xbf16> to vector<16x16x4xbf16>
      %27 = vector.shape_cast %26 : vector<16x16x4xbf16> to vector<256x4xbf16>
      %c0_19 = arith.constant 0 : index
      %c4 = arith.constant 4 : index
      %28 = vector.load %arg7[%c0_19, %c4] : memref<256x36xbf16, #tpu.memory_space<vmem>>, vector<256x4xbf16>
      tpu.vector_store %arg7[%c0_19, %c4], %27 {strides = array<i32>} : memref<256x36xbf16, #tpu.memory_space<vmem>>, vector<256x4xbf16>,
      %c0_i32_20 = arith.constant 0 : i32
      %29 = arith.addi %1, %c0_i32_20 : i32
      %c0_21 = arith.constant 0 : index
      %30 = arith.index_cast %29 : i32 to index
      %c2 = arith.constant 2 : index
      %c0_22 = arith.constant 0 : index
      %31 = vector.load %arg3[%c0_21, %30, %c2, %c0_22] : memref<1x18x18x4xbf16, #tpu.memory_space<vmem>>, vector<1x16x16x4xbf16>
      %32 = vector.shape_cast %31 : vector<1x16x16x4xbf16> to vector<16x16x4xbf16>
      %33 = vector.shape_cast %32 : vector<16x16x4xbf16> to vector<256x4xbf16>
      %c0_23 = arith.constant 0 : index
      %c8 = arith.constant 8 : index
      %34 = vector.load %arg7[%c0_23, %c8] : memref<256x36xbf16, #tpu.memory_space<vmem>>, vector<256x4xbf16>
      tpu.vector_store %arg7[%c0_23, %c8], %33 {strides = array<i32>} : memref<256x36xbf16, #tpu.memory_space<vmem>>, vector<256x4xbf16>,
      %c1_i32 = arith.constant 1 : i32
      %35 = arith.addi %1, %c1_i32 : i32
      %c0_24 = arith.constant 0 : index
      %36 = arith.index_cast %35 : i32 to index
      %c0_25 = arith.constant 0 : index
      %c0_26 = arith.constant 0 : index
      %37 = vector.load %arg3[%c0_24, %36, %c0_25, %c0_26] : memref<1x18x18x4xbf16, #tpu.memory_space<vmem>>, vector<1x16x16x4xbf16>
      %38 = vector.shape_cast %37 : vector<1x16x16x4xbf16> to vector<16x16x4xbf16>
      %39 = vector.shape_cast %38 : vector<16x16x4xbf16> to vector<256x4xbf16>
      %c0_27 = arith.constant 0 : index
      %c12 = arith.constant 12 : index
      %40 = vector.load %arg7[%c0_27, %c12] : memref<256x36xbf16, #tpu.memory_space<vmem>>, vector<256x4xbf16>
      tpu.vector_store %arg7[%c0_27, %c12], %39 {strides = array<i32>} : memref<256x36xbf16, #tpu.memory_space<vmem>>, vector<256x4xbf16>,
      %c1_i32_28 = arith.constant 1 : i32
      %41 = arith.addi %1, %c1_i32_28 : i32
      %c0_29 = arith.constant 0 : index
      %42 = arith.index_cast %41 : i32 to index
      %c1_30 = arith.constant 1 : index
      %c0_31 = arith.constant 0 : index
      %43 = vector.load %arg3[%c0_29, %42, %c1_30, %c0_31] : memref<1x18x18x4xbf16, #tpu.memory_space<vmem>>, vector<1x16x16x4xbf16>
      %44 = vector.shape_cast %43 : vector<1x16x16x4xbf16> to vector<16x16x4xbf16>
      %45 = vector.shape_cast %44 : vector<16x16x4xbf16> to vector<256x4xbf16>
      %c0_32 = arith.constant 0 : index
      %c16 = arith.constant 16 : index
      %46 = vector.load %arg7[%c0_32, %c16] : memref<256x36xbf16, #tpu.memory_space<vmem>>, vector<256x4xbf16>
      tpu.vector_store %arg7[%c0_32, %c16], %45 {strides = array<i32>} : memref<256x36xbf16, #tpu.memory_space<vmem>>, vector<256x4xbf16>,
      %c1_i32_33 = arith.constant 1 : i32
      %47 = arith.addi %1, %c1_i32_33 : i32
      %c0_34 = arith.constant 0 : index
      %48 = arith.index_cast %47 : i32 to index
      %c2_35 = arith.constant 2 : index
      %c0_36 = arith.constant 0 : index
      %49 = vector.load %arg3[%c0_34, %48, %c2_35, %c0_36] : memref<1x18x18x4xbf16, #tpu.memory_space<vmem>>, vector<1x16x16x4xbf16>
      %50 = vector.shape_cast %49 : vector<1x16x16x4xbf16> to vector<16x16x4xbf16>
      %51 = vector.shape_cast %50 : vector<16x16x4xbf16> to vector<256x4xbf16>
      %c0_37 = arith.constant 0 : index
      %c20 = arith.constant 20 : index
      %52 = vector.load %arg7[%c0_37, %c20] : memref<256x36xbf16, #tpu.memory_space<vmem>>, vector<256x4xbf16>
      tpu.vector_store %arg7[%c0_37, %c20], %51 {strides = array<i32>} : memref<256x36xbf16, #tpu.memory_space<vmem>>, vector<256x4xbf16>,
      %c2_i32 = arith.constant 2 : i32
      %53 = arith.addi %1, %c2_i32 : i32
      %c0_38 = arith.constant 0 : index
      %54 = arith.index_cast %53 : i32 to index
      %c0_39 = arith.constant 0 : index
      %c0_40 = arith.constant 0 : index
      %55 = vector.load %arg3[%c0_38, %54, %c0_39, %c0_40] : memref<1x18x18x4xbf16, #tpu.memory_space<vmem>>, vector<1x16x16x4xbf16>
      %56 = vector.shape_cast %55 : vector<1x16x16x4xbf16> to vector<16x16x4xbf16>
      %57 = vector.shape_cast %56 : vector<16x16x4xbf16> to vector<256x4xbf16>
      %c0_41 = arith.constant 0 : index
      %c24 = arith.constant 24 : index
      %58 = vector.load %arg7[%c0_41, %c24] : memref<256x36xbf16, #tpu.memory_space<vmem>>, vector<256x4xbf16>
      tpu.vector_store %arg7[%c0_41, %c24], %57 {strides = array<i32>} : memref<256x36xbf16, #tpu.memory_space<vmem>>, vector<256x4xbf16>,
      %c2_i32_42 = arith.constant 2 : i32
      %59 = arith.addi %1, %c2_i32_42 : i32
      %c0_43 = arith.constant 0 : index
      %60 = arith.index_cast %59 : i32 to index
      %c1_44 = arith.constant 1 : index
      %c0_45 = arith.constant 0 : index
      %61 = vector.load %arg3[%c0_43, %60, %c1_44, %c0_45] : memref<1x18x18x4xbf16, #tpu.memory_space<vmem>>, vector<1x16x16x4xbf16>
      %62 = vector.shape_cast %61 : vector<1x16x16x4xbf16> to vector<16x16x4xbf16>
      %63 = vector.shape_cast %62 : vector<16x16x4xbf16> to vector<256x4xbf16>
      %c0_46 = arith.constant 0 : index
      %c28 = arith.constant 28 : index
      %64 = vector.load %arg7[%c0_46, %c28] : memref<256x36xbf16, #tpu.memory_space<vmem>>, vector<256x4xbf16>
      tpu.vector_store %arg7[%c0_46, %c28], %63 {strides = array<i32>} : memref<256x36xbf16, #tpu.memory_space<vmem>>, vector<256x4xbf16>,
      %c2_i32_47 = arith.constant 2 : i32
      %65 = arith.addi %1, %c2_i32_47 : i32
      %c0_48 = arith.constant 0 : index
      %66 = arith.index_cast %65 : i32 to index
      %c2_49 = arith.constant 2 : index
      %c0_50 = arith.constant 0 : index
      %67 = vector.load %arg3[%c0_48, %66, %c2_49, %c0_50] : memref<1x18x18x4xbf16, #tpu.memory_space<vmem>>, vector<1x16x16x4xbf16>
      %68 = vector.shape_cast %67 : vector<1x16x16x4xbf16> to vector<16x16x4xbf16>
      %69 = vector.shape_cast %68 : vector<16x16x4xbf16> to vector<256x4xbf16>
      %c0_51 = arith.constant 0 : index
      %c32 = arith.constant 32 : index
      %70 = vector.load %arg7[%c0_51, %c32] : memref<256x36xbf16, #tpu.memory_space<vmem>>, vector<256x4xbf16>
      tpu.vector_store %arg7[%c0_51, %c32], %69 {strides = array<i32>} : memref<256x36xbf16, #tpu.memory_space<vmem>>, vector<256x4xbf16>,
    } else {
    }
    %c0 = arith.constant 0 : index
    %c0_1 = arith.constant 0 : index
    %5 = vector.load %arg7[%c0, %c0_1] : memref<256x36xbf16, #tpu.memory_space<vmem>>, vector<256x36xbf16>
    %c0_2 = arith.constant 0 : index
    %c0_3 = arith.constant 0 : index
    %6 = vector.load %arg4[%c0_2, %c0_3] : memref<36x128xbf16, #tpu.memory_space<vmem>>, vector<36x128xbf16>
    %cst = arith.constant dense<0.000000e+00> : vector<256x128xf32>
    %7 = tpu.matmul %5, %6, %cst {dimension_numbers = #tpu.dot_dimension_numbers<[1], [0], [0], [1], [0, 0, 1, 1], [], []>} : vector<256x36xbf16>, vector<36x128xbf16>, vector<256x128xf32> -> vector<256x128xf32>
    %c0_4 = arith.constant 0 : index
    %c0_5 = arith.constant 0 : index
    %8 = vector.load %arg5[%c0_4, %c0_5] : memref<1x128xf32, #tpu.memory_space<vmem>>, vector<1x128xf32>
    %9 = vector.broadcast %8 : vector<1x128xf32> to vector<256x128xf32>
    %10 = arith.addf %7, %9 : vector<256x128xf32>
    %cst_6 = arith.constant 0.000000e+00 : f32
    %11 = vector.broadcast %cst_6 : f32 to vector<256x128xf32>
    %12 = arith.maximumf %10, %11 : vector<256x128xf32>
    %13 = arith.truncf %12 : vector<256x128xf32> to vector<256x128xbf16>
    %c0_7 = arith.constant 0 : index
    %c0_8 = arith.constant 0 : index
    %c0_9 = arith.constant 0 : index
    %14 = vector.load %arg6[%c0_7, %c0_8, %c0_9] : memref<1x256x128xbf16, #tpu.memory_space<vmem>>, vector<1x256x128xbf16>
    %15 = vector.shape_cast %14 : vector<1x256x128xbf16> to vector<256x128xbf16>
    %16 = vector.shape_cast %13 : vector<256x128xbf16> to vector<1x256x128xbf16>
    tpu.vector_store %arg6[%c0_7, %c0_8, %c0_9], %16 {strides = array<i32>} : memref<1x256x128xbf16, #tpu.memory_space<vmem>>, vector<1x256x128xbf16>,
    return
  }
  func.func @transform_0(%arg0: i32, %arg1: i32, %arg2: i32) -> (i32, i32, i32, i32) {
    %c0_i32 = arith.constant 0 : i32
    %c0_i32_0 = arith.constant 0 : i32
    %c0_i32_1 = arith.constant 0 : i32
    %c0_i32_2 = arith.constant 0 : i32
    return %arg0, %c0_i32, %c0_i32_0, %c0_i32_1 : i32, i32, i32, i32
  }
  func.func @transform_1(%arg0: i32, %arg1: i32, %arg2: i32) -> (i32, i32) {
    %c0_i32 = arith.constant 0 : i32
    %c0_i32_0 = arith.constant 0 : i32
    return %c0_i32, %arg2 : i32, i32
  }
  func.func @transform_2(%arg0: i32, %arg1: i32, %arg2: i32) -> (i32, i32) {
    %c0_i32 = arith.constant 0 : i32
    %c0_i32_0 = arith.constant 0 : i32
    return %c0_i32, %arg2 : i32, i32
  }
  func.func @transform_3(%arg0: i32, %arg1: i32, %arg2: i32) -> (i32, i32, i32) {
    %c0_i32 = arith.constant 0 : i32
    return %arg0, %arg1, %arg2 : i32, i32, i32
  }
}

</mosaic_0001>

<llo_original>
// kernel: tpu_custom_call.1
$region0: #{tpu_custom_call.1}
  #allocation0 [shape = 'u32[]', space=smem, size = 0x4, offset = 0x4, fixed_abs, tag = 'smem constant byte address 0x4 - core index']
  #allocation1 [shape = 'u32[72,128]{1,0:T(1,128)}', space=vmem, size = 0x9000, scoped, tag = 'internal scratch']
  #allocation2 [shape = 'bf16[256,36]{1,0:T(8,128)(2,1)}', space=vmem, size = 0x10000, scoped, tag = 'scratch operand']
  %s0 = inlined_call_operand.vmem [shape: bf16[2,18,18,4], index: 0, kind: input, shape index: {}]
  %s1 = inlined_call_operand.vmem [shape: bf16[36,128], index: 1, kind: input, shape index: {}]
  %s2 = inlined_call_operand.vmem [shape: f32[1,128], index: 2, kind: input, shape index: {}]
  %s3 = inlined_call_operand.hbm [shape: bf16[2,256,128], index: 3, kind: output, shape index: {}]
  %s4 = sld [smem:[#allocation0]]
  $region49: #{tpu_custom_call.1} parent=0
    _
  %s6 = ssub.s32 1, %s4
  %s7 = scalar_select 0, %s6, %s4
  $region1: #{tpu_custom_call.1} parent=0
    #allocation3 [shape = 'u8[131072]{0}', space=vmem, size = 0x20000, scoped, tag = 'output window, operand 0']
    #allocation4 [shape = 's32[2]{0}', space=sflag, size = 0x8, scoped, tag = 'scoped memory for tpu_custom_call.1']
    %8 = vsyncpa [#allocation4], 0
    %s9 = scalar_lea.sflag [#allocation4], 1
    %10 = vsyncpa %s9, 0
    loop: start=0, step=1, limit=4
    $region2: #{tpu_custom_call.1} parent=1 // loop_pre_header
      _
    $region3: #{tpu_custom_call.1} parent=1 // loop_header
      %s12 = sphi 0, %s16
      %p13 = scmp.ge.s32.totalorder %s12, 4
      %s19 = sphi 0, %s38
      %s20 = sphi 0, %s34
      %s21 = sphi 0, %s30
      %s22 = sphi 0, %s19
      %s23 = sphi 0, %s20
      %s24 = sphi 0, %s21
      %s25 = sphi 0, %s22
      %s26 = sphi 0, %s23
      %s27 = sphi 0, %s24
      %s41 = sphi 0, %s43
      %s44 = sphi 0, %s41
      %s45 = sphi 0, %s44
      %s61 = sphi 0, %s45
      %s67 = sphi 0, %s69
      %s70 = sphi 0, %s67
      %s71 = sphi 0, %s70
      %s87 = sphi 0, %s71
      %s93 = sphi 0, %s95
      %s96 = sphi 0, %s93
      %s97 = sphi 0, %s96
      %s113 = sphi 0, %s97
      %s123 = sphi 0, %s125
      %s126 = sphi 0, %s123
      %s127 = sphi 0, %s126
      %s143 = sphi 0, %s127
    $region4: #{tpu_custom_call.1} parent=1 // loop_header_branch
      %15 = sbr.rel (%p13) target = $region8
    $region5: #{tpu_custom_call.1} parent=1 // loop_body
      %s17 = ssub.s32 %s12, 1
      %s18 = ssub.s32 %s12, 2
      %s28 = sadd.s32 1, %s21
      %p29 = scmp.ge.s32.totalorder %s28, 1
      %s30 = scalar_select %p29, 0, %s28
      %s31 = sadd.s32 1, %s20
      %s32 = scalar_select %p29, %s31, %s20
      %p33 = scmp.ge.s32.totalorder %s32, 1
      %s34 = scalar_select %p33, 0, %s32
      %s35 = sadd.s32 1, %s19
      %s36 = scalar_select %p33, %s35, %s19
      %p37 = scmp.ge.s32.totalorder %s36, 2
      %s38 = scalar_select %p37, 0, %s36
      %s39 = ssub.s32 %s19, %s38
      %p40 = scmp.eq.s32.totalorder %s39, 0
      %s42 = sadd.s32 %s41, 1
      %s43 = scalar_select %p40, %s41, %s42
      %p46 = pneg %p40
      %p47 = scmp.eq.s32.totalorder %s12, 1
      %p48 = por %p46, %p47
      %p49 = scmp.ne.s32.totalorder %s41, %s44
      %p50 = scmp.eq.s32.totalorder %s12, 0
      %p51 = por %p49, %p50
      %p52 = scmp.ne.s32.totalorder %s41, %s44
      %p53 = scmp.eq.s32.totalorder %s17, 1
      %p54 = por %p52, %p53
      %p55 = scmp.ne.s32.totalorder %s44, %s45
      %p56 = scmp.eq.s32.totalorder %s17, 0
      %p57 = por %p55, %p56
      %p58 = scmp.ne.s32.totalorder %s44, %s45
      %p59 = scmp.eq.s32.totalorder %s18, 1
      %p60 = por %p58, %p59
      %p62 = scmp.ne.s32.totalorder %s45, %s61
      %p63 = scmp.eq.s32.totalorder %s18, 0
      %p64 = por %p62, %p63
      %s65 = ssub.s32 %s21, %s30
      %p66 = scmp.eq.s32.totalorder %s65, 0
      %s68 = sadd.s32 %s67, 1
      %s69 = scalar_select %p66, %s67, %s68
      %p72 = pneg %p66
      %p73 = scmp.eq.s32.totalorder %s12, 1
      %p74 = por %p72, %p73
      %p75 = scmp.ne.s32.totalorder %s67, %s70
      %p76 = scmp.eq.s32.totalorder %s12, 0
      %p77 = por %p75, %p76
      %p78 = scmp.ne.s32.totalorder %s67, %s70
      %p79 = scmp.eq.s32.totalorder %s17, 1
      %p80 = por %p78, %p79
      %p81 = scmp.ne.s32.totalorder %s70, %s71
      %p82 = scmp.eq.s32.totalorder %s17, 0
      %p83 = por %p81, %p82
      %p84 = scmp.ne.s32.totalorder %s70, %s71
      %p85 = scmp.eq.s32.totalorder %s18, 1
      %p86 = por %p84, %p85
      %p88 = scmp.ne.s32.totalorder %s71, %s87
      %p89 = scmp.eq.s32.totalorder %s18, 0
      %p90 = por %p88, %p89
      %s91 = ssub.s32 %s21, %s30
      %p92 = scmp.eq.s32.totalorder %s91, 0
      %s94 = sadd.s32 %s93, 1
      %s95 = scalar_select %p92, %s93, %s94
      %p98 = pneg %p92
      %p99 = scmp.eq.s32.totalorder %s12, 1
      %p100 = por %p98, %p99
      %p101 = scmp.ne.s32.totalorder %s93, %s96
      %p102 = scmp.eq.s32.totalorder %s12, 0
      %p103 = por %p101, %p102
      %p104 = scmp.ne.s32.totalorder %s93, %s96
      %p105 = scmp.eq.s32.totalorder %s17, 1
      %p106 = por %p104, %p105
      %p107 = scmp.ne.s32.totalorder %s96, %s97
      %p108 = scmp.eq.s32.totalorder %s17, 0
      %p109 = por %p107, %p108
      %p110 = scmp.ne.s32.totalorder %s96, %s97
      %p111 = scmp.eq.s32.totalorder %s18, 1
      %p112 = por %p110, %p111
      %p114 = scmp.ne.s32.totalorder %s97, %s113
      %p115 = scmp.eq.s32.totalorder %s18, 0
      %p116 = por %p114, %p115
      %s117 = ssub.s32 %s19, %s38
      %s118 = ssub.s32 %s20, %s34
      %s119 = sor.u32 %s117, %s118
      %s120 = ssub.s32 %s21, %s30
      %s121 = sor.u32 %s119, %s120
      %p122 = scmp.eq.s32.totalorder %s121, 0
      %s124 = sadd.s32 %s123, 1
      %s125 = scalar_select %p122, %s123, %s124
      %p128 = pneg %p122
      %p129 = scmp.eq.s32.totalorder %s12, 1
      %p130 = por %p128, %p129
      %p131 = scmp.ne.s32.totalorder %s123, %s126
      %p132 = scmp.eq.s32.totalorder %s12, 0
      %p133 = por %p131, %p132
      %p134 = scmp.ne.s32.totalorder %s123, %s126
      %p135 = scmp.eq.s32.totalorder %s17, 1
      %p136 = por %p134, %p135
      %p137 = scmp.ne.s32.totalorder %s126, %s127
      %p138 = scmp.eq.s32.totalorder %s17, 0
      %p139 = por %p137, %p138
      %p140 = scmp.ne.s32.totalorder %s126, %s127
      %p141 = scmp.eq.s32.totalorder %s18, 1
      %p142 = por %p140, %p141
      %p144 = scmp.ne.s32.totalorder %s127, %s143
      %p145 = scmp.eq.s32.totalorder %s18, 0
      %p146 = por %p144, %p145
      %p147 = scmp.le.s32.totalorder 1, %s12
      %p148 = scmp.lt.s32.totalorder %s12, 3
      %p149 = pnand %p147, %p148
      %p150 = pneg %p149
      // Predicated region
      $region9: #{tpu_custom_call.1} parent=5 // pred_check
        _
      $region10: #{tpu_custom_call.1} parent=5 // pred_check_branch
        %152 = sbr.rel (%p149) target = $region12
      $region11: #{tpu_custom_call.1} parent=5 // pred_region
        %s153 = ssub.s32 %s12, 1
        // Predicated region
        $region13: #{tpu_custom_call.1} parent=11 // pred_check
          %p154 = pneg %p83
        $region14: #{tpu_custom_call.1} parent=11 // pred_check_branch
          %156 = sbr.rel (%p154) target = $region16
        $region15: #{tpu_custom_call.1} parent=11 // pred_region
          %p157 = scmp.lt.s32.totalorder %s24, 0
          %s158 = scalar_select %p157, %s24, 0
          %s159 = smul.addr %s158, 4
          %s160 = scalar_lea.vmem %s1, %s159
        $region16: #{tpu_custom_call.1} parent=11 // pred_fallthru
          _
        // Predicated region
        $region17: #{tpu_custom_call.1} parent=11 // pred_check
          %p161 = pneg %p109
        $region18: #{tpu_custom_call.1} parent=11 // pred_check_branch
          %163 = sbr.rel (%p161) target = $region20
        $region19: #{tpu_custom_call.1} parent=11 // pred_region
          %p164 = scmp.lt.s32.totalorder %s24, 0
          %s165 = scalar_select %p164, %s24, 0
          %s166 = scalar_lea.vmem %s2, %s165
        $region20: #{tpu_custom_call.1} parent=11 // pred_fallthru
          _
      $region12: #{tpu_custom_call.1} parent=5 // pred_fallthru
        _
      %p167 = scmp.lt.s32.totalorder %s12, 2
      // Predicated region
      $region21: #{tpu_custom_call.1} parent=5 // pred_check
        %p168 = pneg %p167
      $region22: #{tpu_custom_call.1} parent=5 // pred_check_branch
        %170 = sbr.rel (%p168) target = $region24
      $region23: #{tpu_custom_call.1} parent=5 // pred_region
        // Predicated region
        $region25: #{tpu_custom_call.1} parent=23 // pred_check
          %p171 = pneg %p51
        $region26: #{tpu_custom_call.1} parent=23 // pred_check_branch
          %173 = sbr.rel (%p171) target = $region28
        $region27: #{tpu_custom_call.1} parent=23 // pred_region
          %p174 = scmp.lt.s32.totalorder %s19, 1
          %s175 = scalar_select %p174, %s19, 1
          %s176 = smul.addr %s175, 54
          %s177 = smul.addr %s176, 4
          %s178 = scalar_lea.vmem %s0, %s177
        $region28: #{tpu_custom_call.1} parent=23 // pred_fallthru
          _
      $region24: #{tpu_custom_call.1} parent=5 // pred_fallthru
        _
      %p179 = scmp.le.s32.totalorder 1, %s12
      %p180 = scmp.lt.s32.totalorder %s12, 3
      %p181 = pnand %p179, %p180
      %p182 = pneg %p181
      // Predicated region
      $region29: #{tpu_custom_call.1} parent=5 // pred_check
        _
      $region30: #{tpu_custom_call.1} parent=5 // pred_check_branch
        %184 = sbr.rel (%p181) target = $region32
      $region31: #{tpu_custom_call.1} parent=5 // pred_region
        %s185 = ssub.s32 %s12, 1
        %p186 = scmp.lt.s32.totalorder %s22, 1
        %s187 = scalar_select %p186, %s22, 1
        %s188 = smul.addr %s187, 54
        %s189 = smul.addr %s188, 4
        %s190 = scalar_lea.vmem %s0, %s189
        %p191 = pneg %p57
        %p192 = pneg %p54
        %p193 = scmp.lt.s32.totalorder %s24, 0
        %s194 = scalar_select %p193, %s24, 0
        %s195 = smul.addr %s194, 4
        %s196 = scalar_lea.vmem %s1, %s195
        %p197 = pneg %p83
        %p198 = pneg %p80
        %p199 = scmp.lt.s32.totalorder %s24, 0
        %s200 = scalar_select %p199, %s24, 0
        %s201 = scalar_lea.vmem %s2, %s200
        %p202 = pneg %p109
        %p203 = pneg %p106
        %p204 = pneg %p139
        %p205 = pneg %p136
        %s206 = sand.u32 %s126, 1
        %s207 = scalar_lea.sflag [#allocation4], %s206
        %s208 = sand.u32 %s126, 1
        %s209 = smul.addr %s208, 128
        %s210 = scalar_lea.vmem [#allocation3], %s209
        %p211 = scmp.lt.s32.totalorder %s22, 1
        %s212 = scalar_select %p211, %s22, 1
        %s213 = smul.addr %s212, 54
        %s214 = smul.addr %s213, 4
        %s215 = scalar_lea.vmem %s0, %s214
        %p216 = scmp.lt.s32.totalorder %s24, 0
        %s217 = scalar_select %p216, %s24, 0
        %s218 = smul.addr %s217, 4
        %s219 = scalar_lea.vmem %s1, %s218
        %p220 = scmp.lt.s32.totalorder %s24, 0
        %s221 = scalar_select %p220, %s24, 0
        %s222 = scalar_lea.vmem %s2, %s221
        %s223 = smul.u32 32, %s23
        %s225 = smul.u32 %s23, 16
        %p226 = scmp.eq.s32.totalorder %s24, 0
        // Predicated region
        $region33: #{tpu_custom_call.1} parent=31 // pred_check
          %p227 = pneg %p226
        $region34: #{tpu_custom_call.1} parent=31 // pred_check_branch
          %229 = sbr.rel (%p227) target = $region36
        $region35: #{tpu_custom_call.1} parent=31 // pred_region
          %s230 = smul.u32 %s225, 3
          %s231 = smul.addr %s230, 4
          %s232 = scalar_lea.vmem %s215, %s231
          %v233 = vld [vmem:[%s232] sm:$0xf]
          %v234 = vld [vmem:[%s232 + $0x4] sm:$0xf]
          %v235 = vld [vmem:[%s232 + $0xc] sm:$0xf]
          %v236 = vld [vmem:[%s232 + $0x10] sm:$0xf]
          %v237 = vld [vmem:[%s232 + $0x18] sm:$0xf]
          %v238 = vld [vmem:[%s232 + $0x1c] sm:$0xf]
          %v239 = vld [vmem:[%s232 + $0x24] sm:$0xf]
          %v240 = vld [vmem:[%s232 + $0x28] sm:$0xf]
          %v241 = vld [vmem:[%s232 + $0x30] sm:$0xf]
          %v242 = vld [vmem:[%s232 + $0x34] sm:$0xf]
          %v243 = vld [vmem:[%s232 + $0x3c] sm:$0xf]
          %v244 = vld [vmem:[%s232 + $0x40] sm:$0xf]
          %v245 = vld [vmem:[%s232 + $0x48] sm:$0xf]
          %v246 = vld [vmem:[%s232 + $0x4c] sm:$0xf]
          %v247 = vld [vmem:[%s232 + $0x54] sm:$0xf]
          %v248 = vld [vmem:[%s232 + $0x58] sm:$0xf]
          %v249 = vld [vmem:[%s232 + $0x60] sm:$0xf]
          %v250 = vld [vmem:[%s232 + $0x64] sm:$0xf]
          %v251 = vld [vmem:[%s232 + $0x6c] sm:$0xf]
          %v252 = vld [vmem:[%s232 + $0x70] sm:$0xf]
          %v253 = vld [vmem:[%s232 + $0x78] sm:$0xf]
          %v254 = vld [vmem:[%s232 + $0x7c] sm:$0xf]
          %v255 = vld [vmem:[%s232 + $0x84] sm:$0xf]
          %v256 = vld [vmem:[%s232 + $0x88] sm:$0xf]
          %v257 = vld [vmem:[%s232 + $0x90] sm:$0xf]
          %v258 = vld [vmem:[%s232 + $0x94] sm:$0xf]
          %v259 = vld [vmem:[%s232 + $0x9c] sm:$0xf]
          %v260 = vld [vmem:[%s232 + $0xa0] sm:$0xf]
          %v261 = vld [vmem:[%s232 + $0xa8] sm:$0xf]
          %v262 = vld [vmem:[%s232 + $0xac] sm:$0xf]
          %v263 = vld [vmem:[%s232 + $0xb4] sm:$0xf]
          %v264 = vld [vmem:[%s232 + $0xb8] sm:$0xf]
          %vm265 = vcmask 27648
          %266 = vst.msk [vmem:[#allocation2] sm:$0xf] %vm265, %v233
          %267 = vst.msk [vmem:[#allocation2 + $0x4] sm:$0xf] %vm265, %v234
          %268 = vst.msk [vmem:[#allocation2 + $0x8] sm:$0xf] %vm265, %v235
          %269 = vst.msk [vmem:[#allocation2 + $0xc] sm:$0xf] %vm265, %v236
          %270 = vst.msk [vmem:[#allocation2 + $0x10] sm:$0xf] %vm265, %v237
          %271 = vst.msk [vmem:[#allocation2 + $0x14] sm:$0xf] %vm265, %v238
          %272 = vst.msk [vmem:[#allocation2 + $0x18] sm:$0xf] %vm265, %v239
          %273 = vst.msk [vmem:[#allocation2 + $0x1c] sm:$0xf] %vm265, %v240
          %274 = vst.msk [vmem:[#allocation2 + $0x20] sm:$0xf] %vm265, %v241
          %275 = vst.msk [vmem:[#allocation2 + $0x24] sm:$0xf] %vm265, %v242
          %276 = vst.msk [vmem:[#allocation2 + $0x28] sm:$0xf] %vm265, %v243
          %277 = vst.msk [vmem:[#allocation2 + $0x2c] sm:$0xf] %vm265, %v244
          %278 = vst.msk [vmem:[#allocation2 + $0x30] sm:$0xf] %vm265, %v245
          %279 = vst.msk [vmem:[#allocation2 + $0x34] sm:$0xf] %vm265, %v246
          %280 = vst.msk [vmem:[#allocation2 + $0x38] sm:$0xf] %vm265, %v247
          %281 = vst.msk [vmem:[#allocation2 + $0x3c] sm:$0xf] %vm265, %v248
          %282 = vst.msk [vmem:[#allocation2 + $0x40] sm:$0xf] %vm265, %v249
          %283 = vst.msk [vmem:[#allocation2 + $0x44] sm:$0xf] %vm265, %v250
          %284 = vst.msk [vmem:[#allocation2 + $0x48] sm:$0xf] %vm265, %v251
          %285 = vst.msk [vmem:[#allocation2 + $0x4c] sm:$0xf] %vm265, %v252
          %286 = vst.msk [vmem:[#allocation2 + $0x50] sm:$0xf] %vm265, %v253
          %287 = vst.msk [vmem:[#allocation2 + $0x54] sm:$0xf] %vm265, %v254
          %288 = vst.msk [vmem:[#allocation2 + $0x58] sm:$0xf] %vm265, %v255
          %289 = vst.msk [vmem:[#allocation2 + $0x5c] sm:$0xf] %vm265, %v256
          %290 = vst.msk [vmem:[#allocation2 + $0x60] sm:$0xf] %vm265, %v257
          %291 = vst.msk [vmem:[#allocation2 + $0x64] sm:$0xf] %vm265, %v258
          %292 = vst.msk [vmem:[#allocation2 + $0x68] sm:$0xf] %vm265, %v259
          %293 = vst.msk [vmem:[#allocation2 + $0x6c] sm:$0xf] %vm265, %v260
          %294 = vst.msk [vmem:[#allocation2 + $0x70] sm:$0xf] %vm265, %v261
          %295 = vst.msk [vmem:[#allocation2 + $0x74] sm:$0xf] %vm265, %v262
          %296 = vst.msk [vmem:[#allocation2 + $0x78] sm:$0xf] %vm265, %v263
          %297 = vst.msk [vmem:[#allocation2 + $0x7c] sm:$0xf] %vm265, %v264
          %v298 = vld [vmem:[%s232] sm:$0xf]
          %v299 = vld [vmem:[%s232 + $0x4] sm:$0xf]
          %v300 = vld [vmem:[%s232 + $0x8] sm:$0x1]
          %v301 = vld [vmem:[%s232 + $0xc] sm:$0xf]
          %v302 = vld [vmem:[%s232 + $0x10] sm:$0xf]
          %v303 = vld [vmem:[%s232 + $0x14] sm:$0x1]
          %v304 = vld [vmem:[%s232 + $0x18] sm:$0xf]
          %v305 = vld [vmem:[%s232 + $0x1c] sm:$0xf]
          %v306 = vld [vmem:[%s232 + $0x20] sm:$0x1]
          %v307 = vld [vmem:[%s232 + $0x24] sm:$0xf]
          %v308 = vld [vmem:[%s232 + $0x28] sm:$0xf]
          %v309 = vld [vmem:[%s232 + $0x2c] sm:$0x1]
          %v310 = vld [vmem:[%s232 + $0x30] sm:$0xf]
          %v311 = vld [vmem:[%s232 + $0x34] sm:$0xf]
          %v312 = vld [vmem:[%s232 + $0x38] sm:$0x1]
          %v313 = vld [vmem:[%s232 + $0x3c] sm:$0xf]
          %v314 = vld [vmem:[%s232 + $0x40] sm:$0xf]
          %v315 = vld [vmem:[%s232 + $0x44] sm:$0x1]
          %v316 = vld [vmem:[%s232 + $0x48] sm:$0xf]
          %v317 = vld [vmem:[%s232 + $0x4c] sm:$0xf]
          %v318 = vld [vmem:[%s232 + $0x50] sm:$0x1]
          %v319 = vld [vmem:[%s232 + $0x54] sm:$0xf]
          %v320 = vld [vmem:[%s232 + $0x58] sm:$0xf]
          %v321 = vld [vmem:[%s232 + $0x5c] sm:$0x1]
          %v322 = vld [vmem:[%s232 + $0x60] sm:$0xf]
          %v323 = vld [vmem:[%s232 + $0x64] sm:$0xf]
          %v324 = vld [vmem:[%s232 + $0x68] sm:$0x1]
          %v325 = vld [vmem:[%s232 + $0x6c] sm:$0xf]
          %v326 = vld [vmem:[%s232 + $0x70] sm:$0xf]
          %v327 = vld [vmem:[%s232 + $0x74] sm:$0x1]
          %v328 = vld [vmem:[%s232 + $0x78] sm:$0xf]
          %v329 = vld [vmem:[%s232 + $0x7c] sm:$0xf]
          %v330 = vld [vmem:[%s232 + $0x80] sm:$0x1]
          %v331 = vld [vmem:[%s232 + $0x84] sm:$0xf]
          %v332 = vld [vmem:[%s232 + $0x88] sm:$0xf]
          %v333 = vld [vmem:[%s232 + $0x8c] sm:$0x1]
          %v334 = vld [vmem:[%s232 + $0x90] sm:$0xf]
          %v335 = vld [vmem:[%s232 + $0x94] sm:$0xf]
          %v336 = vld [vmem:[%s232 + $0x98] sm:$0x1]
          %v337 = vld [vmem:[%s232 + $0x9c] sm:$0xf]
          %v338 = vld [vmem:[%s232 + $0xa0] sm:$0xf]
          %v339 = vld [vmem:[%s232 + $0xa4] sm:$0x1]
          %v340 = vld [vmem:[%s232 + $0xa8] sm:$0xf]
          %v341 = vld [vmem:[%s232 + $0xac] sm:$0xf]
          %v342 = vld [vmem:[%s232 + $0xb0] sm:$0x1]
          %v343 = vld [vmem:[%s232 + $0xb4] sm:$0xf]
          %v344 = vld [vmem:[%s232 + $0xb8] sm:$0xf]
          %v345 = vld [vmem:[%s232 + $0xbc] sm:$0x1]
          %vm346 = vsmask.f32 3328
          %vm347 = vsmask.f32 7440
          %vm348 = vmor %vm346, %vm347
          %v350 = vshrl.u32 %v298, 16
          %v352 = vrot.slane %v350, 4
          %v353 = vshll.u32 %v298, 16
          %v355 = vrot.slane %v353, 5
          %v356 = vor.u32 %v352, %v355
          %v357 = vrot.slane %v356, 4
          %v359 = vshll.u32 %v299, 16
          %v361 = vrot.slane %v359, 5
          %v362 = vsel %vm348, %v357, %v361
          %v363 = vshrl.u32 %v299, 16
          %v365 = vrot.slane %v363, 4
          %v366 = vor.u32 %v365, %v361
          %v367 = vrot.slane %v366, 4
          %v369 = vshll.u32 %v300, 16
          %v371 = vrot.slane %v369, 5
          %v372 = vsel %vm348, %v367, %v371
          %v374 = vshrl.u32 %v301, 16
          %v376 = vrot.slane %v374, 4
          %v377 = vshll.u32 %v301, 16
          %v379 = vrot.slane %v377, 5
          %v380 = vor.u32 %v376, %v379
          %v381 = vrot.slane %v380, 4
          %v383 = vshll.u32 %v302, 16
          %v385 = vrot.slane %v383, 5
          %v386 = vsel %vm348, %v381, %v385
          %v387 = vshrl.u32 %v302, 16
          %v389 = vrot.slane %v387, 4
          %v390 = vor.u32 %v389, %v385
          %v391 = vrot.slane %v390, 4
          %v393 = vshll.u32 %v303, 16
          %v395 = vrot.slane %v393, 5
          %v396 = vsel %vm348, %v391, %v395
          %v398 = vshrl.u32 %v304, 16
          %v400 = vrot.slane %v398, 4
          %v401 = vshll.u32 %v304, 16
          %v403 = vrot.slane %v401, 5
          %v404 = vor.u32 %v400, %v403
          %v405 = vrot.slane %v404, 4
          %v407 = vshll.u32 %v305, 16
          %v409 = vrot.slane %v407, 5
          %v410 = vsel %vm348, %v405, %v409
          %v411 = vshrl.u32 %v305, 16
          %v413 = vrot.slane %v411, 4
          %v414 = vor.u32 %v413, %v409
          %v415 = vrot.slane %v414, 4
          %v417 = vshll.u32 %v306, 16
          %v419 = vrot.slane %v417, 5
          %v420 = vsel %vm348, %v415, %v419
          %v422 = vshrl.u32 %v307, 16
          %v424 = vrot.slane %v422, 4
          %v425 = vshll.u32 %v307, 16
          %v427 = vrot.slane %v425, 5
          %v428 = vor.u32 %v424, %v427
          %v429 = vrot.slane %v428, 4
          %v431 = vshll.u32 %v308, 16
          %v433 = vrot.slane %v431, 5
          %v434 = vsel %vm348, %v429, %v433
          %v435 = vshrl.u32 %v308, 16
          %v437 = vrot.slane %v435, 4
          %v438 = vor.u32 %v437, %v433
          %v439 = vrot.slane %v438, 4
          %v441 = vshll.u32 %v309, 16
          %v443 = vrot.slane %v441, 5
          %v444 = vsel %vm348, %v439, %v443
          %v446 = vshrl.u32 %v310, 16
          %v448 = vrot.slane %v446, 4
          %v449 = vshll.u32 %v310, 16
          %v451 = vrot.slane %v449, 5
          %v452 = vor.u32 %v448, %v451
          %v453 = vrot.slane %v452, 4
          %v455 = vshll.u32 %v311, 16
          %v457 = vrot.slane %v455, 5
          %v458 = vsel %vm348, %v453, %v457
          %v459 = vshrl.u32 %v311, 16
          %v461 = vrot.slane %v459, 4
          %v462 = vor.u32 %v461, %v457
          %v463 = vrot.slane %v462, 4
          %v465 = vshll.u32 %v312, 16
          %v467 = vrot.slane %v465, 5
          %v468 = vsel %vm348, %v463, %v467
          %v470 = vshrl.u32 %v313, 16
          %v472 = vrot.slane %v470, 4
          %v473 = vshll.u32 %v313, 16
          %v475 = vrot.slane %v473, 5
          %v476 = vor.u32 %v472, %v475
          %v477 = vrot.slane %v476, 4
          %v479 = vshll.u32 %v314, 16
          %v481 = vrot.slane %v479, 5
          %v482 = vsel %vm348, %v477, %v481
          %v483 = vshrl.u32 %v314, 16
          %v485 = vrot.slane %v483, 4
          %v486 = vor.u32 %v485, %v481
          %v487 = vrot.slane %v486, 4
          %v489 = vshll.u32 %v315, 16
          %v491 = vrot.slane %v489, 5
          %v492 = vsel %vm348, %v487, %v491
          %v494 = vshrl.u32 %v316, 16
          %v496 = vrot.slane %v494, 4
          %v497 = vshll.u32 %v316, 16
          %v499 = vrot.slane %v497, 5
          %v500 = vor.u32 %v496, %v499
          %v501 = vrot.slane %v500, 4
          %v503 = vshll.u32 %v317, 16
          %v505 = vrot.slane %v503, 5
          %v506 = vsel %vm348, %v501, %v505
          %v507 = vshrl.u32 %v317, 16
          %v509 = vrot.slane %v507, 4
          %v510 = vor.u32 %v509, %v505
          %v511 = vrot.slane %v510, 4
          %v513 = vshll.u32 %v318, 16
          %v515 = vrot.slane %v513, 5
          %v516 = vsel %vm348, %v511, %v515
          %v518 = vshrl.u32 %v319, 16
          %v520 = vrot.slane %v518, 4
          %v521 = vshll.u32 %v319, 16
          %v523 = vrot.slane %v521, 5
          %v524 = vor.u32 %v520, %v523
          %v525 = vrot.slane %v524, 4
          %v527 = vshll.u32 %v320, 16
          %v529 = vrot.slane %v527, 5
          %v530 = vsel %vm348, %v525, %v529
          %v531 = vshrl.u32 %v320, 16
          %v533 = vrot.slane %v531, 4
          %v534 = vor.u32 %v533, %v529
          %v535 = vrot.slane %v534, 4
          %v537 = vshll.u32 %v321, 16
          %v539 = vrot.slane %v537, 5
          %v540 = vsel %vm348, %v535, %v539
          %v542 = vshrl.u32 %v322, 16
          %v544 = vrot.slane %v542, 4
          %v545 = vshll.u32 %v322, 16
          %v547 = vrot.slane %v545, 5
          %v548 = vor.u32 %v544, %v547
          %v549 = vrot.slane %v548, 4
          %v551 = vshll.u32 %v323, 16
          %v553 = vrot.slane %v551, 5
          %v554 = vsel %vm348, %v549, %v553
          %v555 = vshrl.u32 %v323, 16
          %v557 = vrot.slane %v555, 4
          %v558 = vor.u32 %v557, %v553
          %v559 = vrot.slane %v558, 4
          %v561 = vshll.u32 %v324, 16
          %v563 = vrot.slane %v561, 5
          %v564 = vsel %vm348, %v559, %v563
          %v566 = vshrl.u32 %v325, 16
          %v568 = vrot.slane %v566, 4
          %v569 = vshll.u32 %v325, 16
          %v571 = vrot.slane %v569, 5
          %v572 = vor.u32 %v568, %v571
          %v573 = vrot.slane %v572, 4
          %v575 = vshll.u32 %v326, 16
          %v577 = vrot.slane %v575, 5
          %v578 = vsel %vm348, %v573, %v577
          %v579 = vshrl.u32 %v326, 16
          %v581 = vrot.slane %v579, 4
          %v582 = vor.u32 %v581, %v577
          %v583 = vrot.slane %v582, 4
          %v585 = vshll.u32 %v327, 16
          %v587 = vrot.slane %v585, 5
          %v588 = vsel %vm348, %v583, %v587
          %v590 = vshrl.u32 %v328, 16
          %v592 = vrot.slane %v590, 4
          %v593 = vshll.u32 %v328, 16
          %v595 = vrot.slane %v593, 5
          %v596 = vor.u32 %v592, %v595
          %v597 = vrot.slane %v596, 4
          %v599 = vshll.u32 %v329, 16
          %v601 = vrot.slane %v599, 5
          %v602 = vsel %vm348, %v597, %v601
          %v603 = vshrl.u32 %v329, 16
          %v605 = vrot.slane %v603, 4
          %v606 = vor.u32 %v605, %v601
          %v607 = vrot.slane %v606, 4
          %v609 = vshll.u32 %v330, 16
          %v611 = vrot.slane %v609, 5
          %v612 = vsel %vm348, %v607, %v611
          %v614 = vshrl.u32 %v331, 16
          %v616 = vrot.slane %v614, 4
          %v617 = vshll.u32 %v331, 16
          %v619 = vrot.slane %v617, 5
          %v620 = vor.u32 %v616, %v619
          %v621 = vrot.slane %v620, 4
          %v623 = vshll.u32 %v332, 16
          %v625 = vrot.slane %v623, 5
          %v626 = vsel %vm348, %v621, %v625
          %v627 = vshrl.u32 %v332, 16
          %v629 = vrot.slane %v627, 4
          %v630 = vor.u32 %v629, %v625
          %v631 = vrot.slane %v630, 4
          %v633 = vshll.u32 %v333, 16
          %v635 = vrot.slane %v633, 5
          %v636 = vsel %vm348, %v631, %v635
          %v638 = vshrl.u32 %v334, 16
          %v640 = vrot.slane %v638, 4
          %v641 = vshll.u32 %v334, 16
          %v643 = vrot.slane %v641, 5
          %v644 = vor.u32 %v640, %v643
          %v645 = vrot.slane %v644, 4
          %v647 = vshll.u32 %v335, 16
          %v649 = vrot.slane %v647, 5
          %v650 = vsel %vm348, %v645, %v649
          %v651 = vshrl.u32 %v335, 16
          %v653 = vrot.slane %v651, 4
          %v654 = vor.u32 %v653, %v649
          %v655 = vrot.slane %v654, 4
          %v657 = vshll.u32 %v336, 16
          %v659 = vrot.slane %v657, 5
          %v660 = vsel %vm348, %v655, %v659
          %v662 = vshrl.u32 %v337, 16
          %v664 = vrot.slane %v662, 4
          %v665 = vshll.u32 %v337, 16
          %v667 = vrot.slane %v665, 5
          %v668 = vor.u32 %v664, %v667
          %v669 = vrot.slane %v668, 4
          %v671 = vshll.u32 %v338, 16
          %v673 = vrot.slane %v671, 5
          %v674 = vsel %vm348, %v669, %v673
          %v675 = vshrl.u32 %v338, 16
          %v677 = vrot.slane %v675, 4
          %v678 = vor.u32 %v677, %v673
          %v679 = vrot.slane %v678, 4
          %v681 = vshll.u32 %v339, 16
          %v683 = vrot.slane %v681, 5
          %v684 = vsel %vm348, %v679, %v683
          %v686 = vshrl.u32 %v340, 16
          %v688 = vrot.slane %v686, 4
          %v689 = vshll.u32 %v340, 16
          %v691 = vrot.slane %v689, 5
          %v692 = vor.u32 %v688, %v691
          %v693 = vrot.slane %v692, 4
          %v695 = vshll.u32 %v341, 16
          %v697 = vrot.slane %v695, 5
          %v698 = vsel %vm348, %v693, %v697
          %v699 = vshrl.u32 %v341, 16
          %v701 = vrot.slane %v699, 4
          %v702 = vor.u32 %v701, %v697
          %v703 = vrot.slane %v702, 4
          %v705 = vshll.u32 %v342, 16
          %v707 = vrot.slane %v705, 5
          %v708 = vsel %vm348, %v703, %v707
          %v710 = vshrl.u32 %v343, 16
          %v712 = vrot.slane %v710, 4
          %v713 = vshll.u32 %v343, 16
          %v715 = vrot.slane %v713, 5
          %v716 = vor.u32 %v712, %v715
          %v717 = vrot.slane %v716, 4
          %v719 = vshll.u32 %v344, 16
          %v721 = vrot.slane %v719, 5
          %v722 = vsel %vm348, %v717, %v721
          %v723 = vshrl.u32 %v344, 16
          %v725 = vrot.slane %v723, 4
          %v726 = vor.u32 %v725, %v721
          %v727 = vrot.slane %v726, 4
          %v729 = vshll.u32 %v345, 16
          %v731 = vrot.slane %v729, 5
          %v732 = vsel %vm348, %v727, %v731
          %733 = vrot.lane.b32.xlu0 %v362, 4
          %v734 = vpop.permute.xlu0 %733
          %735 = vrot.lane.b32.xlu0 %v372, 4
          %v736 = vpop.permute.xlu0 %735
          %737 = vrot.lane.b32.xlu0 %v386, 4
          %v738 = vpop.permute.xlu0 %737
          %739 = vrot.lane.b32.xlu0 %v396, 4
          %v740 = vpop.permute.xlu0 %739
          %741 = vrot.lane.b32.xlu0 %v410, 4
          %v742 = vpop.permute.xlu0 %741
          %743 = vrot.lane.b32.xlu0 %v420, 4
          %v744 = vpop.permute.xlu0 %743
          %745 = vrot.lane.b32.xlu0 %v434, 4
          %v746 = vpop.permute.xlu0 %745
          %747 = vrot.lane.b32.xlu0 %v444, 4
          %v748 = vpop.permute.xlu0 %747
          %749 = vrot.lane.b32.xlu0 %v458, 4
          %v750 = vpop.permute.xlu0 %749
          %751 = vrot.lane.b32.xlu0 %v468, 4
          %v752 = vpop.permute.xlu0 %751
          %753 = vrot.lane.b32.xlu0 %v482, 4
          %v754 = vpop.permute.xlu0 %753
          %755 = vrot.lane.b32.xlu0 %v492, 4
          %v756 = vpop.permute.xlu0 %755
          %757 = vrot.lane.b32.xlu0 %v506, 4
          %v758 = vpop.permute.xlu0 %757
          %759 = vrot.lane.b32.xlu0 %v516, 4
          %v760 = vpop.permute.xlu0 %759
          %761 = vrot.lane.b32.xlu0 %v530, 4
          %v762 = vpop.permute.xlu0 %761
          %763 = vrot.lane.b32.xlu0 %v540, 4
          %v764 = vpop.permute.xlu0 %763
          %765 = vrot.lane.b32.xlu0 %v554, 4
          %v766 = vpop.permute.xlu0 %765
          %767 = vrot.lane.b32.xlu0 %v564, 4
          %v768 = vpop.permute.xlu0 %767
          %769 = vrot.lane.b32.xlu0 %v578, 4
          %v770 = vpop.permute.xlu0 %769
          %771 = vrot.lane.b32.xlu0 %v588, 4
          %v772 = vpop.permute.xlu0 %771
          %773 = vrot.lane.b32.xlu0 %v602, 4
          %v774 = vpop.permute.xlu0 %773
          %775 = vrot.lane.b32.xlu0 %v612, 4
          %v776 = vpop.permute.xlu0 %775
          %777 = vrot.lane.b32.xlu0 %v626, 4
          %v778 = vpop.permute.xlu0 %777
          %779 = vrot.lane.b32.xlu0 %v636, 4
          %v780 = vpop.permute.xlu0 %779
          %781 = vrot.lane.b32.xlu0 %v650, 4
          %v782 = vpop.permute.xlu0 %781
          %783 = vrot.lane.b32.xlu0 %v660, 4
          %v784 = vpop.permute.xlu0 %783
          %785 = vrot.lane.b32.xlu0 %v674, 4
          %v786 = vpop.permute.xlu0 %785
          %787 = vrot.lane.b32.xlu0 %v684, 4
          %v788 = vpop.permute.xlu0 %787
          %789 = vrot.lane.b32.xlu0 %v698, 4
          %v790 = vpop.permute.xlu0 %789
          %791 = vrot.lane.b32.xlu0 %v708, 4
          %v792 = vpop.permute.xlu0 %791
          %793 = vrot.lane.b32.xlu0 %v722, 4
          %v794 = vpop.permute.xlu0 %793
          %795 = vrot.lane.b32.xlu0 %v732, 4
          %v796 = vpop.permute.xlu0 %795
          %vm829 = vcmask 60448
          %830 = vst.msk [vmem:[#allocation2] sm:$0xf] %vm829, %v734
          %831 = vst.msk [vmem:[#allocation2 + $0x4] sm:$0xf] %vm829, %v736
          %832 = vst.msk [vmem:[#allocation2 + $0x8] sm:$0xf] %vm829, %v738
          %833 = vst.msk [vmem:[#allocation2 + $0xc] sm:$0xf] %vm829, %v740
          %834 = vst.msk [vmem:[#allocation2 + $0x10] sm:$0xf] %vm829, %v742
          %835 = vst.msk [vmem:[#allocation2 + $0x14] sm:$0xf] %vm829, %v744
          %836 = vst.msk [vmem:[#allocation2 + $0x18] sm:$0xf] %vm829, %v746
          %837 = vst.msk [vmem:[#allocation2 + $0x1c] sm:$0xf] %vm829, %v748
          %838 = vst.msk [vmem:[#allocation2 + $0x20] sm:$0xf] %vm829, %v750
          %839 = vst.msk [vmem:[#allocation2 + $0x24] sm:$0xf] %vm829, %v752
          %840 = vst.msk [vmem:[#allocation2 + $0x28] sm:$0xf] %vm829, %v754
          %841 = vst.msk [vmem:[#allocation2 + $0x2c] sm:$0xf] %vm829, %v756
          %842 = vst.msk [vmem:[#allocation2 + $0x30] sm:$0xf] %vm829, %v758
          %843 = vst.msk [vmem:[#allocation2 + $0x34] sm:$0xf] %vm829, %v760
          %844 = vst.msk [vmem:[#allocation2 + $0x38] sm:$0xf] %vm829, %v762
          %845 = vst.msk [vmem:[#allocation2 + $0x3c] sm:$0xf] %vm829, %v764
          %846 = vst.msk [vmem:[#allocation2 + $0x40] sm:$0xf] %vm829, %v766
          %847 = vst.msk [vmem:[#allocation2 + $0x44] sm:$0xf] %vm829, %v768
          %848 = vst.msk [vmem:[#allocation2 + $0x48] sm:$0xf] %vm829, %v770
          %849 = vst.msk [vmem:[#allocation2 + $0x4c] sm:$0xf] %vm829, %v772
          %850 = vst.msk [vmem:[#allocation2 + $0x50] sm:$0xf] %vm829, %v774
          %851 = vst.msk [vmem:[#allocation2 + $0x54] sm:$0xf] %vm829, %v776
          %852 = vst.msk [vmem:[#allocation2 + $0x58] sm:$0xf] %vm829, %v778
          %853 = vst.msk [vmem:[#allocation2 + $0x5c] sm:$0xf] %vm829, %v780
          %854 = vst.msk [vmem:[#allocation2 + $0x60] sm:$0xf] %vm829, %v782
          %855 = vst.msk [vmem:[#allocation2 + $0x64] sm:$0xf] %vm829, %v784
          %856 = vst.msk [vmem:[#allocation2 + $0x68] sm:$0xf] %vm829, %v786
          %857 = vst.msk [vmem:[#allocation2 + $0x6c] sm:$0xf] %vm829, %v788
          %858 = vst.msk [vmem:[#allocation2 + $0x70] sm:$0xf] %vm829, %v790
          %859 = vst.msk [vmem:[#allocation2 + $0x74] sm:$0xf] %vm829, %v792
          %860 = vst.msk [vmem:[#allocation2 + $0x78] sm:$0xf] %vm829, %v794
          %861 = vst.msk [vmem:[#allocation2 + $0x7c] sm:$0xf] %vm829, %v796
          %v862 = vld [vmem:[%s232] sm:$0xe]
          %v863 = vld [vmem:[%s232 + $0x4] sm:$0xf]
          %v864 = vld [vmem:[%s232 + $0x8] sm:$0x1]
          %v865 = vld [vmem:[%s232 + $0xc] sm:$0xe]
          %v866 = vld [vmem:[%s232 + $0x10] sm:$0xf]
          %v867 = vld [vmem:[%s232 + $0x14] sm:$0x1]
          %v868 = vld [vmem:[%s232 + $0x18] sm:$0xe]
          %v869 = vld [vmem:[%s232 + $0x1c] sm:$0xf]
          %v870 = vld [vmem:[%s232 + $0x20] sm:$0x1]
          %v871 = vld [vmem:[%s232 + $0x24] sm:$0xe]
          %v872 = vld [vmem:[%s232 + $0x28] sm:$0xf]
          %v873 = vld [vmem:[%s232 + $0x2c] sm:$0x1]
          %v874 = vld [vmem:[%s232 + $0x30] sm:$0xe]
          %v875 = vld [vmem:[%s232 + $0x34] sm:$0xf]
          %v876 = vld [vmem:[%s232 + $0x38] sm:$0x1]
          %v877 = vld [vmem:[%s232 + $0x3c] sm:$0xe]
          %v878 = vld [vmem:[%s232 + $0x40] sm:$0xf]
          %v879 = vld [vmem:[%s232 + $0x44] sm:$0x1]
          %v880 = vld [vmem:[%s232 + $0x48] sm:$0xe]
          %v881 = vld [vmem:[%s232 + $0x4c] sm:$0xf]
          %v882 = vld [vmem:[%s232 + $0x50] sm:$0x1]
          %v883 = vld [vmem:[%s232 + $0x54] sm:$0xe]
          %v884 = vld [vmem:[%s232 + $0x58] sm:$0xf]
          %v885 = vld [vmem:[%s232 + $0x5c] sm:$0x1]
          %v886 = vld [vmem:[%s232 + $0x60] sm:$0xe]
          %v887 = vld [vmem:[%s232 + $0x64] sm:$0xf]
          %v888 = vld [vmem:[%s232 + $0x68] sm:$0x1]
          %v889 = vld [vmem:[%s232 + $0x6c] sm:$0xe]
          %v890 = vld [vmem:[%s232 + $0x70] sm:$0xf]
          %v891 = vld [vmem:[%s232 + $0x74] sm:$0x1]
          %v892 = vld [vmem:[%s232 + $0x78] sm:$0xe]
          %v893 = vld [vmem:[%s232 + $0x7c] sm:$0xf]
          %v894 = vld [vmem:[%s232 + $0x80] sm:$0x1]
          %v895 = vld [vmem:[%s232 + $0x84] sm:$0xe]
          %v896 = vld [vmem:[%s232 + $0x88] sm:$0xf]
          %v897 = vld [vmem:[%s232 + $0x8c] sm:$0x1]
          %v898 = vld [vmem:[%s232 + $0x90] sm:$0xe]
          %v899 = vld [vmem:[%s232 + $0x94] sm:$0xf]
          %v900 = vld [vmem:[%s232 + $0x98] sm:$0x1]
          %v901 = vld [vmem:[%s232 + $0x9c] sm:$0xe]
          %v902 = vld [vmem:[%s232 + $0xa0] sm:$0xf]
          %v903 = vld [vmem:[%s232 + $0xa4] sm:$0x1]
          %v904 = vld [vmem:[%s232 + $0xa8] sm:$0xe]
          %v905 = vld [vmem:[%s232 + $0xac] sm:$0xf]
          %v906 = vld [vmem:[%s232 + $0xb0] sm:$0x1]
          %v907 = vld [vmem:[%s232 + $0xb4] sm:$0xe]
          %v908 = vld [vmem:[%s232 + $0xb8] sm:$0xf]
          %v909 = vld [vmem:[%s232 + $0xbc] sm:$0x1]
          %vm958 = vcmask 1042432
          %vm959 = vcmask 1046532
          %vm960 = vmor %vm958, %vm959
          %v961 = vrot.slane %v862, 5
          %v962 = vrot.slane %v961, 4
          %v963 = vrot.slane %v863, 5
          %v964 = vsel %vm960, %v962, %v963
          %v965 = vrot.slane %v963, 4
          %v966 = vrot.slane %v864, 5
          %v967 = vsel %vm960, %v965, %v966
          %v968 = vrot.slane %v865, 5
          %v969 = vrot.slane %v968, 4
          %v970 = vrot.slane %v866, 5
          %v971 = vsel %vm960, %v969, %v970
          %v972 = vrot.slane %v970, 4
          %v973 = vrot.slane %v867, 5
          %v974 = vsel %vm960, %v972, %v973
          %v975 = vrot.slane %v868, 5
          %v976 = vrot.slane %v975, 4
          %v977 = vrot.slane %v869, 5
          %v978 = vsel %vm960, %v976, %v977
          %v979 = vrot.slane %v977, 4
          %v980 = vrot.slane %v870, 5
          %v981 = vsel %vm960, %v979, %v980
          %v982 = vrot.slane %v871, 5
          %v983 = vrot.slane %v982, 4
          %v984 = vrot.slane %v872, 5
          %v985 = vsel %vm960, %v983, %v984
          %v986 = vrot.slane %v984, 4
          %v987 = vrot.slane %v873, 5
          %v988 = vsel %vm960, %v986, %v987
          %v989 = vrot.slane %v874, 5
          %v990 = vrot.slane %v989, 4
          %v991 = vrot.slane %v875, 5
          %v992 = vsel %vm960, %v990, %v991
          %v993 = vrot.slane %v991, 4
          %v994 = vrot.slane %v876, 5
          %v995 = vsel %vm960, %v993, %v994
          %v996 = vrot.slane %v877, 5
          %v997 = vrot.slane %v996, 4
          %v998 = vrot.slane %v878, 5
          %v999 = vsel %vm960, %v997, %v998
          %v1000 = vrot.slane %v998, 4
          %v1001 = vrot.slane %v879, 5
          %v1002 = vsel %vm960, %v1000, %v1001
          %v1003 = vrot.slane %v880, 5
          %v1004 = vrot.slane %v1003, 4
          %v1005 = vrot.slane %v881, 5
          %v1006 = vsel %vm960, %v1004, %v1005
          %v1007 = vrot.slane %v1005, 4
          %v1008 = vrot.slane %v882, 5
          %v1009 = vsel %vm960, %v1007, %v1008
          %v1010 = vrot.slane %v883, 5
          %v1011 = vrot.slane %v1010, 4
          %v1012 = vrot.slane %v884, 5
          %v1013 = vsel %vm960, %v1011, %v1012
          %v1014 = vrot.slane %v1012, 4
          %v1015 = vrot.slane %v885, 5
          %v1016 = vsel %vm960, %v1014, %v1015
          %v1017 = vrot.slane %v886, 5
          %v1018 = vrot.slane %v1017, 4
          %v1019 = vrot.slane %v887, 5
          %v1020 = vsel %vm960, %v1018, %v1019
          %v1021 = vrot.slane %v1019, 4
          %v1022 = vrot.slane %v888, 5
          %v1023 = vsel %vm960, %v1021, %v1022
          %v1024 = vrot.slane %v889, 5
          %v1025 = vrot.slane %v1024, 4
          %v1026 = vrot.slane %v890, 5
          %v1027 = vsel %vm960, %v1025, %v1026
          %v1028 = vrot.slane %v1026, 4
          %v1029 = vrot.slane %v891, 5
          %v1030 = vsel %vm960, %v1028, %v1029
          %v1031 = vrot.slane %v892, 5
          %v1032 = vrot.slane %v1031, 4
          %v1033 = vrot.slane %v893, 5
          %v1034 = vsel %vm960, %v1032, %v1033
          %v1035 = vrot.slane %v1033, 4
          %v1036 = vrot.slane %v894, 5
          %v1037 = vsel %vm960, %v1035, %v1036
          %v1038 = vrot.slane %v895, 5
          %v1039 = vrot.slane %v1038, 4
          %v1040 = vrot.slane %v896, 5
          %v1041 = vsel %vm960, %v1039, %v1040
          %v1042 = vrot.slane %v1040, 4
          %v1043 = vrot.slane %v897, 5
          %v1044 = vsel %vm960, %v1042, %v1043
          %v1045 = vrot.slane %v898, 5
          %v1046 = vrot.slane %v1045, 4
          %v1047 = vrot.slane %v899, 5
          %v1048 = vsel %vm960, %v1046, %v1047
          %v1049 = vrot.slane %v1047, 4
          %v1050 = vrot.slane %v900, 5
          %v1051 = vsel %vm960, %v1049, %v1050
          %v1052 = vrot.slane %v901, 5
          %v1053 = vrot.slane %v1052, 4
          %v1054 = vrot.slane %v902, 5
          %v1055 = vsel %vm960, %v1053, %v1054
          %v1056 = vrot.slane %v1054, 4
          %v1057 = vrot.slane %v903, 5
          %v1058 = vsel %vm960, %v1056, %v1057
          %v1059 = vrot.slane %v904, 5
          %v1060 = vrot.slane %v1059, 4
          %v1061 = vrot.slane %v905, 5
          %v1062 = vsel %vm960, %v1060, %v1061
          %v1063 = vrot.slane %v1061, 4
          %v1064 = vrot.slane %v906, 5
          %v1065 = vsel %vm960, %v1063, %v1064
          %v1066 = vrot.slane %v907, 5
          %v1067 = vrot.slane %v1066, 4
          %v1068 = vrot.slane %v908, 5
          %v1069 = vsel %vm960, %v1067, %v1068
          %v1070 = vrot.slane %v1068, 4
          %v1071 = vrot.slane %v909, 5
          %v1072 = vsel %vm960, %v1070, %v1071
          %1073 = vrot.lane.b32.xlu0 %v964, 8
          %v1074 = vpop.permute.xlu0 %1073
          %1075 = vrot.lane.b32.xlu0 %v967, 8
          %v1076 = vpop.permute.xlu0 %1075
          %1077 = vrot.lane.b32.xlu0 %v971, 8
          %v1078 = vpop.permute.xlu0 %1077
          %1079 = vrot.lane.b32.xlu0 %v974, 8
          %v1080 = vpop.permute.xlu0 %1079
          %1081 = vrot.lane.b32.xlu0 %v978, 8
          %v1082 = vpop.permute.xlu0 %1081
          %1083 = vrot.lane.b32.xlu0 %v981, 8
          %v1084 = vpop.permute.xlu0 %1083
          %1085 = vrot.lane.b32.xlu0 %v985, 8
          %v1086 = vpop.permute.xlu0 %1085
          %1087 = vrot.lane.b32.xlu0 %v988, 8
          %v1088 = vpop.permute.xlu0 %1087
          %1089 = vrot.lane.b32.xlu0 %v992, 8
          %v1090 = vpop.permute.xlu0 %1089
          %1091 = vrot.lane.b32.xlu0 %v995, 8
          %v1092 = vpop.permute.xlu0 %1091
          %1093 = vrot.lane.b32.xlu0 %v999, 8
          %v1094 = vpop.permute.xlu0 %1093
          %1095 = vrot.lane.b32.xlu0 %v1002, 8
          %v1096 = vpop.permute.xlu0 %1095
          %1097 = vrot.lane.b32.xlu0 %v1006, 8
          %v1098 = vpop.permute.xlu0 %1097
          %1099 = vrot.lane.b32.xlu0 %v1009, 8
          %v1100 = vpop.permute.xlu0 %1099
          %1101 = vrot.lane.b32.xlu0 %v1013, 8
          %v1102 = vpop.permute.xlu0 %1101
          %1103 = vrot.lane.b32.xlu0 %v1016, 8
          %v1104 = vpop.permute.xlu0 %1103
          %1105 = vrot.lane.b32.xlu0 %v1020, 8
          %v1106 = vpop.permute.xlu0 %1105
          %1107 = vrot.lane.b32.xlu0 %v1023, 8
          %v1108 = vpop.permute.xlu0 %1107
          %1109 = vrot.lane.b32.xlu0 %v1027, 8
          %v1110 = vpop.permute.xlu0 %1109
          %1111 = vrot.lane.b32.xlu0 %v1030, 8
          %v1112 = vpop.permute.xlu0 %1111
          %1113 = vrot.lane.b32.xlu0 %v1034, 8
          %v1114 = vpop.permute.xlu0 %1113
          %1115 = vrot.lane.b32.xlu0 %v1037, 8
          %v1116 = vpop.permute.xlu0 %1115
          %1117 = vrot.lane.b32.xlu0 %v1041, 8
          %v1118 = vpop.permute.xlu0 %1117
          %1119 = vrot.lane.b32.xlu0 %v1044, 8
          %v1120 = vpop.permute.xlu0 %1119
          %1121 = vrot.lane.b32.xlu0 %v1048, 8
          %v1122 = vpop.permute.xlu0 %1121
          %1123 = vrot.lane.b32.xlu0 %v1051, 8
          %v1124 = vpop.permute.xlu0 %1123
          %1125 = vrot.lane.b32.xlu0 %v1055, 8
          %v1126 = vpop.permute.xlu0 %1125
          %1127 = vrot.lane.b32.xlu0 %v1058, 8
          %v1128 = vpop.permute.xlu0 %1127
          %1129 = vrot.lane.b32.xlu0 %v1062, 8
          %v1130 = vpop.permute.xlu0 %1129
          %1131 = vrot.lane.b32.xlu0 %v1065, 8
          %v1132 = vpop.permute.xlu0 %1131
          %1133 = vrot.lane.b32.xlu0 %v1069, 8
          %v1134 = vpop.permute.xlu0 %1133
          %1135 = vrot.lane.b32.xlu0 %v1072, 8
          %v1136 = vpop.permute.xlu0 %1135
          %vm1169 = vcmask 93248
          %1170 = vst.msk [vmem:[#allocation2] sm:$0xf] %vm1169, %v1074
          %1171 = vst.msk [vmem:[#allocation2 + $0x4] sm:$0xf] %vm1169, %v1076
          %1172 = vst.msk [vmem:[#allocation2 + $0x8] sm:$0xf] %vm1169, %v1078
          %1173 = vst.msk [vmem:[#allocation2 + $0xc] sm:$0xf] %vm1169, %v1080
          %1174 = vst.msk [vmem:[#allocation2 + $0x10] sm:$0xf] %vm1169, %v1082
          %1175 = vst.msk [vmem:[#allocation2 + $0x14] sm:$0xf] %vm1169, %v1084
          %1176 = vst.msk [vmem:[#allocation2 + $0x18] sm:$0xf] %vm1169, %v1086
          %1177 = vst.msk [vmem:[#allocation2 + $0x1c] sm:$0xf] %vm1169, %v1088
          %1178 = vst.msk [vmem:[#allocation2 + $0x20] sm:$0xf] %vm1169, %v1090
          %1179 = vst.msk [vmem:[#allocation2 + $0x24] sm:$0xf] %vm1169, %v1092
          %1180 = vst.msk [vmem:[#allocation2 + $0x28] sm:$0xf] %vm1169, %v1094
          %1181 = vst.msk [vmem:[#allocation2 + $0x2c] sm:$0xf] %vm1169, %v1096
          %1182 = vst.msk [vmem:[#allocation2 + $0x30] sm:$0xf] %vm1169, %v1098
          %1183 = vst.msk [vmem:[#allocation2 + $0x34] sm:$0xf] %vm1169, %v1100
          %1184 = vst.msk [vmem:[#allocation2 + $0x38] sm:$0xf] %vm1169, %v1102
          %1185 = vst.msk [vmem:[#allocation2 + $0x3c] sm:$0xf] %vm1169, %v1104
          %1186 = vst.msk [vmem:[#allocation2 + $0x40] sm:$0xf] %vm1169, %v1106
          %1187 = vst.msk [vmem:[#allocation2 + $0x44] sm:$0xf] %vm1169, %v1108
          %1188 = vst.msk [vmem:[#allocation2 + $0x48] sm:$0xf] %vm1169, %v1110
          %1189 = vst.msk [vmem:[#allocation2 + $0x4c] sm:$0xf] %vm1169, %v1112
          %1190 = vst.msk [vmem:[#allocation2 + $0x50] sm:$0xf] %vm1169, %v1114
          %1191 = vst.msk [vmem:[#allocation2 + $0x54] sm:$0xf] %vm1169, %v1116
          %1192 = vst.msk [vmem:[#allocation2 + $0x58] sm:$0xf] %vm1169, %v1118
          %1193 = vst.msk [vmem:[#allocation2 + $0x5c] sm:$0xf] %vm1169, %v1120
          %1194 = vst.msk [vmem:[#allocation2 + $0x60] sm:$0xf] %vm1169, %v1122
          %1195 = vst.msk [vmem:[#allocation2 + $0x64] sm:$0xf] %vm1169, %v1124
          %1196 = vst.msk [vmem:[#allocation2 + $0x68] sm:$0xf] %vm1169, %v1126
          %1197 = vst.msk [vmem:[#allocation2 + $0x6c] sm:$0xf] %vm1169, %v1128
          %1198 = vst.msk [vmem:[#allocation2 + $0x70] sm:$0xf] %vm1169, %v1130
          %1199 = vst.msk [vmem:[#allocation2 + $0x74] sm:$0xf] %vm1169, %v1132
          %1200 = vst.msk [vmem:[#allocation2 + $0x78] sm:$0xf] %vm1169, %v1134
          %1201 = vst.msk [vmem:[#allocation2 + $0x7c] sm:$0xf] %vm1169, %v1136
          %s1202 = sadd.s32 %s225, 1
          %s1203 = smul.u32 %s1202, 3
          %s1204 = smul.addr %s1203, 4
          %s1205 = scalar_lea.vmem %s215, %s1204
          %v1206 = vld [vmem:[%s1205] sm:$0xf]
          %v1207 = vld [vmem:[%s1205 + $0x4] sm:$0xf]
          %v1208 = vld [vmem:[%s1205 + $0xc] sm:$0xf]
          %v1209 = vld [vmem:[%s1205 + $0x10] sm:$0xf]
          %v1210 = vld [vmem:[%s1205 + $0x18] sm:$0xf]
          %v1211 = vld [vmem:[%s1205 + $0x1c] sm:$0xf]
          %v1212 = vld [vmem:[%s1205 + $0x24] sm:$0xf]
          %v1213 = vld [vmem:[%s1205 + $0x28] sm:$0xf]
          %v1214 = vld [vmem:[%s1205 + $0x30] sm:$0xf]
          %v1215 = vld [vmem:[%s1205 + $0x34] sm:$0xf]
          %v1216 = vld [vmem:[%s1205 + $0x3c] sm:$0xf]
          %v1217 = vld [vmem:[%s1205 + $0x40] sm:$0xf]
          %v1218 = vld [vmem:[%s1205 + $0x48] sm:$0xf]
          %v1219 = vld [vmem:[%s1205 + $0x4c] sm:$0xf]
          %v1220 = vld [vmem:[%s1205 + $0x54] sm:$0xf]
          %v1221 = vld [vmem:[%s1205 + $0x58] sm:$0xf]
          %v1222 = vld [vmem:[%s1205 + $0x60] sm:$0xf]
          %v1223 = vld [vmem:[%s1205 + $0x64] sm:$0xf]
          %v1224 = vld [vmem:[%s1205 + $0x6c] sm:$0xf]
          %v1225 = vld [vmem:[%s1205 + $0x70] sm:$0xf]
          %v1226 = vld [vmem:[%s1205 + $0x78] sm:$0xf]
          %v1227 = vld [vmem:[%s1205 + $0x7c] sm:$0xf]
          %v1228 = vld [vmem:[%s1205 + $0x84] sm:$0xf]
          %v1229 = vld [vmem:[%s1205 + $0x88] sm:$0xf]
          %v1230 = vld [vmem:[%s1205 + $0x90] sm:$0xf]
          %v1231 = vld [vmem:[%s1205 + $0x94] sm:$0xf]
          %v1232 = vld [vmem:[%s1205 + $0x9c] sm:$0xf]
          %v1233 = vld [vmem:[%s1205 + $0xa0] sm:$0xf]
          %v1234 = vld [vmem:[%s1205 + $0xa8] sm:$0xf]
          %v1235 = vld [vmem:[%s1205 + $0xac] sm:$0xf]
          %v1236 = vld [vmem:[%s1205 + $0xb4] sm:$0xf]
          %v1237 = vld [vmem:[%s1205 + $0xb8] sm:$0xf]
          %1270 = vrot.lane.b32.xlu0 %v1206, 12
          %v1271 = vpop.permute.xlu0 %1270
          %1272 = vrot.lane.b32.xlu0 %v1207, 12
          %v1273 = vpop.permute.xlu0 %1272
          %1274 = vrot.lane.b32.xlu0 %v1208, 12
          %v1275 = vpop.permute.xlu0 %1274
          %1276 = vrot.lane.b32.xlu0 %v1209, 12
          %v1277 = vpop.permute.xlu0 %1276
          %1278 = vrot.lane.b32.xlu0 %v1210, 12
          %v1279 = vpop.permute.xlu0 %1278
          %1280 = vrot.lane.b32.xlu0 %v1211, 12
          %v1281 = vpop.permute.xlu0 %1280
          %1282 = vrot.lane.b32.xlu0 %v1212, 12
          %v1283 = vpop.permute.xlu0 %1282
          %1284 = vrot.lane.b32.xlu0 %v1213, 12
          %v1285 = vpop.permute.xlu0 %1284
          %1286 = vrot.lane.b32.xlu0 %v1214, 12
          %v1287 = vpop.permute.xlu0 %1286
          %1288 = vrot.lane.b32.xlu0 %v1215, 12
          %v1289 = vpop.permute.xlu0 %1288
          %1290 = vrot.lane.b32.xlu0 %v1216, 12
          %v1291 = vpop.permute.xlu0 %1290
          %1292 = vrot.lane.b32.xlu0 %v1217, 12
          %v1293 = vpop.permute.xlu0 %1292
          %1294 = vrot.lane.b32.xlu0 %v1218, 12
          %v1295 = vpop.permute.xlu0 %1294
          %1296 = vrot.lane.b32.xlu0 %v1219, 12
          %v1297 = vpop.permute.xlu0 %1296
          %1298 = vrot.lane.b32.xlu0 %v1220, 12
          %v1299 = vpop.permute.xlu0 %1298
          %1300 = vrot.lane.b32.xlu0 %v1221, 12
          %v1301 = vpop.permute.xlu0 %1300
          %1302 = vrot.lane.b32.xlu0 %v1222, 12
          %v1303 = vpop.permute.xlu0 %1302
          %1304 = vrot.lane.b32.xlu0 %v1223, 12
          %v1305 = vpop.permute.xlu0 %1304
          %1306 = vrot.lane.b32.xlu0 %v1224, 12
          %v1307 = vpop.permute.xlu0 %1306
          %1308 = vrot.lane.b32.xlu0 %v1225, 12
          %v1309 = vpop.permute.xlu0 %1308
          %1310 = vrot.lane.b32.xlu0 %v1226, 12
          %v1311 = vpop.permute.xlu0 %1310
          %1312 = vrot.lane.b32.xlu0 %v1227, 12
          %v1313 = vpop.permute.xlu0 %1312
          %1314 = vrot.lane.b32.xlu0 %v1228, 12
          %v1315 = vpop.permute.xlu0 %1314
          %1316 = vrot.lane.b32.xlu0 %v1229, 12
          %v1317 = vpop.permute.xlu0 %1316
          %1318 = vrot.lane.b32.xlu0 %v1230, 12
          %v1319 = vpop.permute.xlu0 %1318
          %1320 = vrot.lane.b32.xlu0 %v1231, 12
          %v1321 = vpop.permute.xlu0 %1320
          %1322 = vrot.lane.b32.xlu0 %v1232, 12
          %v1323 = vpop.permute.xlu0 %1322
          %1324 = vrot.lane.b32.xlu0 %v1233, 12
          %v1325 = vpop.permute.xlu0 %1324
          %1326 = vrot.lane.b32.xlu0 %v1234, 12
          %v1327 = vpop.permute.xlu0 %1326
          %1328 = vrot.lane.b32.xlu0 %v1235, 12
          %v1329 = vpop.permute.xlu0 %1328
          %1330 = vrot.lane.b32.xlu0 %v1236, 12
          %v1331 = vpop.permute.xlu0 %1330
          %1332 = vrot.lane.b32.xlu0 %v1237, 12
          %v1333 = vpop.permute.xlu0 %1332
          %vm1366 = vcmask 126048
          %1367 = vst.msk [vmem:[#allocation2] sm:$0xf] %vm1366, %v1271
          %1368 = vst.msk [vmem:[#allocation2 + $0x4] sm:$0xf] %vm1366, %v1273
          %1369 = vst.msk [vmem:[#allocation2 + $0x8] sm:$0xf] %vm1366, %v1275
          %1370 = vst.msk [vmem:[#allocation2 + $0xc] sm:$0xf] %vm1366, %v1277
          %1371 = vst.msk [vmem:[#allocation2 + $0x10] sm:$0xf] %vm1366, %v1279
          %1372 = vst.msk [vmem:[#allocation2 + $0x14] sm:$0xf] %vm1366, %v1281
          %1373 = vst.msk [vmem:[#allocation2 + $0x18] sm:$0xf] %vm1366, %v1283
          %1374 = vst.msk [vmem:[#allocation2 + $0x1c] sm:$0xf] %vm1366, %v1285
          %1375 = vst.msk [vmem:[#allocation2 + $0x20] sm:$0xf] %vm1366, %v1287
          %1376 = vst.msk [vmem:[#allocation2 + $0x24] sm:$0xf] %vm1366, %v1289
          %1377 = vst.msk [vmem:[#allocation2 + $0x28] sm:$0xf] %vm1366, %v1291
          %1378 = vst.msk [vmem:[#allocation2 + $0x2c] sm:$0xf] %vm1366, %v1293
          %1379 = vst.msk [vmem:[#allocation2 + $0x30] sm:$0xf] %vm1366, %v1295
          %1380 = vst.msk [vmem:[#allocation2 + $0x34] sm:$0xf] %vm1366, %v1297
          %1381 = vst.msk [vmem:[#allocation2 + $0x38] sm:$0xf] %vm1366, %v1299
          %1382 = vst.msk [vmem:[#allocation2 + $0x3c] sm:$0xf] %vm1366, %v1301
          %1383 = vst.msk [vmem:[#allocation2 + $0x40] sm:$0xf] %vm1366, %v1303
          %1384 = vst.msk [vmem:[#allocation2 + $0x44] sm:$0xf] %vm1366, %v1305
          %1385 = vst.msk [vmem:[#allocation2 + $0x48] sm:$0xf] %vm1366, %v1307
          %1386 = vst.msk [vmem:[#allocation2 + $0x4c] sm:$0xf] %vm1366, %v1309
          %1387 = vst.msk [vmem:[#allocation2 + $0x50] sm:$0xf] %vm1366, %v1311
          %1388 = vst.msk [vmem:[#allocation2 + $0x54] sm:$0xf] %vm1366, %v1313
          %1389 = vst.msk [vmem:[#allocation2 + $0x58] sm:$0xf] %vm1366, %v1315
          %1390 = vst.msk [vmem:[#allocation2 + $0x5c] sm:$0xf] %vm1366, %v1317
          %1391 = vst.msk [vmem:[#allocation2 + $0x60] sm:$0xf] %vm1366, %v1319
          %1392 = vst.msk [vmem:[#allocation2 + $0x64] sm:$0xf] %vm1366, %v1321
          %1393 = vst.msk [vmem:[#allocation2 + $0x68] sm:$0xf] %vm1366, %v1323
          %1394 = vst.msk [vmem:[#allocation2 + $0x6c] sm:$0xf] %vm1366, %v1325
          %1395 = vst.msk [vmem:[#allocation2 + $0x70] sm:$0xf] %vm1366, %v1327
          %1396 = vst.msk [vmem:[#allocation2 + $0x74] sm:$0xf] %vm1366, %v1329
          %1397 = vst.msk [vmem:[#allocation2 + $0x78] sm:$0xf] %vm1366, %v1331
          %1398 = vst.msk [vmem:[#allocation2 + $0x7c] sm:$0xf] %vm1366, %v1333
          %v1399 = vld [vmem:[%s1205] sm:$0xf]
          %v1400 = vld [vmem:[%s1205 + $0x4] sm:$0xf]
          %v1401 = vld [vmem:[%s1205 + $0x8] sm:$0x1]
          %v1402 = vld [vmem:[%s1205 + $0xc] sm:$0xf]
          %v1403 = vld [vmem:[%s1205 + $0x10] sm:$0xf]
          %v1404 = vld [vmem:[%s1205 + $0x14] sm:$0x1]
          %v1405 = vld [vmem:[%s1205 + $0x18] sm:$0xf]
          %v1406 = vld [vmem:[%s1205 + $0x1c] sm:$0xf]
          %v1407 = vld [vmem:[%s1205 + $0x20] sm:$0x1]
          %v1408 = vld [vmem:[%s1205 + $0x24] sm:$0xf]
          %v1409 = vld [vmem:[%s1205 + $0x28] sm:$0xf]
          %v1410 = vld [vmem:[%s1205 + $0x2c] sm:$0x1]
          %v1411 = vld [vmem:[%s1205 + $0x30] sm:$0xf]
          %v1412 = vld [vmem:[%s1205 + $0x34] sm:$0xf]
          %v1413 = vld [vmem:[%s1205 + $0x38] sm:$0x1]
          %v1414 = vld [vmem:[%s1205 + $0x3c] sm:$0xf]
          %v1415 = vld [vmem:[%s1205 + $0x40] sm:$0xf]
          %v1416 = vld [vmem:[%s1205 + $0x44] sm:$0x1]
          %v1417 = vld [vmem:[%s1205 + $0x48] sm:$0xf]
          %v1418 = vld [vmem:[%s1205 + $0x4c] sm:$0xf]
          %v1419 = vld [vmem:[%s1205 + $0x50] sm:$0x1]
          %v1420 = vld [vmem:[%s1205 + $0x54] sm:$0xf]
          %v1421 = vld [vmem:[%s1205 + $0x58] sm:$0xf]
          %v1422 = vld [vmem:[%s1205 + $0x5c] sm:$0x1]
          %v1423 = vld [vmem:[%s1205 + $0x60] sm:$0xf]
          %v1424 = vld [vmem:[%s1205 + $0x64] sm:$0xf]
          %v1425 = vld [vmem:[%s1205 + $0x68] sm:$0x1]
          %v1426 = vld [vmem:[%s1205 + $0x6c] sm:$0xf]
          %v1427 = vld [vmem:[%s1205 + $0x70] sm:$0xf]
          %v1428 = vld [vmem:[%s1205 + $0x74] sm:$0x1]
          %v1429 = vld [vmem:[%s1205 + $0x78] sm:$0xf]
          %v1430 = vld [vmem:[%s1205 + $0x7c] sm:$0xf]
          %v1431 = vld [vmem:[%s1205 + $0x80] sm:$0x1]
          %v1432 = vld [vmem:[%s1205 + $0x84] sm:$0xf]
          %v1433 = vld [vmem:[%s1205 + $0x88] sm:$0xf]
          %v1434 = vld [vmem:[%s1205 + $0x8c] sm:$0x1]
          %v1435 = vld [vmem:[%s1205 + $0x90] sm:$0xf]
          %v1436 = vld [vmem:[%s1205 + $0x94] sm:$0xf]
          %v1437 = vld [vmem:[%s1205 + $0x98] sm:$0x1]
          %v1438 = vld [vmem:[%s1205 + $0x9c] sm:$0xf]
          %v1439 = vld [vmem:[%s1205 + $0xa0] sm:$0xf]
          %v1440 = vld [vmem:[%s1205 + $0xa4] sm:$0x1]
          %v1441 = vld [vmem:[%s1205 + $0xa8] sm:$0xf]
          %v1442 = vld [vmem:[%s1205 + $0xac] sm:$0xf]
          %v1443 = vld [vmem:[%s1205 + $0xb0] sm:$0x1]
          %v1444 = vld [vmem:[%s1205 + $0xb4] sm:$0xf]
          %v1445 = vld [vmem:[%s1205 + $0xb8] sm:$0xf]
          %v1446 = vld [vmem:[%s1205 + $0xbc] sm:$0x1]
          %v1448 = vshrl.u32 %v1399, 16
          %v1450 = vrot.slane %v1448, 4
          %v1451 = vshll.u32 %v1399, 16
          %v1453 = vrot.slane %v1451, 5
          %v1454 = vor.u32 %v1450, %v1453
          %v1455 = vrot.slane %v1454, 4
          %v1457 = vshll.u32 %v1400, 16
          %v1459 = vrot.slane %v1457, 5
          %v1460 = vsel %vm348, %v1455, %v1459
          %v1461 = vshrl.u32 %v1400, 16
          %v1463 = vrot.slane %v1461, 4
          %v1464 = vor.u32 %v1463, %v1459
          %v1465 = vrot.slane %v1464, 4
          %v1467 = vshll.u32 %v1401, 16
          %v1469 = vrot.slane %v1467, 5
          %v1470 = vsel %vm348, %v1465, %v1469
          %v1472 = vshrl.u32 %v1402, 16
          %v1474 = vrot.slane %v1472, 4
          %v1475 = vshll.u32 %v1402, 16
          %v1477 = vrot.slane %v1475, 5
          %v1478 = vor.u32 %v1474, %v1477
          %v1479 = vrot.slane %v1478, 4
          %v1481 = vshll.u32 %v1403, 16
          %v1483 = vrot.slane %v1481, 5
          %v1484 = vsel %vm348, %v1479, %v1483
          %v1485 = vshrl.u32 %v1403, 16
          %v1487 = vrot.slane %v1485, 4
          %v1488 = vor.u32 %v1487, %v1483
          %v1489 = vrot.slane %v1488, 4
          %v1491 = vshll.u32 %v1404, 16
          %v1493 = vrot.slane %v1491, 5
          %v1494 = vsel %vm348, %v1489, %v1493
          %v1496 = vshrl.u32 %v1405, 16
          %v1498 = vrot.slane %v1496, 4
          %v1499 = vshll.u32 %v1405, 16
          %v1501 = vrot.slane %v1499, 5
          %v1502 = vor.u32 %v1498, %v1501
          %v1503 = vrot.slane %v1502, 4
          %v1505 = vshll.u32 %v1406, 16
          %v1507 = vrot.slane %v1505, 5
          %v1508 = vsel %vm348, %v1503, %v1507
          %v1509 = vshrl.u32 %v1406, 16
          %v1511 = vrot.slane %v1509, 4
          %v1512 = vor.u32 %v1511, %v1507
          %v1513 = vrot.slane %v1512, 4
          %v1515 = vshll.u32 %v1407, 16
          %v1517 = vrot.slane %v1515, 5
          %v1518 = vsel %vm348, %v1513, %v1517
          %v1520 = vshrl.u32 %v1408, 16
          %v1522 = vrot.slane %v1520, 4
          %v1523 = vshll.u32 %v1408, 16
          %v1525 = vrot.slane %v1523, 5
          %v1526 = vor.u32 %v1522, %v1525
          %v1527 = vrot.slane %v1526, 4
          %v1529 = vshll.u32 %v1409, 16
          %v1531 = vrot.slane %v1529, 5
          %v1532 = vsel %vm348, %v1527, %v1531
          %v1533 = vshrl.u32 %v1409, 16
          %v1535 = vrot.slane %v1533, 4
          %v1536 = vor.u32 %v1535, %v1531
          %v1537 = vrot.slane %v1536, 4
          %v1539 = vshll.u32 %v1410, 16
          %v1541 = vrot.slane %v1539, 5
          %v1542 = vsel %vm348, %v1537, %v1541
          %v1544 = vshrl.u32 %v1411, 16
          %v1546 = vrot.slane %v1544, 4
          %v1547 = vshll.u32 %v1411, 16
          %v1549 = vrot.slane %v1547, 5
          %v1550 = vor.u32 %v1546, %v1549
          %v1551 = vrot.slane %v1550, 4
          %v1553 = vshll.u32 %v1412, 16
          %v1555 = vrot.slane %v1553, 5
          %v1556 = vsel %vm348, %v1551, %v1555
          %v1557 = vshrl.u32 %v1412, 16
          %v1559 = vrot.slane %v1557, 4
          %v1560 = vor.u32 %v1559, %v1555
          %v1561 = vrot.slane %v1560, 4
          %v1563 = vshll.u32 %v1413, 16
          %v1565 = vrot.slane %v1563, 5
          %v1566 = vsel %vm348, %v1561, %v1565
          %v1568 = vshrl.u32 %v1414, 16
          %v1570 = vrot.slane %v1568, 4
          %v1571 = vshll.u32 %v1414, 16
          %v1573 = vrot.slane %v1571, 5
          %v1574 = vor.u32 %v1570, %v1573
          %v1575 = vrot.slane %v1574, 4
          %v1577 = vshll.u32 %v1415, 16
          %v1579 = vrot.slane %v1577, 5
          %v1580 = vsel %vm348, %v1575, %v1579
          %v1581 = vshrl.u32 %v1415, 16
          %v1583 = vrot.slane %v1581, 4
          %v1584 = vor.u32 %v1583, %v1579
          %v1585 = vrot.slane %v1584, 4
          %v1587 = vshll.u32 %v1416, 16
          %v1589 = vrot.slane %v1587, 5
          %v1590 = vsel %vm348, %v1585, %v1589
          %v1592 = vshrl.u32 %v1417, 16
          %v1594 = vrot.slane %v1592, 4
          %v1595 = vshll.u32 %v1417, 16
          %v1597 = vrot.slane %v1595, 5
          %v1598 = vor.u32 %v1594, %v1597
          %v1599 = vrot.slane %v1598, 4
          %v1601 = vshll.u32 %v1418, 16
          %v1603 = vrot.slane %v1601, 5
          %v1604 = vsel %vm348, %v1599, %v1603
          %v1605 = vshrl.u32 %v1418, 16
          %v1607 = vrot.slane %v1605, 4
          %v1608 = vor.u32 %v1607, %v1603
          %v1609 = vrot.slane %v1608, 4
          %v1611 = vshll.u32 %v1419, 16
          %v1613 = vrot.slane %v1611, 5
          %v1614 = vsel %vm348, %v1609, %v1613
          %v1616 = vshrl.u32 %v1420, 16
          %v1618 = vrot.slane %v1616, 4
          %v1619 = vshll.u32 %v1420, 16
          %v1621 = vrot.slane %v1619, 5
          %v1622 = vor.u32 %v1618, %v1621
          %v1623 = vrot.slane %v1622, 4
          %v1625 = vshll.u32 %v1421, 16
          %v1627 = vrot.slane %v1625, 5
          %v1628 = vsel %vm348, %v1623, %v1627
          %v1629 = vshrl.u32 %v1421, 16
          %v1631 = vrot.slane %v1629, 4
          %v1632 = vor.u32 %v1631, %v1627
          %v1633 = vrot.slane %v1632, 4
          %v1635 = vshll.u32 %v1422, 16
          %v1637 = vrot.slane %v1635, 5
          %v1638 = vsel %vm348, %v1633, %v1637
          %v1640 = vshrl.u32 %v1423, 16
          %v1642 = vrot.slane %v1640, 4
          %v1643 = vshll.u32 %v1423, 16
          %v1645 = vrot.slane %v1643, 5
          %v1646 = vor.u32 %v1642, %v1645
          %v1647 = vrot.slane %v1646, 4
          %v1649 = vshll.u32 %v1424, 16
          %v1651 = vrot.slane %v1649, 5
          %v1652 = vsel %vm348, %v1647, %v1651
          %v1653 = vshrl.u32 %v1424, 16
          %v1655 = vrot.slane %v1653, 4
          %v1656 = vor.u32 %v1655, %v1651
          %v1657 = vrot.slane %v1656, 4
          %v1659 = vshll.u32 %v1425, 16
          %v1661 = vrot.slane %v1659, 5
          %v1662 = vsel %vm348, %v1657, %v1661
          %v1664 = vshrl.u32 %v1426, 16
          %v1666 = vrot.slane %v1664, 4
          %v1667 = vshll.u32 %v1426, 16
          %v1669 = vrot.slane %v1667, 5
          %v1670 = vor.u32 %v1666, %v1669
          %v1671 = vrot.slane %v1670, 4
          %v1673 = vshll.u32 %v1427, 16
          %v1675 = vrot.slane %v1673, 5
          %v1676 = vsel %vm348, %v1671, %v1675
          %v1677 = vshrl.u32 %v1427, 16
          %v1679 = vrot.slane %v1677, 4
          %v1680 = vor.u32 %v1679, %v1675
          %v1681 = vrot.slane %v1680, 4
          %v1683 = vshll.u32 %v1428, 16
          %v1685 = vrot.slane %v1683, 5
          %v1686 = vsel %vm348, %v1681, %v1685
          %v1688 = vshrl.u32 %v1429, 16
          %v1690 = vrot.slane %v1688, 4
          %v1691 = vshll.u32 %v1429, 16
          %v1693 = vrot.slane %v1691, 5
          %v1694 = vor.u32 %v1690, %v1693
          %v1695 = vrot.slane %v1694, 4
          %v1697 = vshll.u32 %v1430, 16
          %v1699 = vrot.slane %v1697, 5
          %v1700 = vsel %vm348, %v1695, %v1699
          %v1701 = vshrl.u32 %v1430, 16
          %v1703 = vrot.slane %v1701, 4
          %v1704 = vor.u32 %v1703, %v1699
          %v1705 = vrot.slane %v1704, 4
          %v1707 = vshll.u32 %v1431, 16
          %v1709 = vrot.slane %v1707, 5
          %v1710 = vsel %vm348, %v1705, %v1709
          %v1712 = vshrl.u32 %v1432, 16
          %v1714 = vrot.slane %v1712, 4
          %v1715 = vshll.u32 %v1432, 16
          %v1717 = vrot.slane %v1715, 5
          %v1718 = vor.u32 %v1714, %v1717
          %v1719 = vrot.slane %v1718, 4
          %v1721 = vshll.u32 %v1433, 16
          %v1723 = vrot.slane %v1721, 5
          %v1724 = vsel %vm348, %v1719, %v1723
          %v1725 = vshrl.u32 %v1433, 16
          %v1727 = vrot.slane %v1725, 4
          %v1728 = vor.u32 %v1727, %v1723
          %v1729 = vrot.slane %v1728, 4
          %v1731 = vshll.u32 %v1434, 16
          %v1733 = vrot.slane %v1731, 5
          %v1734 = vsel %vm348, %v1729, %v1733
          %v1736 = vshrl.u32 %v1435, 16
          %v1738 = vrot.slane %v1736, 4
          %v1739 = vshll.u32 %v1435, 16
          %v1741 = vrot.slane %v1739, 5
          %v1742 = vor.u32 %v1738, %v1741
          %v1743 = vrot.slane %v1742, 4
          %v1745 = vshll.u32 %v1436, 16
          %v1747 = vrot.slane %v1745, 5
          %v1748 = vsel %vm348, %v1743, %v1747
          %v1749 = vshrl.u32 %v1436, 16
          %v1751 = vrot.slane %v1749, 4
          %v1752 = vor.u32 %v1751, %v1747
          %v1753 = vrot.slane %v1752, 4
          %v1755 = vshll.u32 %v1437, 16
          %v1757 = vrot.slane %v1755, 5
          %v1758 = vsel %vm348, %v1753, %v1757
          %v1760 = vshrl.u32 %v1438, 16
          %v1762 = vrot.slane %v1760, 4
          %v1763 = vshll.u32 %v1438, 16
          %v1765 = vrot.slane %v1763, 5
          %v1766 = vor.u32 %v1762, %v1765
          %v1767 = vrot.slane %v1766, 4
          %v1769 = vshll.u32 %v1439, 16
          %v1771 = vrot.slane %v1769, 5
          %v1772 = vsel %vm348, %v1767, %v1771
          %v1773 = vshrl.u32 %v1439, 16
          %v1775 = vrot.slane %v1773, 4
          %v1776 = vor.u32 %v1775, %v1771
          %v1777 = vrot.slane %v1776, 4
          %v1779 = vshll.u32 %v1440, 16
          %v1781 = vrot.slane %v1779, 5
          %v1782 = vsel %vm348, %v1777, %v1781
          %v1784 = vshrl.u32 %v1441, 16
          %v1786 = vrot.slane %v1784, 4
          %v1787 = vshll.u32 %v1441, 16
          %v1789 = vrot.slane %v1787, 5
          %v1790 = vor.u32 %v1786, %v1789
          %v1791 = vrot.slane %v1790, 4
          %v1793 = vshll.u32 %v1442, 16
          %v1795 = vrot.slane %v1793, 5
          %v1796 = vsel %vm348, %v1791, %v1795
          %v1797 = vshrl.u32 %v1442, 16
          %v1799 = vrot.slane %v1797, 4
          %v1800 = vor.u32 %v1799, %v1795
          %v1801 = vrot.slane %v1800, 4
          %v1803 = vshll.u32 %v1443, 16
          %v1805 = vrot.slane %v1803, 5
          %v1806 = vsel %vm348, %v1801, %v1805
          %v1808 = vshrl.u32 %v1444, 16
          %v1810 = vrot.slane %v1808, 4
          %v1811 = vshll.u32 %v1444, 16
          %v1813 = vrot.slane %v1811, 5
          %v1814 = vor.u32 %v1810, %v1813
          %v1815 = vrot.slane %v1814, 4
          %v1817 = vshll.u32 %v1445, 16
          %v1819 = vrot.slane %v1817, 5
          %v1820 = vsel %vm348, %v1815, %v1819
          %v1821 = vshrl.u32 %v1445, 16
          %v1823 = vrot.slane %v1821, 4
          %v1824 = vor.u32 %v1823, %v1819
          %v1825 = vrot.slane %v1824, 4
          %v1827 = vshll.u32 %v1446, 16
          %v1829 = vrot.slane %v1827, 5
          %v1830 = vsel %vm348, %v1825, %v1829
          %1831 = vrot.lane.b32.xlu0 %v1460, 16
          %v1832 = vpop.permute.xlu0 %1831
          %1833 = vrot.lane.b32.xlu0 %v1470, 16
          %v1834 = vpop.permute.xlu0 %1833
          %1835 = vrot.lane.b32.xlu0 %v1484, 16
          %v1836 = vpop.permute.xlu0 %1835
          %1837 = vrot.lane.b32.xlu0 %v1494, 16
          %v1838 = vpop.permute.xlu0 %1837
          %1839 = vrot.lane.b32.xlu0 %v1508, 16
          %v1840 = vpop.permute.xlu0 %1839
          %1841 = vrot.lane.b32.xlu0 %v1518, 16
          %v1842 = vpop.permute.xlu0 %1841
          %1843 = vrot.lane.b32.xlu0 %v1532, 16
          %v1844 = vpop.permute.xlu0 %1843
          %1845 = vrot.lane.b32.xlu0 %v1542, 16
          %v1846 = vpop.permute.xlu0 %1845
          %1847 = vrot.lane.b32.xlu0 %v1556, 16
          %v1848 = vpop.permute.xlu0 %1847
          %1849 = vrot.lane.b32.xlu0 %v1566, 16
          %v1850 = vpop.permute.xlu0 %1849
          %1851 = vrot.lane.b32.xlu0 %v1580, 16
          %v1852 = vpop.permute.xlu0 %1851
          %1853 = vrot.lane.b32.xlu0 %v1590, 16
          %v1854 = vpop.permute.xlu0 %1853
          %1855 = vrot.lane.b32.xlu0 %v1604, 16
          %v1856 = vpop.permute.xlu0 %1855
          %1857 = vrot.lane.b32.xlu0 %v1614, 16
          %v1858 = vpop.permute.xlu0 %1857
          %1859 = vrot.lane.b32.xlu0 %v1628, 16
          %v1860 = vpop.permute.xlu0 %1859
          %1861 = vrot.lane.b32.xlu0 %v1638, 16
          %v1862 = vpop.permute.xlu0 %1861
          %1863 = vrot.lane.b32.xlu0 %v1652, 16
          %v1864 = vpop.permute.xlu0 %1863
          %1865 = vrot.lane.b32.xlu0 %v1662, 16
          %v1866 = vpop.permute.xlu0 %1865
          %1867 = vrot.lane.b32.xlu0 %v1676, 16
          %v1868 = vpop.permute.xlu0 %1867
          %1869 = vrot.lane.b32.xlu0 %v1686, 16
          %v1870 = vpop.permute.xlu0 %1869
          %1871 = vrot.lane.b32.xlu0 %v1700, 16
          %v1872 = vpop.permute.xlu0 %1871
          %1873 = vrot.lane.b32.xlu0 %v1710, 16
          %v1874 = vpop.permute.xlu0 %1873
          %1875 = vrot.lane.b32.xlu0 %v1724, 16
          %v1876 = vpop.permute.xlu0 %1875
          %1877 = vrot.lane.b32.xlu0 %v1734, 16
          %v1878 = vpop.permute.xlu0 %1877
          %1879 = vrot.lane.b32.xlu0 %v1748, 16
          %v1880 = vpop.permute.xlu0 %1879
          %1881 = vrot.lane.b32.xlu0 %v1758, 16
          %v1882 = vpop.permute.xlu0 %1881
          %1883 = vrot.lane.b32.xlu0 %v1772, 16
          %v1884 = vpop.permute.xlu0 %1883
          %1885 = vrot.lane.b32.xlu0 %v1782, 16
          %v1886 = vpop.permute.xlu0 %1885
          %1887 = vrot.lane.b32.xlu0 %v1796, 16
          %v1888 = vpop.permute.xlu0 %1887
          %1889 = vrot.lane.b32.xlu0 %v1806, 16
          %v1890 = vpop.permute.xlu0 %1889
          %1891 = vrot.lane.b32.xlu0 %v1820, 16
          %v1892 = vpop.permute.xlu0 %1891
          %1893 = vrot.lane.b32.xlu0 %v1830, 16
          %v1894 = vpop.permute.xlu0 %1893
          %vm1927 = vcmask 158848
          %1928 = vst.msk [vmem:[#allocation2] sm:$0xf] %vm1927, %v1832
          %1929 = vst.msk [vmem:[#allocation2 + $0x4] sm:$0xf] %vm1927, %v1834
          %1930 = vst.msk [vmem:[#allocation2 + $0x8] sm:$0xf] %vm1927, %v1836
          %1931 = vst.msk [vmem:[#allocation2 + $0xc] sm:$0xf] %vm1927, %v1838
          %1932 = vst.msk [vmem:[#allocation2 + $0x10] sm:$0xf] %vm1927, %v1840
          %1933 = vst.msk [vmem:[#allocation2 + $0x14] sm:$0xf] %vm1927, %v1842
          %1934 = vst.msk [vmem:[#allocation2 + $0x18] sm:$0xf] %vm1927, %v1844
          %1935 = vst.msk [vmem:[#allocation2 + $0x1c] sm:$0xf] %vm1927, %v1846
          %1936 = vst.msk [vmem:[#allocation2 + $0x20] sm:$0xf] %vm1927, %v1848
          %1937 = vst.msk [vmem:[#allocation2 + $0x24] sm:$0xf] %vm1927, %v1850
          %1938 = vst.msk [vmem:[#allocation2 + $0x28] sm:$0xf] %vm1927, %v1852
          %1939 = vst.msk [vmem:[#allocation2 + $0x2c] sm:$0xf] %vm1927, %v1854
          %1940 = vst.msk [vmem:[#allocation2 + $0x30] sm:$0xf] %vm1927, %v1856
          %1941 = vst.msk [vmem:[#allocation2 + $0x34] sm:$0xf] %vm1927, %v1858
          %1942 = vst.msk [vmem:[#allocation2 + $0x38] sm:$0xf] %vm1927, %v1860
          %1943 = vst.msk [vmem:[#allocation2 + $0x3c] sm:$0xf] %vm1927, %v1862
          %1944 = vst.msk [vmem:[#allocation2 + $0x40] sm:$0xf] %vm1927, %v1864
          %1945 = vst.msk [vmem:[#allocation2 + $0x44] sm:$0xf] %vm1927, %v1866
          %1946 = vst.msk [vmem:[#allocation2 + $0x48] sm:$0xf] %vm1927, %v1868
          %1947 = vst.msk [vmem:[#allocation2 + $0x4c] sm:$0xf] %vm1927, %v1870
          %1948 = vst.msk [vmem:[#allocation2 + $0x50] sm:$0xf] %vm1927, %v1872
          %1949 = vst.msk [vmem:[#allocation2 + $0x54] sm:$0xf] %vm1927, %v1874
          %1950 = vst.msk [vmem:[#allocation2 + $0x58] sm:$0xf] %vm1927, %v1876
          %1951 = vst.msk [vmem:[#allocation2 + $0x5c] sm:$0xf] %vm1927, %v1878
          %1952 = vst.msk [vmem:[#allocation2 + $0x60] sm:$0xf] %vm1927, %v1880
          %1953 = vst.msk [vmem:[#allocation2 + $0x64] sm:$0xf] %vm1927, %v1882
          %1954 = vst.msk [vmem:[#allocation2 + $0x68] sm:$0xf] %vm1927, %v1884
          %1955 = vst.msk [vmem:[#allocation2 + $0x6c] sm:$0xf] %vm1927, %v1886
          %1956 = vst.msk [vmem:[#allocation2 + $0x70] sm:$0xf] %vm1927, %v1888
          %1957 = vst.msk [vmem:[#allocation2 + $0x74] sm:$0xf] %vm1927, %v1890
          %1958 = vst.msk [vmem:[#allocation2 + $0x78] sm:$0xf] %vm1927, %v1892
          %1959 = vst.msk [vmem:[#allocation2 + $0x7c] sm:$0xf] %vm1927, %v1894
          %v1960 = vld [vmem:[%s1205] sm:$0xe]
          %v1961 = vld [vmem:[%s1205 + $0x4] sm:$0xf]
          %v1962 = vld [vmem:[%s1205 + $0x8] sm:$0x1]
          %v1963 = vld [vmem:[%s1205 + $0xc] sm:$0xe]
          %v1964 = vld [vmem:[%s1205 + $0x10] sm:$0xf]
          %v1965 = vld [vmem:[%s1205 + $0x14] sm:$0x1]
          %v1966 = vld [vmem:[%s1205 + $0x18] sm:$0xe]
          %v1967 = vld [vmem:[%s1205 + $0x1c] sm:$0xf]
          %v1968 = vld [vmem:[%s1205 + $0x20] sm:$0x1]
          %v1969 = vld [vmem:[%s1205 + $0x24] sm:$0xe]
          %v1970 = vld [vmem:[%s1205 + $0x28] sm:$0xf]
          %v1971 = vld [vmem:[%s1205 + $0x2c] sm:$0x1]
          %v1972 = vld [vmem:[%s1205 + $0x30] sm:$0xe]
          %v1973 = vld [vmem:[%s1205 + $0x34] sm:$0xf]
          %v1974 = vld [vmem:[%s1205 + $0x38] sm:$0x1]
          %v1975 = vld [vmem:[%s1205 + $0x3c] sm:$0xe]
          %v1976 = vld [vmem:[%s1205 + $0x40] sm:$0xf]
          %v1977 = vld [vmem:[%s1205 + $0x44] sm:$0x1]
          %v1978 = vld [vmem:[%s1205 + $0x48] sm:$0xe]
          %v1979 = vld [vmem:[%s1205 + $0x4c] sm:$0xf]
          %v1980 = vld [vmem:[%s1205 + $0x50] sm:$0x1]
          %v1981 = vld [vmem:[%s1205 + $0x54] sm:$0xe]
          %v1982 = vld [vmem:[%s1205 + $0x58] sm:$0xf]
          %v1983 = vld [vmem:[%s1205 + $0x5c] sm:$0x1]
          %v1984 = vld [vmem:[%s1205 + $0x60] sm:$0xe]
          %v1985 = vld [vmem:[%s1205 + $0x64] sm:$0xf]
          %v1986 = vld [vmem:[%s1205 + $0x68] sm:$0x1]
          %v1987 = vld [vmem:[%s1205 + $0x6c] sm:$0xe]
          %v1988 = vld [vmem:[%s1205 + $0x70] sm:$0xf]
          %v1989 = vld [vmem:[%s1205 + $0x74] sm:$0x1]
          %v1990 = vld [vmem:[%s1205 + $0x78] sm:$0xe]
          %v1991 = vld [vmem:[%s1205 + $0x7c] sm:$0xf]
          %v1992 = vld [vmem:[%s1205 + $0x80] sm:$0x1]
          %v1993 = vld [vmem:[%s1205 + $0x84] sm:$0xe]
          %v1994 = vld [vmem:[%s1205 + $0x88] sm:$0xf]
          %v1995 = vld [vmem:[%s1205 + $0x8c] sm:$0x1]
          %v1996 = vld [vmem:[%s1205 + $0x90] sm:$0xe]
          %v1997 = vld [vmem:[%s1205 + $0x94] sm:$0xf]
          %v1998 = vld [vmem:[%s1205 + $0x98] sm:$0x1]
          %v1999 = vld [vmem:[%s1205 + $0x9c] sm:$0xe]
          %v2000 = vld [vmem:[%s1205 + $0xa0] sm:$0xf]
          %v2001 = vld [vmem:[%s1205 + $0xa4] sm:$0x1]
          %v2002 = vld [vmem:[%s1205 + $0xa8] sm:$0xe]
          %v2003 = vld [vmem:[%s1205 + $0xac] sm:$0xf]
          %v2004 = vld [vmem:[%s1205 + $0xb0] sm:$0x1]
          %v2005 = vld [vmem:[%s1205 + $0xb4] sm:$0xe]
          %v2006 = vld [vmem:[%s1205 + $0xb8] sm:$0xf]
          %v2007 = vld [vmem:[%s1205 + $0xbc] sm:$0x1]
          %v2056 = vrot.slane %v1960, 5
          %v2057 = vrot.slane %v2056, 4
          %v2058 = vrot.slane %v1961, 5
          %v2059 = vsel %vm960, %v2057, %v2058
          %v2060 = vrot.slane %v2058, 4
          %v2061 = vrot.slane %v1962, 5
          %v2062 = vsel %vm960, %v2060, %v2061
          %v2063 = vrot.slane %v1963, 5
          %v2064 = vrot.slane %v2063, 4
          %v2065 = vrot.slane %v1964, 5
          %v2066 = vsel %vm960, %v2064, %v2065
          %v2067 = vrot.slane %v2065, 4
          %v2068 = vrot.slane %v1965, 5
          %v2069 = vsel %vm960, %v2067, %v2068
          %v2070 = vrot.slane %v1966, 5
          %v2071 = vrot.slane %v2070, 4
          %v2072 = vrot.slane %v1967, 5
          %v2073 = vsel %vm960, %v2071, %v2072
          %v2074 = vrot.slane %v2072, 4
          %v2075 = vrot.slane %v1968, 5
          %v2076 = vsel %vm960, %v2074, %v2075
          %v2077 = vrot.slane %v1969, 5
          %v2078 = vrot.slane %v2077, 4
          %v2079 = vrot.slane %v1970, 5
          %v2080 = vsel %vm960, %v2078, %v2079
          %v2081 = vrot.slane %v2079, 4
          %v2082 = vrot.slane %v1971, 5
          %v2083 = vsel %vm960, %v2081, %v2082
          %v2084 = vrot.slane %v1972, 5
          %v2085 = vrot.slane %v2084, 4
          %v2086 = vrot.slane %v1973, 5
          %v2087 = vsel %vm960, %v2085, %v2086
          %v2088 = vrot.slane %v2086, 4
          %v2089 = vrot.slane %v1974, 5
          %v2090 = vsel %vm960, %v2088, %v2089
          %v2091 = vrot.slane %v1975, 5
          %v2092 = vrot.slane %v2091, 4
          %v2093 = vrot.slane %v1976, 5
          %v2094 = vsel %vm960, %v2092, %v2093
          %v2095 = vrot.slane %v2093, 4
          %v2096 = vrot.slane %v1977, 5
          %v2097 = vsel %vm960, %v2095, %v2096
          %v2098 = vrot.slane %v1978, 5
          %v2099 = vrot.slane %v2098, 4
          %v2100 = vrot.slane %v1979, 5
          %v2101 = vsel %vm960, %v2099, %v2100
          %v2102 = vrot.slane %v2100, 4
          %v2103 = vrot.slane %v1980, 5
          %v2104 = vsel %vm960, %v2102, %v2103
          %v2105 = vrot.slane %v1981, 5
          %v2106 = vrot.slane %v2105, 4
          %v2107 = vrot.slane %v1982, 5
          %v2108 = vsel %vm960, %v2106, %v2107
          %v2109 = vrot.slane %v2107, 4
          %v2110 = vrot.slane %v1983, 5
          %v2111 = vsel %vm960, %v2109, %v2110
          %v2112 = vrot.slane %v1984, 5
          %v2113 = vrot.slane %v2112, 4
          %v2114 = vrot.slane %v1985, 5
          %v2115 = vsel %vm960, %v2113, %v2114
          %v2116 = vrot.slane %v2114, 4
          %v2117 = vrot.slane %v1986, 5
          %v2118 = vsel %vm960, %v2116, %v2117
          %v2119 = vrot.slane %v1987, 5
          %v2120 = vrot.slane %v2119, 4
          %v2121 = vrot.slane %v1988, 5
          %v2122 = vsel %vm960, %v2120, %v2121
          %v2123 = vrot.slane %v2121, 4
          %v2124 = vrot.slane %v1989, 5
          %v2125 = vsel %vm960, %v2123, %v2124
          %v2126 = vrot.slane %v1990, 5
          %v2127 = vrot.slane %v2126, 4
          %v2128 = vrot.slane %v1991, 5
          %v2129 = vsel %vm960, %v2127, %v2128
          %v2130 = vrot.slane %v2128, 4
          %v2131 = vrot.slane %v1992, 5
          %v2132 = vsel %vm960, %v2130, %v2131
          %v2133 = vrot.slane %v1993, 5
          %v2134 = vrot.slane %v2133, 4
          %v2135 = vrot.slane %v1994, 5
          %v2136 = vsel %vm960, %v2134, %v2135
          %v2137 = vrot.slane %v2135, 4
          %v2138 = vrot.slane %v1995, 5
          %v2139 = vsel %vm960, %v2137, %v2138
          %v2140 = vrot.slane %v1996, 5
          %v2141 = vrot.slane %v2140, 4
          %v2142 = vrot.slane %v1997, 5
          %v2143 = vsel %vm960, %v2141, %v2142
          %v2144 = vrot.slane %v2142, 4
          %v2145 = vrot.slane %v1998, 5
          %v2146 = vsel %vm960, %v2144, %v2145
          %v2147 = vrot.slane %v1999, 5
          %v2148 = vrot.slane %v2147, 4
          %v2149 = vrot.slane %v2000, 5
          %v2150 = vsel %vm960, %v2148, %v2149
          %v2151 = vrot.slane %v2149, 4
          %v2152 = vrot.slane %v2001, 5
          %v2153 = vsel %vm960, %v2151, %v2152
          %v2154 = vrot.slane %v2002, 5
          %v2155 = vrot.slane %v2154, 4
          %v2156 = vrot.slane %v2003, 5
          %v2157 = vsel %vm960, %v2155, %v2156
          %v2158 = vrot.slane %v2156, 4
          %v2159 = vrot.slane %v2004, 5
          %v2160 = vsel %vm960, %v2158, %v2159
          %v2161 = vrot.slane %v2005, 5
          %v2162 = vrot.slane %v2161, 4
          %v2163 = vrot.slane %v2006, 5
          %v2164 = vsel %vm960, %v2162, %v2163
          %v2165 = vrot.slane %v2163, 4
          %v2166 = vrot.slane %v2007, 5
          %v2167 = vsel %vm960, %v2165, %v2166
          %2168 = vrot.lane.b32.xlu0 %v2059, 20
          %v2169 = vpop.permute.xlu0 %2168
          %2170 = vrot.lane.b32.xlu0 %v2062, 20
          %v2171 = vpop.permute.xlu0 %2170
          %2172 = vrot.lane.b32.xlu0 %v2066, 20
          %v2173 = vpop.permute.xlu0 %2172
          %2174 = vrot.lane.b32.xlu0 %v2069, 20
          %v2175 = vpop.permute.xlu0 %2174
          %2176 = vrot.lane.b32.xlu0 %v2073, 20
          %v2177 = vpop.permute.xlu0 %2176
          %2178 = vrot.lane.b32.xlu0 %v2076, 20
          %v2179 = vpop.permute.xlu0 %2178
          %2180 = vrot.lane.b32.xlu0 %v2080, 20
          %v2181 = vpop.permute.xlu0 %2180
          %2182 = vrot.lane.b32.xlu0 %v2083, 20
          %v2183 = vpop.permute.xlu0 %2182
          %2184 = vrot.lane.b32.xlu0 %v2087, 20
          %v2185 = vpop.permute.xlu0 %2184
          %2186 = vrot.lane.b32.xlu0 %v2090, 20
          %v2187 = vpop.permute.xlu0 %2186
          %2188 = vrot.lane.b32.xlu0 %v2094, 20
          %v2189 = vpop.permute.xlu0 %2188
          %2190 = vrot.lane.b32.xlu0 %v2097, 20
          %v2191 = vpop.permute.xlu0 %2190
          %2192 = vrot.lane.b32.xlu0 %v2101, 20
          %v2193 = vpop.permute.xlu0 %2192
          %2194 = vrot.lane.b32.xlu0 %v2104, 20
          %v2195 = vpop.permute.xlu0 %2194
          %2196 = vrot.lane.b32.xlu0 %v2108, 20
          %v2197 = vpop.permute.xlu0 %2196
          %2198 = vrot.lane.b32.xlu0 %v2111, 20
          %v2199 = vpop.permute.xlu0 %2198
          %2200 = vrot.lane.b32.xlu0 %v2115, 20
          %v2201 = vpop.permute.xlu0 %2200
          %2202 = vrot.lane.b32.xlu0 %v2118, 20
          %v2203 = vpop.permute.xlu0 %2202
          %2204 = vrot.lane.b32.xlu0 %v2122, 20
          %v2205 = vpop.permute.xlu0 %2204
          %2206 = vrot.lane.b32.xlu0 %v2125, 20
          %v2207 = vpop.permute.xlu0 %2206
          %2208 = vrot.lane.b32.xlu0 %v2129, 20
          %v2209 = vpop.permute.xlu0 %2208
          %2210 = vrot.lane.b32.xlu0 %v2132, 20
          %v2211 = vpop.permute.xlu0 %2210
          %2212 = vrot.lane.b32.xlu0 %v2136, 20
          %v2213 = vpop.permute.xlu0 %2212
          %2214 = vrot.lane.b32.xlu0 %v2139, 20
          %v2215 = vpop.permute.xlu0 %2214
          %2216 = vrot.lane.b32.xlu0 %v2143, 20
          %v2217 = vpop.permute.xlu0 %2216
          %2218 = vrot.lane.b32.xlu0 %v2146, 20
          %v2219 = vpop.permute.xlu0 %2218
          %2220 = vrot.lane.b32.xlu0 %v2150, 20
          %v2221 = vpop.permute.xlu0 %2220
          %2222 = vrot.lane.b32.xlu0 %v2153, 20
          %v2223 = vpop.permute.xlu0 %2222
          %2224 = vrot.lane.b32.xlu0 %v2157, 20
          %v2225 = vpop.permute.xlu0 %2224
          %2226 = vrot.lane.b32.xlu0 %v2160, 20
          %v2227 = vpop.permute.xlu0 %2226
          %2228 = vrot.lane.b32.xlu0 %v2164, 20
          %v2229 = vpop.permute.xlu0 %2228
          %2230 = vrot.lane.b32.xlu0 %v2167, 20
          %v2231 = vpop.permute.xlu0 %2230
          %vm2264 = vcmask 191648
          %2265 = vst.msk [vmem:[#allocation2] sm:$0xf] %vm2264, %v2169
          %2266 = vst.msk [vmem:[#allocation2 + $0x4] sm:$0xf] %vm2264, %v2171
          %2267 = vst.msk [vmem:[#allocation2 + $0x8] sm:$0xf] %vm2264, %v2173
          %2268 = vst.msk [vmem:[#allocation2 + $0xc] sm:$0xf] %vm2264, %v2175
          %2269 = vst.msk [vmem:[#allocation2 + $0x10] sm:$0xf] %vm2264, %v2177
          %2270 = vst.msk [vmem:[#allocation2 + $0x14] sm:$0xf] %vm2264, %v2179
          %2271 = vst.msk [vmem:[#allocation2 + $0x18] sm:$0xf] %vm2264, %v2181
          %2272 = vst.msk [vmem:[#allocation2 + $0x1c] sm:$0xf] %vm2264, %v2183
          %2273 = vst.msk [vmem:[#allocation2 + $0x20] sm:$0xf] %vm2264, %v2185
          %2274 = vst.msk [vmem:[#allocation2 + $0x24] sm:$0xf] %vm2264, %v2187
          %2275 = vst.msk [vmem:[#allocation2 + $0x28] sm:$0xf] %vm2264, %v2189
          %2276 = vst.msk [vmem:[#allocation2 + $0x2c] sm:$0xf] %vm2264, %v2191
          %2277 = vst.msk [vmem:[#allocation2 + $0x30] sm:$0xf] %vm2264, %v2193
          %2278 = vst.msk [vmem:[#allocation2 + $0x34] sm:$0xf] %vm2264, %v2195
          %2279 = vst.msk [vmem:[#allocation2 + $0x38] sm:$0xf] %vm2264, %v2197
          %2280 = vst.msk [vmem:[#allocation2 + $0x3c] sm:$0xf] %vm2264, %v2199
          %2281 = vst.msk [vmem:[#allocation2 + $0x40] sm:$0xf] %vm2264, %v2201
          %2282 = vst.msk [vmem:[#allocation2 + $0x44] sm:$0xf] %vm2264, %v2203
          %2283 = vst.msk [vmem:[#allocation2 + $0x48] sm:$0xf] %vm2264, %v2205
          %2284 = vst.msk [vmem:[#allocation2 + $0x4c] sm:$0xf] %vm2264, %v2207
          %2285 = vst.msk [vmem:[#allocation2 + $0x50] sm:$0xf] %vm2264, %v2209
          %2286 = vst.msk [vmem:[#allocation2 + $0x54] sm:$0xf] %vm2264, %v2211
          %2287 = vst.msk [vmem:[#allocation2 + $0x58] sm:$0xf] %vm2264, %v2213
          %2288 = vst.msk [vmem:[#allocation2 + $0x5c] sm:$0xf] %vm2264, %v2215
          %2289 = vst.msk [vmem:[#allocation2 + $0x60] sm:$0xf] %vm2264, %v2217
          %2290 = vst.msk [vmem:[#allocation2 + $0x64] sm:$0xf] %vm2264, %v2219
          %2291 = vst.msk [vmem:[#allocation2 + $0x68] sm:$0xf] %vm2264, %v2221
          %2292 = vst.msk [vmem:[#allocation2 + $0x6c] sm:$0xf] %vm2264, %v2223
          %2293 = vst.msk [vmem:[#allocation2 + $0x70] sm:$0xf] %vm2264, %v2225
          %2294 = vst.msk [vmem:[#allocation2 + $0x74] sm:$0xf] %vm2264, %v2227
          %2295 = vst.msk [vmem:[#allocation2 + $0x78] sm:$0xf] %vm2264, %v2229
          %2296 = vst.msk [vmem:[#allocation2 + $0x7c] sm:$0xf] %vm2264, %v2231
          %s2297 = sadd.s32 %s225, 2
          %s2298 = smul.u32 %s2297, 3
          %s2299 = smul.addr %s2298, 4
          %s2300 = scalar_lea.vmem %s215, %s2299
          %v2301 = vld [vmem:[%s2300] sm:$0xf]
          %v2302 = vld [vmem:[%s2300 + $0x4] sm:$0xf]
          %v2303 = vld [vmem:[%s2300 + $0xc] sm:$0xf]
          %v2304 = vld [vmem:[%s2300 + $0x10] sm:$0xf]
          %v2305 = vld [vmem:[%s2300 + $0x18] sm:$0xf]
          %v2306 = vld [vmem:[%s2300 + $0x1c] sm:$0xf]
          %v2307 = vld [vmem:[%s2300 + $0x24] sm:$0xf]
          %v2308 = vld [vmem:[%s2300 + $0x28] sm:$0xf]
          %v2309 = vld [vmem:[%s2300 + $0x30] sm:$0xf]
          %v2310 = vld [vmem:[%s2300 + $0x34] sm:$0xf]
          %v2311 = vld [vmem:[%s2300 + $0x3c] sm:$0xf]
          %v2312 = vld [vmem:[%s2300 + $0x40] sm:$0xf]
          %v2313 = vld [vmem:[%s2300 + $0x48] sm:$0xf]
          %v2314 = vld [vmem:[%s2300 + $0x4c] sm:$0xf]
          %v2315 = vld [vmem:[%s2300 + $0x54] sm:$0xf]
          %v2316 = vld [vmem:[%s2300 + $0x58] sm:$0xf]
          %v2317 = vld [vmem:[%s2300 + $0x60] sm:$0xf]
          %v2318 = vld [vmem:[%s2300 + $0x64] sm:$0xf]
          %v2319 = vld [vmem:[%s2300 + $0x6c] sm:$0xf]
          %v2320 = vld [vmem:[%s2300 + $0x70] sm:$0xf]
          %v2321 = vld [vmem:[%s2300 + $0x78] sm:$0xf]
          %v2322 = vld [vmem:[%s2300 + $0x7c] sm:$0xf]
          %v2323 = vld [vmem:[%s2300 + $0x84] sm:$0xf]
          %v2324 = vld [vmem:[%s2300 + $0x88] sm:$0xf]
          %v2325 = vld [vmem:[%s2300 + $0x90] sm:$0xf]
          %v2326 = vld [vmem:[%s2300 + $0x94] sm:$0xf]
          %v2327 = vld [vmem:[%s2300 + $0x9c] sm:$0xf]
          %v2328 = vld [vmem:[%s2300 + $0xa0] sm:$0xf]
          %v2329 = vld [vmem:[%s2300 + $0xa8] sm:$0xf]
          %v2330 = vld [vmem:[%s2300 + $0xac] sm:$0xf]
          %v2331 = vld [vmem:[%s2300 + $0xb4] sm:$0xf]
          %v2332 = vld [vmem:[%s2300 + $0xb8] sm:$0xf]
          %2365 = vrot.lane.b32.xlu0 %v2301, 24
          %v2366 = vpop.permute.xlu0 %2365
          %2367 = vrot.lane.b32.xlu0 %v2302, 24
          %v2368 = vpop.permute.xlu0 %2367
          %2369 = vrot.lane.b32.xlu0 %v2303, 24
          %v2370 = vpop.permute.xlu0 %2369
          %2371 = vrot.lane.b32.xlu0 %v2304, 24
          %v2372 = vpop.permute.xlu0 %2371
          %2373 = vrot.lane.b32.xlu0 %v2305, 24
          %v2374 = vpop.permute.xlu0 %2373
          %2375 = vrot.lane.b32.xlu0 %v2306, 24
          %v2376 = vpop.permute.xlu0 %2375
          %2377 = vrot.lane.b32.xlu0 %v2307, 24
          %v2378 = vpop.permute.xlu0 %2377
          %2379 = vrot.lane.b32.xlu0 %v2308, 24
          %v2380 = vpop.permute.xlu0 %2379
          %2381 = vrot.lane.b32.xlu0 %v2309, 24
          %v2382 = vpop.permute.xlu0 %2381
          %2383 = vrot.lane.b32.xlu0 %v2310, 24
          %v2384 = vpop.permute.xlu0 %2383
          %2385 = vrot.lane.b32.xlu0 %v2311, 24
          %v2386 = vpop.permute.xlu0 %2385
          %2387 = vrot.lane.b32.xlu0 %v2312, 24
          %v2388 = vpop.permute.xlu0 %2387
          %2389 = vrot.lane.b32.xlu0 %v2313, 24
          %v2390 = vpop.permute.xlu0 %2389
          %2391 = vrot.lane.b32.xlu0 %v2314, 24
          %v2392 = vpop.permute.xlu0 %2391
          %2393 = vrot.lane.b32.xlu0 %v2315, 24
          %v2394 = vpop.permute.xlu0 %2393
          %2395 = vrot.lane.b32.xlu0 %v2316, 24
          %v2396 = vpop.permute.xlu0 %2395
          %2397 = vrot.lane.b32.xlu0 %v2317, 24
          %v2398 = vpop.permute.xlu0 %2397
          %2399 = vrot.lane.b32.xlu0 %v2318, 24
          %v2400 = vpop.permute.xlu0 %2399
          %2401 = vrot.lane.b32.xlu0 %v2319, 24
          %v2402 = vpop.permute.xlu0 %2401
          %2403 = vrot.lane.b32.xlu0 %v2320, 24
          %v2404 = vpop.permute.xlu0 %2403
          %2405 = vrot.lane.b32.xlu0 %v2321, 24
          %v2406 = vpop.permute.xlu0 %2405
          %2407 = vrot.lane.b32.xlu0 %v2322, 24
          %v2408 = vpop.permute.xlu0 %2407
          %2409 = vrot.lane.b32.xlu0 %v2323, 24
          %v2410 = vpop.permute.xlu0 %2409
          %2411 = vrot.lane.b32.xlu0 %v2324, 24
          %v2412 = vpop.permute.xlu0 %2411
          %2413 = vrot.lane.b32.xlu0 %v2325, 24
          %v2414 = vpop.permute.xlu0 %2413
          %2415 = vrot.lane.b32.xlu0 %v2326, 24
          %v2416 = vpop.permute.xlu0 %2415
          %2417 = vrot.lane.b32.xlu0 %v2327, 24
          %v2418 = vpop.permute.xlu0 %2417
          %2419 = vrot.lane.b32.xlu0 %v2328, 24
          %v2420 = vpop.permute.xlu0 %2419
          %2421 = vrot.lane.b32.xlu0 %v2329, 24
          %v2422 = vpop.permute.xlu0 %2421
          %2423 = vrot.lane.b32.xlu0 %v2330, 24
          %v2424 = vpop.permute.xlu0 %2423
          %2425 = vrot.lane.b32.xlu0 %v2331, 24
          %v2426 = vpop.permute.xlu0 %2425
          %2427 = vrot.lane.b32.xlu0 %v2332, 24
          %v2428 = vpop.permute.xlu0 %2427
          %vm2461 = vcmask 224448
          %2462 = vst.msk [vmem:[#allocation2] sm:$0xf] %vm2461, %v2366
          %2463 = vst.msk [vmem:[#allocation2 + $0x4] sm:$0xf] %vm2461, %v2368
          %2464 = vst.msk [vmem:[#allocation2 + $0x8] sm:$0xf] %vm2461, %v2370
          %2465 = vst.msk [vmem:[#allocation2 + $0xc] sm:$0xf] %vm2461, %v2372
          %2466 = vst.msk [vmem:[#allocation2 + $0x10] sm:$0xf] %vm2461, %v2374
          %2467 = vst.msk [vmem:[#allocation2 + $0x14] sm:$0xf] %vm2461, %v2376
          %2468 = vst.msk [vmem:[#allocation2 + $0x18] sm:$0xf] %vm2461, %v2378
          %2469 = vst.msk [vmem:[#allocation2 + $0x1c] sm:$0xf] %vm2461, %v2380
          %2470 = vst.msk [vmem:[#allocation2 + $0x20] sm:$0xf] %vm2461, %v2382
          %2471 = vst.msk [vmem:[#allocation2 + $0x24] sm:$0xf] %vm2461, %v2384
          %2472 = vst.msk [vmem:[#allocation2 + $0x28] sm:$0xf] %vm2461, %v2386
          %2473 = vst.msk [vmem:[#allocation2 + $0x2c] sm:$0xf] %vm2461, %v2388
          %2474 = vst.msk [vmem:[#allocation2 + $0x30] sm:$0xf] %vm2461, %v2390
          %2475 = vst.msk [vmem:[#allocation2 + $0x34] sm:$0xf] %vm2461, %v2392
          %2476 = vst.msk [vmem:[#allocation2 + $0x38] sm:$0xf] %vm2461, %v2394
          %2477 = vst.msk [vmem:[#allocation2 + $0x3c] sm:$0xf] %vm2461, %v2396
          %2478 = vst.msk [vmem:[#allocation2 + $0x40] sm:$0xf] %vm2461, %v2398
          %2479 = vst.msk [vmem:[#allocation2 + $0x44] sm:$0xf] %vm2461, %v2400
          %2480 = vst.msk [vmem:[#allocation2 + $0x48] sm:$0xf] %vm2461, %v2402
          %2481 = vst.msk [vmem:[#allocation2 + $0x4c] sm:$0xf] %vm2461, %v2404
          %2482 = vst.msk [vmem:[#allocation2 + $0x50] sm:$0xf] %vm2461, %v2406
          %2483 = vst.msk [vmem:[#allocation2 + $0x54] sm:$0xf] %vm2461, %v2408
          %2484 = vst.msk [vmem:[#allocation2 + $0x58] sm:$0xf] %vm2461, %v2410
          %2485 = vst.msk [vmem:[#allocation2 + $0x5c] sm:$0xf] %vm2461, %v2412
          %2486 = vst.msk [vmem:[#allocation2 + $0x60] sm:$0xf] %vm2461, %v2414
          %2487 = vst.msk [vmem:[#allocation2 + $0x64] sm:$0xf] %vm2461, %v2416
          %2488 = vst.msk [vmem:[#allocation2 + $0x68] sm:$0xf] %vm2461, %v2418
          %2489 = vst.msk [vmem:[#allocation2 + $0x6c] sm:$0xf] %vm2461, %v2420
          %2490 = vst.msk [vmem:[#allocation2 + $0x70] sm:$0xf] %vm2461, %v2422
          %2491 = vst.msk [vmem:[#allocation2 + $0x74] sm:$0xf] %vm2461, %v2424
          %2492 = vst.msk [vmem:[#allocation2 + $0x78] sm:$0xf] %vm2461, %v2426
          %2493 = vst.msk [vmem:[#allocation2 + $0x7c] sm:$0xf] %vm2461, %v2428
          %v2494 = vld [vmem:[%s2300] sm:$0xf]
          %v2495 = vld [vmem:[%s2300 + $0x4] sm:$0xf]
          %v2496 = vld [vmem:[%s2300 + $0x8] sm:$0x1]
          %v2497 = vld [vmem:[%s2300 + $0xc] sm:$0xf]
          %v2498 = vld [vmem:[%s2300 + $0x10] sm:$0xf]
          %v2499 = vld [vmem:[%s2300 + $0x14] sm:$0x1]
          %v2500 = vld [vmem:[%s2300 + $0x18] sm:$0xf]
          %v2501 = vld [vmem:[%s2300 + $0x1c] sm:$0xf]
          %v2502 = vld [vmem:[%s2300 + $0x20] sm:$0x1]
          %v2503 = vld [vmem:[%s2300 + $0x24] sm:$0xf]
          %v2504 = vld [vmem:[%s2300 + $0x28] sm:$0xf]
          %v2505 = vld [vmem:[%s2300 + $0x2c] sm:$0x1]
          %v2506 = vld [vmem:[%s2300 + $0x30] sm:$0xf]
          %v2507 = vld [vmem:[%s2300 + $0x34] sm:$0xf]
          %v2508 = vld [vmem:[%s2300 + $0x38] sm:$0x1]
          %v2509 = vld [vmem:[%s2300 + $0x3c] sm:$0xf]
          %v2510 = vld [vmem:[%s2300 + $0x40] sm:$0xf]
          %v2511 = vld [vmem:[%s2300 + $0x44] sm:$0x1]
          %v2512 = vld [vmem:[%s2300 + $0x48] sm:$0xf]
          %v2513 = vld [vmem:[%s2300 + $0x4c] sm:$0xf]
          %v2514 = vld [vmem:[%s2300 + $0x50] sm:$0x1]
          %v2515 = vld [vmem:[%s2300 + $0x54] sm:$0xf]
          %v2516 = vld [vmem:[%s2300 + $0x58] sm:$0xf]
          %v2517 = vld [vmem:[%s2300 + $0x5c] sm:$0x1]
          %v2518 = vld [vmem:[%s2300 + $0x60] sm:$0xf]
          %v2519 = vld [vmem:[%s2300 + $0x64] sm:$0xf]
          %v2520 = vld [vmem:[%s2300 + $0x68] sm:$0x1]
          %v2521 = vld [vmem:[%s2300 + $0x6c] sm:$0xf]
          %v2522 = vld [vmem:[%s2300 + $0x70] sm:$0xf]
          %v2523 = vld [vmem:[%s2300 + $0x74] sm:$0x1]
          %v2524 = vld [vmem:[%s2300 + $0x78] sm:$0xf]
          %v2525 = vld [vmem:[%s2300 + $0x7c] sm:$0xf]
          %v2526 = vld [vmem:[%s2300 + $0x80] sm:$0x1]
          %v2527 = vld [vmem:[%s2300 + $0x84] sm:$0xf]
          %v2528 = vld [vmem:[%s2300 + $0x88] sm:$0xf]
          %v2529 = vld [vmem:[%s2300 + $0x8c] sm:$0x1]
          %v2530 = vld [vmem:[%s2300 + $0x90] sm:$0xf]
          %v2531 = vld [vmem:[%s2300 + $0x94] sm:$0xf]
          %v2532 = vld [vmem:[%s2300 + $0x98] sm:$0x1]
          %v2533 = vld [vmem:[%s2300 + $0x9c] sm:$0xf]
          %v2534 = vld [vmem:[%s2300 + $0xa0] sm:$0xf]
          %v2535 = vld [vmem:[%s2300 + $0xa4] sm:$0x1]
          %v2536 = vld [vmem:[%s2300 + $0xa8] sm:$0xf]
          %v2537 = vld [vmem:[%s2300 + $0xac] sm:$0xf]
          %v2538 = vld [vmem:[%s2300 + $0xb0] sm:$0x1]
          %v2539 = vld [vmem:[%s2300 + $0xb4] sm:$0xf]
          %v2540 = vld [vmem:[%s2300 + $0xb8] sm:$0xf]
          %v2541 = vld [vmem:[%s2300 + $0xbc] sm:$0x1]
          %v2543 = vshrl.u32 %v2494, 16
          %v2545 = vrot.slane %v2543, 4
          %v2546 = vshll.u32 %v2494, 16
          %v2548 = vrot.slane %v2546, 5
          %v2549 = vor.u32 %v2545, %v2548
          %v2550 = vrot.slane %v2549, 4
          %v2552 = vshll.u32 %v2495, 16
          %v2554 = vrot.slane %v2552, 5
          %v2555 = vsel %vm348, %v2550, %v2554
          %v2556 = vshrl.u32 %v2495, 16
          %v2558 = vrot.slane %v2556, 4
          %v2559 = vor.u32 %v2558, %v2554
          %v2560 = vrot.slane %v2559, 4
          %v2562 = vshll.u32 %v2496, 16
          %v2564 = vrot.slane %v2562, 5
          %v2565 = vsel %vm348, %v2560, %v2564
          %v2567 = vshrl.u32 %v2497, 16
          %v2569 = vrot.slane %v2567, 4
          %v2570 = vshll.u32 %v2497, 16
          %v2572 = vrot.slane %v2570, 5
          %v2573 = vor.u32 %v2569, %v2572
          %v2574 = vrot.slane %v2573, 4
          %v2576 = vshll.u32 %v2498, 16
          %v2578 = vrot.slane %v2576, 5
          %v2579 = vsel %vm348, %v2574, %v2578
          %v2580 = vshrl.u32 %v2498, 16
          %v2582 = vrot.slane %v2580, 4
          %v2583 = vor.u32 %v2582, %v2578
          %v2584 = vrot.slane %v2583, 4
          %v2586 = vshll.u32 %v2499, 16
          %v2588 = vrot.slane %v2586, 5
          %v2589 = vsel %vm348, %v2584, %v2588
          %v2591 = vshrl.u32 %v2500, 16
          %v2593 = vrot.slane %v2591, 4
          %v2594 = vshll.u32 %v2500, 16
          %v2596 = vrot.slane %v2594, 5
          %v2597 = vor.u32 %v2593, %v2596
          %v2598 = vrot.slane %v2597, 4
          %v2600 = vshll.u32 %v2501, 16
          %v2602 = vrot.slane %v2600, 5
          %v2603 = vsel %vm348, %v2598, %v2602
          %v2604 = vshrl.u32 %v2501, 16
          %v2606 = vrot.slane %v2604, 4
          %v2607 = vor.u32 %v2606, %v2602
          %v2608 = vrot.slane %v2607, 4
          %v2610 = vshll.u32 %v2502, 16
          %v2612 = vrot.slane %v2610, 5
          %v2613 = vsel %vm348, %v2608, %v2612
          %v2615 = vshrl.u32 %v2503, 16
          %v2617 = vrot.slane %v2615, 4
          %v2618 = vshll.u32 %v2503, 16
          %v2620 = vrot.slane %v2618, 5
          %v2621 = vor.u32 %v2617, %v2620
          %v2622 = vrot.slane %v2621, 4
          %v2624 = vshll.u32 %v2504, 16
          %v2626 = vrot.slane %v2624, 5
          %v2627 = vsel %vm348, %v2622, %v2626
          %v2628 = vshrl.u32 %v2504, 16
          %v2630 = vrot.slane %v2628, 4
          %v2631 = vor.u32 %v2630, %v2626
          %v2632 = vrot.slane %v2631, 4
          %v2634 = vshll.u32 %v2505, 16
          %v2636 = vrot.slane %v2634, 5
          %v2637 = vsel %vm348, %v2632, %v2636
          %v2639 = vshrl.u32 %v2506, 16
          %v2641 = vrot.slane %v2639, 4
          %v2642 = vshll.u32 %v2506, 16
          %v2644 = vrot.slane %v2642, 5
          %v2645 = vor.u32 %v2641, %v2644
          %v2646 = vrot.slane %v2645, 4
          %v2648 = vshll.u32 %v2507, 16
          %v2650 = vrot.slane %v2648, 5
          %v2651 = vsel %vm348, %v2646, %v2650
          %v2652 = vshrl.u32 %v2507, 16
          %v2654 = vrot.slane %v2652, 4
          %v2655 = vor.u32 %v2654, %v2650
          %v2656 = vrot.slane %v2655, 4
          %v2658 = vshll.u32 %v2508, 16
          %v2660 = vrot.slane %v2658, 5
          %v2661 = vsel %vm348, %v2656, %v2660
          %v2663 = vshrl.u32 %v2509, 16
          %v2665 = vrot.slane %v2663, 4
          %v2666 = vshll.u32 %v2509, 16
          %v2668 = vrot.slane %v2666, 5
          %v2669 = vor.u32 %v2665, %v2668
          %v2670 = vrot.slane %v2669, 4
          %v2672 = vshll.u32 %v2510, 16
          %v2674 = vrot.slane %v2672, 5
          %v2675 = vsel %vm348, %v2670, %v2674
          %v2676 = vshrl.u32 %v2510, 16
          %v2678 = vrot.slane %v2676, 4
          %v2679 = vor.u32 %v2678, %v2674
          %v2680 = vrot.slane %v2679, 4
          %v2682 = vshll.u32 %v2511, 16
          %v2684 = vrot.slane %v2682, 5
          %v2685 = vsel %vm348, %v2680, %v2684
          %v2687 = vshrl.u32 %v2512, 16
          %v2689 = vrot.slane %v2687, 4
          %v2690 = vshll.u32 %v2512, 16
          %v2692 = vrot.slane %v2690, 5
          %v2693 = vor.u32 %v2689, %v2692
          %v2694 = vrot.slane %v2693, 4
          %v2696 = vshll.u32 %v2513, 16
          %v2698 = vrot.slane %v2696, 5
          %v2699 = vsel %vm348, %v2694, %v2698
          %v2700 = vshrl.u32 %v2513, 16
          %v2702 = vrot.slane %v2700, 4
          %v2703 = vor.u32 %v2702, %v2698
          %v2704 = vrot.slane %v2703, 4
          %v2706 = vshll.u32 %v2514, 16
          %v2708 = vrot.slane %v2706, 5
          %v2709 = vsel %vm348, %v2704, %v2708
          %v2711 = vshrl.u32 %v2515, 16
          %v2713 = vrot.slane %v2711, 4
          %v2714 = vshll.u32 %v2515, 16
          %v2716 = vrot.slane %v2714, 5
          %v2717 = vor.u32 %v2713, %v2716
          %v2718 = vrot.slane %v2717, 4
          %v2720 = vshll.u32 %v2516, 16
          %v2722 = vrot.slane %v2720, 5
          %v2723 = vsel %vm348, %v2718, %v2722
          %v2724 = vshrl.u32 %v2516, 16
          %v2726 = vrot.slane %v2724, 4
          %v2727 = vor.u32 %v2726, %v2722
          %v2728 = vrot.slane %v2727, 4
          %v2730 = vshll.u32 %v2517, 16
          %v2732 = vrot.slane %v2730, 5
          %v2733 = vsel %vm348, %v2728, %v2732
          %v2735 = vshrl.u32 %v2518, 16
          %v2737 = vrot.slane %v2735, 4
          %v2738 = vshll.u32 %v2518, 16
          %v2740 = vrot.slane %v2738, 5
          %v2741 = vor.u32 %v2737, %v2740
          %v2742 = vrot.slane %v2741, 4
          %v2744 = vshll.u32 %v2519, 16
          %v2746 = vrot.slane %v2744, 5
          %v2747 = vsel %vm348, %v2742, %v2746
          %v2748 = vshrl.u32 %v2519, 16
          %v2750 = vrot.slane %v2748, 4
          %v2751 = vor.u32 %v2750, %v2746
          %v2752 = vrot.slane %v2751, 4
          %v2754 = vshll.u32 %v2520, 16
          %v2756 = vrot.slane %v2754, 5
          %v2757 = vsel %vm348, %v2752, %v2756
          %v2759 = vshrl.u32 %v2521, 16
          %v2761 = vrot.slane %v2759, 4
          %v2762 = vshll.u32 %v2521, 16
          %v2764 = vrot.slane %v2762, 5
          %v2765 = vor.u32 %v2761, %v2764
          %v2766 = vrot.slane %v2765, 4
          %v2768 = vshll.u32 %v2522, 16
          %v2770 = vrot.slane %v2768, 5
          %v2771 = vsel %vm348, %v2766, %v2770
          %v2772 = vshrl.u32 %v2522, 16
          %v2774 = vrot.slane %v2772, 4
          %v2775 = vor.u32 %v2774, %v2770
          %v2776 = vrot.slane %v2775, 4
          %v2778 = vshll.u32 %v2523, 16
          %v2780 = vrot.slane %v2778, 5
          %v2781 = vsel %vm348, %v2776, %v2780
          %v2783 = vshrl.u32 %v2524, 16
          %v2785 = vrot.slane %v2783, 4
          %v2786 = vshll.u32 %v2524, 16
          %v2788 = vrot.slane %v2786, 5
          %v2789 = vor.u32 %v2785, %v2788
          %v2790 = vrot.slane %v2789, 4
          %v2792 = vshll.u32 %v2525, 16
          %v2794 = vrot.slane %v2792, 5
          %v2795 = vsel %vm348, %v2790, %v2794
          %v2796 = vshrl.u32 %v2525, 16
          %v2798 = vrot.slane %v2796, 4
          %v2799 = vor.u32 %v2798, %v2794
          %v2800 = vrot.slane %v2799, 4
          %v2802 = vshll.u32 %v2526, 16
          %v2804 = vrot.slane %v2802, 5
          %v2805 = vsel %vm348, %v2800, %v2804
          %v2807 = vshrl.u32 %v2527, 16
          %v2809 = vrot.slane %v2807, 4
          %v2810 = vshll.u32 %v2527, 16
          %v2812 = vrot.slane %v2810, 5
          %v2813 = vor.u32 %v2809, %v2812
          %v2814 = vrot.slane %v2813, 4
          %v2816 = vshll.u32 %v2528, 16
          %v2818 = vrot.slane %v2816, 5
          %v2819 = vsel %vm348, %v2814, %v2818
          %v2820 = vshrl.u32 %v2528, 16
          %v2822 = vrot.slane %v2820, 4
          %v2823 = vor.u32 %v2822, %v2818
          %v2824 = vrot.slane %v2823, 4
          %v2826 = vshll.u32 %v2529, 16
          %v2828 = vrot.slane %v2826, 5
          %v2829 = vsel %vm348, %v2824, %v2828
          %v2831 = vshrl.u32 %v2530, 16
          %v2833 = vrot.slane %v2831, 4
          %v2834 = vshll.u32 %v2530, 16
          %v2836 = vrot.slane %v2834, 5
          %v2837 = vor.u32 %v2833, %v2836
          %v2838 = vrot.slane %v2837, 4
          %v2840 = vshll.u32 %v2531, 16
          %v2842 = vrot.slane %v2840, 5
          %v2843 = vsel %vm348, %v2838, %v2842
          %v2844 = vshrl.u32 %v2531, 16
          %v2846 = vrot.slane %v2844, 4
          %v2847 = vor.u32 %v2846, %v2842
          %v2848 = vrot.slane %v2847, 4
          %v2850 = vshll.u32 %v2532, 16
          %v2852 = vrot.slane %v2850, 5
          %v2853 = vsel %vm348, %v2848, %v2852
          %v2855 = vshrl.u32 %v2533, 16
          %v2857 = vrot.slane %v2855, 4
          %v2858 = vshll.u32 %v2533, 16
          %v2860 = vrot.slane %v2858, 5
          %v2861 = vor.u32 %v2857, %v2860
          %v2862 = vrot.slane %v2861, 4
          %v2864 = vshll.u32 %v2534, 16
          %v2866 = vrot.slane %v2864, 5
          %v2867 = vsel %vm348, %v2862, %v2866
          %v2868 = vshrl.u32 %v2534, 16
          %v2870 = vrot.slane %v2868, 4
          %v2871 = vor.u32 %v2870, %v2866
          %v2872 = vrot.slane %v2871, 4
          %v2874 = vshll.u32 %v2535, 16
          %v2876 = vrot.slane %v2874, 5
          %v2877 = vsel %vm348, %v2872, %v2876
          %v2879 = vshrl.u32 %v2536, 16
          %v2881 = vrot.slane %v2879, 4
          %v2882 = vshll.u32 %v2536, 16
          %v2884 = vrot.slane %v2882, 5
          %v2885 = vor.u32 %v2881, %v2884
          %v2886 = vrot.slane %v2885, 4
          %v2888 = vshll.u32 %v2537, 16
          %v2890 = vrot.slane %v2888, 5
          %v2891 = vsel %vm348, %v2886, %v2890
          %v2892 = vshrl.u32 %v2537, 16
          %v2894 = vrot.slane %v2892, 4
          %v2895 = vor.u32 %v2894, %v2890
          %v2896 = vrot.slane %v2895, 4
          %v2898 = vshll.u32 %v2538, 16
          %v2900 = vrot.slane %v2898, 5
          %v2901 = vsel %vm348, %v2896, %v2900
          %v2903 = vshrl.u32 %v2539, 16
          %v2905 = vrot.slane %v2903, 4
          %v2906 = vshll.u32 %v2539, 16
          %v2908 = vrot.slane %v2906, 5
          %v2909 = vor.u32 %v2905, %v2908
          %v2910 = vrot.slane %v2909, 4
          %v2912 = vshll.u32 %v2540, 16
          %v2914 = vrot.slane %v2912, 5
          %v2915 = vsel %vm348, %v2910, %v2914
          %v2916 = vshrl.u32 %v2540, 16
          %v2918 = vrot.slane %v2916, 4
          %v2919 = vor.u32 %v2918, %v2914
          %v2920 = vrot.slane %v2919, 4
          %v2922 = vshll.u32 %v2541, 16
          %v2924 = vrot.slane %v2922, 5
          %v2925 = vsel %vm348, %v2920, %v2924
          %2926 = vrot.lane.b32.xlu0 %v2555, 28
          %v2927 = vpop.permute.xlu0 %2926
          %2928 = vrot.lane.b32.xlu0 %v2565, 28
          %v2929 = vpop.permute.xlu0 %2928
          %2930 = vrot.lane.b32.xlu0 %v2579, 28
          %v2931 = vpop.permute.xlu0 %2930
          %2932 = vrot.lane.b32.xlu0 %v2589, 28
          %v2933 = vpop.permute.xlu0 %2932
          %2934 = vrot.lane.b32.xlu0 %v2603, 28
          %v2935 = vpop.permute.xlu0 %2934
          %2936 = vrot.lane.b32.xlu0 %v2613, 28
          %v2937 = vpop.permute.xlu0 %2936
          %2938 = vrot.lane.b32.xlu0 %v2627, 28
          %v2939 = vpop.permute.xlu0 %2938
          %2940 = vrot.lane.b32.xlu0 %v2637, 28
          %v2941 = vpop.permute.xlu0 %2940
          %2942 = vrot.lane.b32.xlu0 %v2651, 28
          %v2943 = vpop.permute.xlu0 %2942
          %2944 = vrot.lane.b32.xlu0 %v2661, 28
          %v2945 = vpop.permute.xlu0 %2944
          %2946 = vrot.lane.b32.xlu0 %v2675, 28
          %v2947 = vpop.permute.xlu0 %2946
          %2948 = vrot.lane.b32.xlu0 %v2685, 28
          %v2949 = vpop.permute.xlu0 %2948
          %2950 = vrot.lane.b32.xlu0 %v2699, 28
          %v2951 = vpop.permute.xlu0 %2950
          %2952 = vrot.lane.b32.xlu0 %v2709, 28
          %v2953 = vpop.permute.xlu0 %2952
          %2954 = vrot.lane.b32.xlu0 %v2723, 28
          %v2955 = vpop.permute.xlu0 %2954
          %2956 = vrot.lane.b32.xlu0 %v2733, 28
          %v2957 = vpop.permute.xlu0 %2956
          %2958 = vrot.lane.b32.xlu0 %v2747, 28
          %v2959 = vpop.permute.xlu0 %2958
          %2960 = vrot.lane.b32.xlu0 %v2757, 28
          %v2961 = vpop.permute.xlu0 %2960
          %2962 = vrot.lane.b32.xlu0 %v2771, 28
          %v2963 = vpop.permute.xlu0 %2962
          %2964 = vrot.lane.b32.xlu0 %v2781, 28
          %v2965 = vpop.permute.xlu0 %2964
          %2966 = vrot.lane.b32.xlu0 %v2795, 28
          %v2967 = vpop.permute.xlu0 %2966
          %2968 = vrot.lane.b32.xlu0 %v2805, 28
          %v2969 = vpop.permute.xlu0 %2968
          %2970 = vrot.lane.b32.xlu0 %v2819, 28
          %v2971 = vpop.permute.xlu0 %2970
          %2972 = vrot.lane.b32.xlu0 %v2829, 28
          %v2973 = vpop.permute.xlu0 %2972
          %2974 = vrot.lane.b32.xlu0 %v2843, 28
          %v2975 = vpop.permute.xlu0 %2974
          %2976 = vrot.lane.b32.xlu0 %v2853, 28
          %v2977 = vpop.permute.xlu0 %2976
          %2978 = vrot.lane.b32.xlu0 %v2867, 28
          %v2979 = vpop.permute.xlu0 %2978
          %2980 = vrot.lane.b32.xlu0 %v2877, 28
          %v2981 = vpop.permute.xlu0 %2980
          %2982 = vrot.lane.b32.xlu0 %v2891, 28
          %v2983 = vpop.permute.xlu0 %2982
          %2984 = vrot.lane.b32.xlu0 %v2901, 28
          %v2985 = vpop.permute.xlu0 %2984
          %2986 = vrot.lane.b32.xlu0 %v2915, 28
          %v2987 = vpop.permute.xlu0 %2986
          %2988 = vrot.lane.b32.xlu0 %v2925, 28
          %v2989 = vpop.permute.xlu0 %2988
          %vm3022 = vcmask 257248
          %3023 = vst.msk [vmem:[#allocation2] sm:$0xf] %vm3022, %v2927
          %3024 = vst.msk [vmem:[#allocation2 + $0x4] sm:$0xf] %vm3022, %v2929
          %3025 = vst.msk [vmem:[#allocation2 + $0x8] sm:$0xf] %vm3022, %v2931
          %3026 = vst.msk [vmem:[#allocation2 + $0xc] sm:$0xf] %vm3022, %v2933
          %3027 = vst.msk [vmem:[#allocation2 + $0x10] sm:$0xf] %vm3022, %v2935
          %3028 = vst.msk [vmem:[#allocation2 + $0x14] sm:$0xf] %vm3022, %v2937
          %3029 = vst.msk [vmem:[#allocation2 + $0x18] sm:$0xf] %vm3022, %v2939
          %3030 = vst.msk [vmem:[#allocation2 + $0x1c] sm:$0xf] %vm3022, %v2941
          %3031 = vst.msk [vmem:[#allocation2 + $0x20] sm:$0xf] %vm3022, %v2943
          %3032 = vst.msk [vmem:[#allocation2 + $0x24] sm:$0xf] %vm3022, %v2945
          %3033 = vst.msk [vmem:[#allocation2 + $0x28] sm:$0xf] %vm3022, %v2947
          %3034 = vst.msk [vmem:[#allocation2 + $0x2c] sm:$0xf] %vm3022, %v2949
          %3035 = vst.msk [vmem:[#allocation2 + $0x30] sm:$0xf] %vm3022, %v2951
          %3036 = vst.msk [vmem:[#allocation2 + $0x34] sm:$0xf] %vm3022, %v2953
          %3037 = vst.msk [vmem:[#allocation2 + $0x38] sm:$0xf] %vm3022, %v2955
          %3038 = vst.msk [vmem:[#allocation2 + $0x3c] sm:$0xf] %vm3022, %v2957
          %3039 = vst.msk [vmem:[#allocation2 + $0x40] sm:$0xf] %vm3022, %v2959
          %3040 = vst.msk [vmem:[#allocation2 + $0x44] sm:$0xf] %vm3022, %v2961
          %3041 = vst.msk [vmem:[#allocation2 + $0x48] sm:$0xf] %vm3022, %v2963
          %3042 = vst.msk [vmem:[#allocation2 + $0x4c] sm:$0xf] %vm3022, %v2965
          %3043 = vst.msk [vmem:[#allocation2 + $0x50] sm:$0xf] %vm3022, %v2967
          %3044 = vst.msk [vmem:[#allocation2 + $0x54] sm:$0xf] %vm3022, %v2969
          %3045 = vst.msk [vmem:[#allocation2 + $0x58] sm:$0xf] %vm3022, %v2971
          %3046 = vst.msk [vmem:[#allocation2 + $0x5c] sm:$0xf] %vm3022, %v2973
          %3047 = vst.msk [vmem:[#allocation2 + $0x60] sm:$0xf] %vm3022, %v2975
          %3048 = vst.msk [vmem:[#allocation2 + $0x64] sm:$0xf] %vm3022, %v2977
          %3049 = vst.msk [vmem:[#allocation2 + $0x68] sm:$0xf] %vm3022, %v2979
          %3050 = vst.msk [vmem:[#allocation2 + $0x6c] sm:$0xf] %vm3022, %v2981
          %3051 = vst.msk [vmem:[#allocation2 + $0x70] sm:$0xf] %vm3022, %v2983
          %3052 = vst.msk [vmem:[#allocation2 + $0x74] sm:$0xf] %vm3022, %v2985
          %3053 = vst.msk [vmem:[#allocation2 + $0x78] sm:$0xf] %vm3022, %v2987
          %3054 = vst.msk [vmem:[#allocation2 + $0x7c] sm:$0xf] %vm3022, %v2989
          %v3055 = vld [vmem:[%s2300] sm:$0xe]
          %v3056 = vld [vmem:[%s2300 + $0x4] sm:$0xf]
          %v3057 = vld [vmem:[%s2300 + $0x8] sm:$0x1]
          %v3058 = vld [vmem:[%s2300 + $0xc] sm:$0xe]
          %v3059 = vld [vmem:[%s2300 + $0x10] sm:$0xf]
          %v3060 = vld [vmem:[%s2300 + $0x14] sm:$0x1]
          %v3061 = vld [vmem:[%s2300 + $0x18] sm:$0xe]
          %v3062 = vld [vmem:[%s2300 + $0x1c] sm:$0xf]
          %v3063 = vld [vmem:[%s2300 + $0x20] sm:$0x1]
          %v3064 = vld [vmem:[%s2300 + $0x24] sm:$0xe]
          %v3065 = vld [vmem:[%s2300 + $0x28] sm:$0xf]
          %v3066 = vld [vmem:[%s2300 + $0x2c] sm:$0x1]
          %v3067 = vld [vmem:[%s2300 + $0x30] sm:$0xe]
          %v3068 = vld [vmem:[%s2300 + $0x34] sm:$0xf]
          %v3069 = vld [vmem:[%s2300 + $0x38] sm:$0x1]
          %v3070 = vld [vmem:[%s2300 + $0x3c] sm:$0xe]
          %v3071 = vld [vmem:[%s2300 + $0x40] sm:$0xf]
          %v3072 = vld [vmem:[%s2300 + $0x44] sm:$0x1]
          %v3073 = vld [vmem:[%s2300 + $0x48] sm:$0xe]
          %v3074 = vld [vmem:[%s2300 + $0x4c] sm:$0xf]
          %v3075 = vld [vmem:[%s2300 + $0x50] sm:$0x1]
          %v3076 = vld [vmem:[%s2300 + $0x54] sm:$0xe]
          %v3077 = vld [vmem:[%s2300 + $0x58] sm:$0xf]
          %v3078 = vld [vmem:[%s2300 + $0x5c] sm:$0x1]
          %v3079 = vld [vmem:[%s2300 + $0x60] sm:$0xe]
          %v3080 = vld [vmem:[%s2300 + $0x64] sm:$0xf]
          %v3081 = vld [vmem:[%s2300 + $0x68] sm:$0x1]
          %v3082 = vld [vmem:[%s2300 + $0x6c] sm:$0xe]
          %v3083 = vld [vmem:[%s2300 + $0x70] sm:$0xf]
          %v3084 = vld [vmem:[%s2300 + $0x74] sm:$0x1]
          %v3085 = vld [vmem:[%s2300 + $0x78] sm:$0xe]
          %v3086 = vld [vmem:[%s2300 + $0x7c] sm:$0xf]
          %v3087 = vld [vmem:[%s2300 + $0x80] sm:$0x1]
          %v3088 = vld [vmem:[%s2300 + $0x84] sm:$0xe]
          %v3089 = vld [vmem:[%s2300 + $0x88] sm:$0xf]
          %v3090 = vld [vmem:[%s2300 + $0x8c] sm:$0x1]
          %v3091 = vld [vmem:[%s2300 + $0x90] sm:$0xe]
          %v3092 = vld [vmem:[%s2300 + $0x94] sm:$0xf]
          %v3093 = vld [vmem:[%s2300 + $0x98] sm:$0x1]
          %v3094 = vld [vmem:[%s2300 + $0x9c] sm:$0xe]
          %v3095 = vld [vmem:[%s2300 + $0xa0] sm:$0xf]
          %v3096 = vld [vmem:[%s2300 + $0xa4] sm:$0x1]
          %v3097 = vld [vmem:[%s2300 + $0xa8] sm:$0xe]
          %v3098 = vld [vmem:[%s2300 + $0xac] sm:$0xf]
          %v3099 = vld [vmem:[%s2300 + $0xb0] sm:$0x1]
          %v3100 = vld [vmem:[%s2300 + $0xb4] sm:$0xe]
          %v3101 = vld [vmem:[%s2300 + $0xb8] sm:$0xf]
          %v3102 = vld [vmem:[%s2300 + $0xbc] sm:$0x1]
          %v3151 = vrot.slane %v3055, 5
          %v3152 = vrot.slane %v3151, 4
          %v3153 = vrot.slane %v3056, 5
          %v3154 = vsel %vm960, %v3152, %v3153
          %v3155 = vrot.slane %v3153, 4
          %v3156 = vrot.slane %v3057, 5
          %v3157 = vsel %vm960, %v3155, %v3156
          %v3158 = vrot.slane %v3058, 5
          %v3159 = vrot.slane %v3158, 4
          %v3160 = vrot.slane %v3059, 5
          %v3161 = vsel %vm960, %v3159, %v3160
          %v3162 = vrot.slane %v3160, 4
          %v3163 = vrot.slane %v3060, 5
          %v3164 = vsel %vm960, %v3162, %v3163
          %v3165 = vrot.slane %v3061, 5
          %v3166 = vrot.slane %v3165, 4
          %v3167 = vrot.slane %v3062, 5
          %v3168 = vsel %vm960, %v3166, %v3167
          %v3169 = vrot.slane %v3167, 4
          %v3170 = vrot.slane %v3063, 5
          %v3171 = vsel %vm960, %v3169, %v3170
          %v3172 = vrot.slane %v3064, 5
          %v3173 = vrot.slane %v3172, 4
          %v3174 = vrot.slane %v3065, 5
          %v3175 = vsel %vm960, %v3173, %v3174
          %v3176 = vrot.slane %v3174, 4
          %v3177 = vrot.slane %v3066, 5
          %v3178 = vsel %vm960, %v3176, %v3177
          %v3179 = vrot.slane %v3067, 5
          %v3180 = vrot.slane %v3179, 4
          %v3181 = vrot.slane %v3068, 5
          %v3182 = vsel %vm960, %v3180, %v3181
          %v3183 = vrot.slane %v3181, 4
          %v3184 = vrot.slane %v3069, 5
          %v3185 = vsel %vm960, %v3183, %v3184
          %v3186 = vrot.slane %v3070, 5
          %v3187 = vrot.slane %v3186, 4
          %v3188 = vrot.slane %v3071, 5
          %v3189 = vsel %vm960, %v3187, %v3188
          %v3190 = vrot.slane %v3188, 4
          %v3191 = vrot.slane %v3072, 5
          %v3192 = vsel %vm960, %v3190, %v3191
          %v3193 = vrot.slane %v3073, 5
          %v3194 = vrot.slane %v3193, 4
          %v3195 = vrot.slane %v3074, 5
          %v3196 = vsel %vm960, %v3194, %v3195
          %v3197 = vrot.slane %v3195, 4
          %v3198 = vrot.slane %v3075, 5
          %v3199 = vsel %vm960, %v3197, %v3198
          %v3200 = vrot.slane %v3076, 5
          %v3201 = vrot.slane %v3200, 4
          %v3202 = vrot.slane %v3077, 5
          %v3203 = vsel %vm960, %v3201, %v3202
          %v3204 = vrot.slane %v3202, 4
          %v3205 = vrot.slane %v3078, 5
          %v3206 = vsel %vm960, %v3204, %v3205
          %v3207 = vrot.slane %v3079, 5
          %v3208 = vrot.slane %v3207, 4
          %v3209 = vrot.slane %v3080, 5
          %v3210 = vsel %vm960, %v3208, %v3209
          %v3211 = vrot.slane %v3209, 4
          %v3212 = vrot.slane %v3081, 5
          %v3213 = vsel %vm960, %v3211, %v3212
          %v3214 = vrot.slane %v3082, 5
          %v3215 = vrot.slane %v3214, 4
          %v3216 = vrot.slane %v3083, 5
          %v3217 = vsel %vm960, %v3215, %v3216
          %v3218 = vrot.slane %v3216, 4
          %v3219 = vrot.slane %v3084, 5
          %v3220 = vsel %vm960, %v3218, %v3219
          %v3221 = vrot.slane %v3085, 5
          %v3222 = vrot.slane %v3221, 4
          %v3223 = vrot.slane %v3086, 5
          %v3224 = vsel %vm960, %v3222, %v3223
          %v3225 = vrot.slane %v3223, 4
          %v3226 = vrot.slane %v3087, 5
          %v3227 = vsel %vm960, %v3225, %v3226
          %v3228 = vrot.slane %v3088, 5
          %v3229 = vrot.slane %v3228, 4
          %v3230 = vrot.slane %v3089, 5
          %v3231 = vsel %vm960, %v3229, %v3230
          %v3232 = vrot.slane %v3230, 4
          %v3233 = vrot.slane %v3090, 5
          %v3234 = vsel %vm960, %v3232, %v3233
          %v3235 = vrot.slane %v3091, 5
          %v3236 = vrot.slane %v3235, 4
          %v3237 = vrot.slane %v3092, 5
          %v3238 = vsel %vm960, %v3236, %v3237
          %v3239 = vrot.slane %v3237, 4
          %v3240 = vrot.slane %v3093, 5
          %v3241 = vsel %vm960, %v3239, %v3240
          %v3242 = vrot.slane %v3094, 5
          %v3243 = vrot.slane %v3242, 4
          %v3244 = vrot.slane %v3095, 5
          %v3245 = vsel %vm960, %v3243, %v3244
          %v3246 = vrot.slane %v3244, 4
          %v3247 = vrot.slane %v3096, 5
          %v3248 = vsel %vm960, %v3246, %v3247
          %v3249 = vrot.slane %v3097, 5
          %v3250 = vrot.slane %v3249, 4
          %v3251 = vrot.slane %v3098, 5
          %v3252 = vsel %vm960, %v3250, %v3251
          %v3253 = vrot.slane %v3251, 4
          %v3254 = vrot.slane %v3099, 5
          %v3255 = vsel %vm960, %v3253, %v3254
          %v3256 = vrot.slane %v3100, 5
          %v3257 = vrot.slane %v3256, 4
          %v3258 = vrot.slane %v3101, 5
          %v3259 = vsel %vm960, %v3257, %v3258
          %v3260 = vrot.slane %v3258, 4
          %v3261 = vrot.slane %v3102, 5
          %v3262 = vsel %vm960, %v3260, %v3261
          %3263 = vrot.lane.b32.xlu0 %v3154, 32
          %v3264 = vpop.permute.xlu0 %3263
          %3265 = vrot.lane.b32.xlu0 %v3157, 32
          %v3266 = vpop.permute.xlu0 %3265
          %3267 = vrot.lane.b32.xlu0 %v3161, 32
          %v3268 = vpop.permute.xlu0 %3267
          %3269 = vrot.lane.b32.xlu0 %v3164, 32
          %v3270 = vpop.permute.xlu0 %3269
          %3271 = vrot.lane.b32.xlu0 %v3168, 32
          %v3272 = vpop.permute.xlu0 %3271
          %3273 = vrot.lane.b32.xlu0 %v3171, 32
          %v3274 = vpop.permute.xlu0 %3273
          %3275 = vrot.lane.b32.xlu0 %v3175, 32
          %v3276 = vpop.permute.xlu0 %3275
          %3277 = vrot.lane.b32.xlu0 %v3178, 32
          %v3278 = vpop.permute.xlu0 %3277
          %3279 = vrot.lane.b32.xlu0 %v3182, 32
          %v3280 = vpop.permute.xlu0 %3279
          %3281 = vrot.lane.b32.xlu0 %v3185, 32
          %v3282 = vpop.permute.xlu0 %3281
          %3283 = vrot.lane.b32.xlu0 %v3189, 32
          %v3284 = vpop.permute.xlu0 %3283
          %3285 = vrot.lane.b32.xlu0 %v3192, 32
          %v3286 = vpop.permute.xlu0 %3285
          %3287 = vrot.lane.b32.xlu0 %v3196, 32
          %v3288 = vpop.permute.xlu0 %3287
          %3289 = vrot.lane.b32.xlu0 %v3199, 32
          %v3290 = vpop.permute.xlu0 %3289
          %3291 = vrot.lane.b32.xlu0 %v3203, 32
          %v3292 = vpop.permute.xlu0 %3291
          %3293 = vrot.lane.b32.xlu0 %v3206, 32
          %v3294 = vpop.permute.xlu0 %3293
          %3295 = vrot.lane.b32.xlu0 %v3210, 32
          %v3296 = vpop.permute.xlu0 %3295
          %3297 = vrot.lane.b32.xlu0 %v3213, 32
          %v3298 = vpop.permute.xlu0 %3297
          %3299 = vrot.lane.b32.xlu0 %v3217, 32
          %v3300 = vpop.permute.xlu0 %3299
          %3301 = vrot.lane.b32.xlu0 %v3220, 32
          %v3302 = vpop.permute.xlu0 %3301
          %3303 = vrot.lane.b32.xlu0 %v3224, 32
          %v3304 = vpop.permute.xlu0 %3303
          %3305 = vrot.lane.b32.xlu0 %v3227, 32
          %v3306 = vpop.permute.xlu0 %3305
          %3307 = vrot.lane.b32.xlu0 %v3231, 32
          %v3308 = vpop.permute.xlu0 %3307
          %3309 = vrot.lane.b32.xlu0 %v3234, 32
          %v3310 = vpop.permute.xlu0 %3309
          %3311 = vrot.lane.b32.xlu0 %v3238, 32
          %v3312 = vpop.permute.xlu0 %3311
          %3313 = vrot.lane.b32.xlu0 %v3241, 32
          %v3314 = vpop.permute.xlu0 %3313
          %3315 = vrot.lane.b32.xlu0 %v3245, 32
          %v3316 = vpop.permute.xlu0 %3315
          %3317 = vrot.lane.b32.xlu0 %v3248, 32
          %v3318 = vpop.permute.xlu0 %3317
          %3319 = vrot.lane.b32.xlu0 %v3252, 32
          %v3320 = vpop.permute.xlu0 %3319
          %3321 = vrot.lane.b32.xlu0 %v3255, 32
          %v3322 = vpop.permute.xlu0 %3321
          %3323 = vrot.lane.b32.xlu0 %v3259, 32
          %v3324 = vpop.permute.xlu0 %3323
          %3325 = vrot.lane.b32.xlu0 %v3262, 32
          %v3326 = vpop.permute.xlu0 %3325
          %vm3359 = vcmask 290048
          %3360 = vst.msk [vmem:[#allocation2] sm:$0xf] %vm3359, %v3264
          %3361 = vst.msk [vmem:[#allocation2 + $0x4] sm:$0xf] %vm3359, %v3266
          %3362 = vst.msk [vmem:[#allocation2 + $0x8] sm:$0xf] %vm3359, %v3268
          %3363 = vst.msk [vmem:[#allocation2 + $0xc] sm:$0xf] %vm3359, %v3270
          %3364 = vst.msk [vmem:[#allocation2 + $0x10] sm:$0xf] %vm3359, %v3272
          %3365 = vst.msk [vmem:[#allocation2 + $0x14] sm:$0xf] %vm3359, %v3274
          %3366 = vst.msk [vmem:[#allocation2 + $0x18] sm:$0xf] %vm3359, %v3276
          %3367 = vst.msk [vmem:[#allocation2 + $0x1c] sm:$0xf] %vm3359, %v3278
          %3368 = vst.msk [vmem:[#allocation2 + $0x20] sm:$0xf] %vm3359, %v3280
          %3369 = vst.msk [vmem:[#allocation2 + $0x24] sm:$0xf] %vm3359, %v3282
          %3370 = vst.msk [vmem:[#allocation2 + $0x28] sm:$0xf] %vm3359, %v3284
          %3371 = vst.msk [vmem:[#allocation2 + $0x2c] sm:$0xf] %vm3359, %v3286
          %3372 = vst.msk [vmem:[#allocation2 + $0x30] sm:$0xf] %vm3359, %v3288
          %3373 = vst.msk [vmem:[#allocation2 + $0x34] sm:$0xf] %vm3359, %v3290
          %3374 = vst.msk [vmem:[#allocation2 + $0x38] sm:$0xf] %vm3359, %v3292
          %3375 = vst.msk [vmem:[#allocation2 + $0x3c] sm:$0xf] %vm3359, %v3294
          %3376 = vst.msk [vmem:[#allocation2 + $0x40] sm:$0xf] %vm3359, %v3296
          %3377 = vst.msk [vmem:[#allocation2 + $0x44] sm:$0xf] %vm3359, %v3298
          %3378 = vst.msk [vmem:[#allocation2 + $0x48] sm:$0xf] %vm3359, %v3300
          %3379 = vst.msk [vmem:[#allocation2 + $0x4c] sm:$0xf] %vm3359, %v3302
          %3380 = vst.msk [vmem:[#allocation2 + $0x50] sm:$0xf] %vm3359, %v3304
          %3381 = vst.msk [vmem:[#allocation2 + $0x54] sm:$0xf] %vm3359, %v3306
          %3382 = vst.msk [vmem:[#allocation2 + $0x58] sm:$0xf] %vm3359, %v3308
          %3383 = vst.msk [vmem:[#allocation2 + $0x5c] sm:$0xf] %vm3359, %v3310
          %3384 = vst.msk [vmem:[#allocation2 + $0x60] sm:$0xf] %vm3359, %v3312
          %3385 = vst.msk [vmem:[#allocation2 + $0x64] sm:$0xf] %vm3359, %v3314
          %3386 = vst.msk [vmem:[#allocation2 + $0x68] sm:$0xf] %vm3359, %v3316
          %3387 = vst.msk [vmem:[#allocation2 + $0x6c] sm:$0xf] %vm3359, %v3318
          %3388 = vst.msk [vmem:[#allocation2 + $0x70] sm:$0xf] %vm3359, %v3320
          %3389 = vst.msk [vmem:[#allocation2 + $0x74] sm:$0xf] %vm3359, %v3322
          %3390 = vst.msk [vmem:[#allocation2 + $0x78] sm:$0xf] %vm3359, %v3324
          %3391 = vst.msk [vmem:[#allocation2 + $0x7c] sm:$0xf] %vm3359, %v3326
        $region36: #{tpu_custom_call.1} parent=31 // pred_fallthru
          _
        %v3392 = vld [vmem:[#allocation2] sm:$0xf]
        %v3393 = vld [vmem:[#allocation2 + $0x4] sm:$0xf]
        %v3394 = vld [vmem:[#allocation2 + $0x8] sm:$0xf]
        %v3395 = vld [vmem:[#allocation2 + $0xc] sm:$0xf]
        %v3396 = vld [vmem:[#allocation2 + $0x10] sm:$0xf]
        %v3397 = vld [vmem:[#allocation2 + $0x14] sm:$0xf]
        %v3398 = vld [vmem:[#allocation2 + $0x18] sm:$0xf]
        %v3399 = vld [vmem:[#allocation2 + $0x1c] sm:$0xf]
        %v3400 = vld [vmem:[#allocation2 + $0x20] sm:$0xf]
        %v3401 = vld [vmem:[#allocation2 + $0x24] sm:$0xf]
        %v3402 = vld [vmem:[#allocation2 + $0x28] sm:$0xf]
        %v3403 = vld [vmem:[#allocation2 + $0x2c] sm:$0xf]
        %v3404 = vld [vmem:[#allocation2 + $0x30] sm:$0xf]
        %v3405 = vld [vmem:[#allocation2 + $0x34] sm:$0xf]
        %v3406 = vld [vmem:[#allocation2 + $0x38] sm:$0xf]
        %v3407 = vld [vmem:[#allocation2 + $0x3c] sm:$0xf]
        %v3408 = vld [vmem:[#allocation2 + $0x40] sm:$0xf]
        %v3409 = vld [vmem:[#allocation2 + $0x44] sm:$0xf]
        %v3410 = vld [vmem:[#allocation2 + $0x48] sm:$0xf]
        %v3411 = vld [vmem:[#allocation2 + $0x4c] sm:$0xf]
        %v3412 = vld [vmem:[#allocation2 + $0x50] sm:$0xf]
        %v3413 = vld [vmem:[#allocation2 + $0x54] sm:$0xf]
        %v3414 = vld [vmem:[#allocation2 + $0x58] sm:$0xf]
        %v3415 = vld [vmem:[#allocation2 + $0x5c] sm:$0xf]
        %v3416 = vld [vmem:[#allocation2 + $0x60] sm:$0xf]
        %v3417 = vld [vmem:[#allocation2 + $0x64] sm:$0xf]
        %v3418 = vld [vmem:[#allocation2 + $0x68] sm:$0xf]
        %v3419 = vld [vmem:[#allocation2 + $0x6c] sm:$0xf]
        %v3420 = vld [vmem:[#allocation2 + $0x70] sm:$0xf]
        %v3421 = vld [vmem:[#allocation2 + $0x74] sm:$0xf]
        %v3422 = vld [vmem:[#allocation2 + $0x78] sm:$0xf]
        %v3423 = vld [vmem:[#allocation2 + $0x7c] sm:$0xf]
        %v3424 = vld [vmem:[%s219] sm:$0xf]
        %v3425 = vld [vmem:[%s219 + $0x4] sm:$0xf]
        %v3426 = vld [vmem:[%s219 + $0x8] sm:$0xf]
        %v3427 = vld [vmem:[%s219 + $0xc] sm:$0xf]
        %v3428 = vld [vmem:[%s219 + $0x10] sm:$0x3]
        %v3429 = vld [vmem:[%s222] sm:$0x1]
        %v3431 = vperm.slane %v3429, 0
        %v3465 = vunpack.c.l.b16 %v3392
        %v3466 = vunpack.c.l.b16 %v3393
        %v3467 = vunpack.c.l.b16 %v3394
        %v3468 = vunpack.c.l.b16 %v3395
        %v3469 = vunpack.c.l.b16 %v3396
        %v3470 = vunpack.c.l.b16 %v3397
        %v3471 = vunpack.c.l.b16 %v3398
        %v3472 = vunpack.c.l.b16 %v3399
        %v3473 = vunpack.c.l.b16 %v3400
        %v3474 = vunpack.c.l.b16 %v3401
        %v3475 = vunpack.c.l.b16 %v3402
        %v3476 = vunpack.c.l.b16 %v3403
        %v3477 = vunpack.c.l.b16 %v3404
        %v3478 = vunpack.c.l.b16 %v3405
        %v3479 = vunpack.c.l.b16 %v3406
        %v3480 = vunpack.c.l.b16 %v3407
        %v3481 = vunpack.c.l.b16 %v3408
        %v3482 = vunpack.c.l.b16 %v3409
        %v3483 = vunpack.c.l.b16 %v3410
        %v3484 = vunpack.c.l.b16 %v3411
        %v3485 = vunpack.c.l.b16 %v3412
        %v3486 = vunpack.c.l.b16 %v3413
        %v3487 = vunpack.c.l.b16 %v3414
        %v3488 = vunpack.c.l.b16 %v3415
        %v3489 = vunpack.c.l.b16 %v3416
        %v3490 = vunpack.c.l.b16 %v3417
        %v3491 = vunpack.c.l.b16 %v3418
        %v3492 = vunpack.c.l.b16 %v3419
        %v3493 = vunpack.c.l.b16 %v3420
        %v3494 = vunpack.c.l.b16 %v3421
        %v3495 = vunpack.c.l.b16 %v3422
        %v3496 = vunpack.c.l.b16 %v3423
        %v3497 = vpack.c.b16 %v3466, %v3465
        %v3498 = vpack.c.b16 %v3468, %v3467
        %v3499 = vpack.c.b16 %v3470, %v3469
        %v3500 = vpack.c.b16 %v3472, %v3471
        %v3501 = vpack.c.b16 %v3474, %v3473
        %v3502 = vpack.c.b16 %v3476, %v3475
        %v3503 = vpack.c.b16 %v3478, %v3477
        %v3504 = vpack.c.b16 %v3480, %v3479
        %v3505 = vpack.c.b16 %v3482, %v3481
        %v3506 = vpack.c.b16 %v3484, %v3483
        %v3507 = vpack.c.b16 %v3486, %v3485
        %v3508 = vpack.c.b16 %v3488, %v3487
        %v3509 = vpack.c.b16 %v3490, %v3489
        %v3510 = vpack.c.b16 %v3492, %v3491
        %v3511 = vpack.c.b16 %v3494, %v3493
        %v3512 = vpack.c.b16 %v3496, %v3495
        %v3518 = vunpack.c.l.b16 %v3424
        %v3519 = vunpack.c.l.b16 %v3425
        %v3520 = vunpack.c.l.b16 %v3426
        %v3521 = vunpack.c.l.b16 %v3427
        %v3522 = vunpack.c.l.b16 %v3428
        %v3523 = vpack.c.b16 %v3519, %v3518
        %v3524 = vpack.c.b16 %v3521, %v3520
        %v3525 = vpack.c.b16 %v3522, %v3522
        %vm3528 = vcmask 293888
        %v3530 = vsel %vm3528, %v3497, 0
        %v3533 = vsel %vm3528, %v3498, 0
        %v3536 = vsel %vm3528, %v3499, 0
        %v3539 = vsel %vm3528, %v3500, 0
        %v3542 = vsel %vm3528, %v3501, 0
        %v3545 = vsel %vm3528, %v3502, 0
        %v3548 = vsel %vm3528, %v3503, 0
        %v3551 = vsel %vm3528, %v3504, 0
        %v3554 = vsel %vm3528, %v3505, 0
        %v3557 = vsel %vm3528, %v3506, 0
        %v3560 = vsel %vm3528, %v3507, 0
        %v3563 = vsel %vm3528, %v3508, 0
        %v3566 = vsel %vm3528, %v3509, 0
        %v3569 = vsel %vm3528, %v3510, 0
        %v3572 = vsel %vm3528, %v3511, 0
        %v3575 = vsel %vm3528, %v3512, 0
        %vm3577 = vcmask 1041408
        %v3579 = vsel %vm3577, %v3525, 0
        %3581 = vmatpush.bf16.msra.mxu0 0
        %3582 = vmatpush.bf16.msra.mxu0 0
        %3583 = vmatpush.bf16.msra.mxu0 0
        %3584 = vmatpush.bf16.msra.mxu0 0
        %3585 = vmatpush.bf16.msra.mxu0 0
        %3586 = vmatpush.bf16.msra.mxu0 %v3579
        %3587 = vmatpush.bf16.msra.mxu0 %v3524
        %3588 = vmatpush.bf16.msra.mxu0 %v3523
        %3589 = vmatmul.bf16.gmra.mxu0 %v3530
        %v3590 = vpop.f32.mrf.mxu0
        %v3591 = vadd.f32 %v3431, %v3590
        %v3592 = vpop.f32.mrf.mxu0
        %v3593 = vadd.f32 %v3431, %v3592
        %3594 = vmatmul.bf16.gmra.mxu0 %v3533
        %v3595 = vpop.f32.mrf.mxu0
        %v3596 = vadd.f32 %v3431, %v3595
        %v3597 = vpop.f32.mrf.mxu0
        %v3598 = vadd.f32 %v3431, %v3597
        %3599 = vmatmul.bf16.gmra.mxu0 %v3536
        %v3600 = vpop.f32.mrf.mxu0
        %v3601 = vadd.f32 %v3431, %v3600
        %v3602 = vpop.f32.mrf.mxu0
        %v3603 = vadd.f32 %v3431, %v3602
        %3604 = vmatmul.bf16.gmra.mxu0 %v3539
        %v3605 = vpop.f32.mrf.mxu0
        %v3606 = vadd.f32 %v3431, %v3605
        %v3607 = vpop.f32.mrf.mxu0
        %v3608 = vadd.f32 %v3431, %v3607
        %3609 = vmatmul.bf16.gmra.mxu0 %v3542
        %v3610 = vpop.f32.mrf.mxu0
        %v3611 = vadd.f32 %v3431, %v3610
        %v3612 = vpop.f32.mrf.mxu0
        %v3613 = vadd.f32 %v3431, %v3612
        %3614 = vmatmul.bf16.gmra.mxu0 %v3545
        %v3615 = vpop.f32.mrf.mxu0
        %v3616 = vadd.f32 %v3431, %v3615
        %v3617 = vpop.f32.mrf.mxu0
        %v3618 = vadd.f32 %v3431, %v3617
        %3619 = vmatmul.bf16.gmra.mxu0 %v3548
        %v3620 = vpop.f32.mrf.mxu0
        %v3621 = vadd.f32 %v3431, %v3620
        %v3622 = vpop.f32.mrf.mxu0
        %v3623 = vadd.f32 %v3431, %v3622
        %3624 = vmatmul.bf16.gmra.mxu0 %v3551
        %v3625 = vpop.f32.mrf.mxu0
        %v3626 = vadd.f32 %v3431, %v3625
        %v3627 = vpop.f32.mrf.mxu0
        %v3628 = vadd.f32 %v3431, %v3627
        %3629 = vmatmul.bf16.gmra.mxu0 %v3554
        %v3630 = vpop.f32.mrf.mxu0
        %v3631 = vadd.f32 %v3431, %v3630
        %v3632 = vpop.f32.mrf.mxu0
        %v3633 = vadd.f32 %v3431, %v3632
        %3634 = vmatmul.bf16.gmra.mxu0 %v3557
        %v3635 = vpop.f32.mrf.mxu0
        %v3636 = vadd.f32 %v3431, %v3635
        %v3637 = vpop.f32.mrf.mxu0
        %v3638 = vadd.f32 %v3431, %v3637
        %3639 = vmatmul.bf16.gmra.mxu0 %v3560
        %v3640 = vpop.f32.mrf.mxu0
        %v3641 = vadd.f32 %v3431, %v3640
        %v3642 = vpop.f32.mrf.mxu0
        %v3643 = vadd.f32 %v3431, %v3642
        %3644 = vmatmul.bf16.gmra.mxu0 %v3563
        %v3645 = vpop.f32.mrf.mxu0
        %v3646 = vadd.f32 %v3431, %v3645
        %v3647 = vpop.f32.mrf.mxu0
        %v3648 = vadd.f32 %v3431, %v3647
        %3649 = vmatmul.bf16.gmra.mxu0 %v3566
        %v3650 = vpop.f32.mrf.mxu0
        %v3651 = vadd.f32 %v3431, %v3650
        %v3652 = vpop.f32.mrf.mxu0
        %v3653 = vadd.f32 %v3431, %v3652
        %3654 = vmatmul.bf16.gmra.mxu0 %v3569
        %v3655 = vpop.f32.mrf.mxu0
        %v3656 = vadd.f32 %v3431, %v3655
        %v3657 = vpop.f32.mrf.mxu0
        %v3658 = vadd.f32 %v3431, %v3657
        %3659 = vmatmul.bf16.gmra.mxu0 %v3572
        %v3660 = vpop.f32.mrf.mxu0
        %v3661 = vadd.f32 %v3431, %v3660
        %v3662 = vpop.f32.mrf.mxu0
        %v3663 = vadd.f32 %v3431, %v3662
        %3664 = vmatmul.bf16.gmra.mxu0 %v3575
        %v3665 = vpop.f32.mrf.mxu0
        %v3666 = vadd.f32 %v3431, %v3665
        %v3667 = vpop.f32.mrf.mxu0
        %v3668 = vadd.f32 %v3431, %v3667
        %3669 = vdwg.mxu0
        %v3670 = vmax.f32 %v3591, 0.0
        %v3671 = vmax.f32 %v3593, 0.0
        %v3672 = vmax.f32 %v3596, 0.0
        %v3673 = vmax.f32 %v3598, 0.0
        %v3674 = vmax.f32 %v3601, 0.0
        %v3675 = vmax.f32 %v3603, 0.0
        %v3676 = vmax.f32 %v3606, 0.0
        %v3677 = vmax.f32 %v3608, 0.0
        %v3678 = vmax.f32 %v3611, 0.0
        %v3679 = vmax.f32 %v3613, 0.0
        %v3680 = vmax.f32 %v3616, 0.0
        %v3681 = vmax.f32 %v3618, 0.0
        %v3682 = vmax.f32 %v3621, 0.0
        %v3683 = vmax.f32 %v3623, 0.0
        %v3684 = vmax.f32 %v3626, 0.0
        %v3685 = vmax.f32 %v3628, 0.0
        %v3686 = vmax.f32 %v3631, 0.0
        %v3687 = vmax.f32 %v3633, 0.0
        %v3688 = vmax.f32 %v3636, 0.0
        %v3689 = vmax.f32 %v3638, 0.0
        %v3690 = vmax.f32 %v3641, 0.0
        %v3691 = vmax.f32 %v3643, 0.0
        %v3692 = vmax.f32 %v3646, 0.0
        %v3693 = vmax.f32 %v3648, 0.0
        %v3694 = vmax.f32 %v3651, 0.0
        %v3695 = vmax.f32 %v3653, 0.0
        %v3696 = vmax.f32 %v3656, 0.0
        %v3697 = vmax.f32 %v3658, 0.0
        %v3698 = vmax.f32 %v3661, 0.0
        %v3699 = vmax.f32 %v3663, 0.0
        %v3700 = vmax.f32 %v3666, 0.0
        %v3701 = vmax.f32 %v3668, 0.0
        %v3702 = vpack.c.bf16 %v3670, %v3670
        %v3703 = vpack.c.bf16 %v3671, %v3671
        %v3704 = vpack.c.bf16 %v3672, %v3672
        %v3705 = vpack.c.bf16 %v3673, %v3673
        %v3706 = vpack.c.bf16 %v3674, %v3674
        %v3707 = vpack.c.bf16 %v3675, %v3675
        %v3708 = vpack.c.bf16 %v3676, %v3676
        %v3709 = vpack.c.bf16 %v3677, %v3677
        %v3710 = vpack.c.bf16 %v3678, %v3678
        %v3711 = vpack.c.bf16 %v3679, %v3679
        %v3712 = vpack.c.bf16 %v3680, %v3680
        %v3713 = vpack.c.bf16 %v3681, %v3681
        %v3714 = vpack.c.bf16 %v3682, %v3682
        %v3715 = vpack.c.bf16 %v3683, %v3683
        %v3716 = vpack.c.bf16 %v3684, %v3684
        %v3717 = vpack.c.bf16 %v3685, %v3685
        %v3718 = vpack.c.bf16 %v3686, %v3686
        %v3719 = vpack.c.bf16 %v3687, %v3687
        %v3720 = vpack.c.bf16 %v3688, %v3688
        %v3721 = vpack.c.bf16 %v3689, %v3689
        %v3722 = vpack.c.bf16 %v3690, %v3690
        %v3723 = vpack.c.bf16 %v3691, %v3691
        %v3724 = vpack.c.bf16 %v3692, %v3692
        %v3725 = vpack.c.bf16 %v3693, %v3693
        %v3726 = vpack.c.bf16 %v3694, %v3694
        %v3727 = vpack.c.bf16 %v3695, %v3695
        %v3728 = vpack.c.bf16 %v3696, %v3696
        %v3729 = vpack.c.bf16 %v3697, %v3697
        %v3730 = vpack.c.bf16 %v3698, %v3698
        %v3731 = vpack.c.bf16 %v3699, %v3699
        %v3732 = vpack.c.bf16 %v3700, %v3700
        %v3733 = vpack.c.bf16 %v3701, %v3701
        %3734 = vst [vmem:[%s210] sm:$0xf] %v3702
        %3735 = vst [vmem:[%s210 + $0x4] sm:$0xf] %v3703
        %3736 = vst [vmem:[%s210 + $0x8] sm:$0xf] %v3704
        %3737 = vst [vmem:[%s210 + $0xc] sm:$0xf] %v3705
        %3738 = vst [vmem:[%s210 + $0x10] sm:$0xf] %v3706
        %3739 = vst [vmem:[%s210 + $0x14] sm:$0xf] %v3707
        %3740 = vst [vmem:[%s210 + $0x18] sm:$0xf] %v3708
        %3741 = vst [vmem:[%s210 + $0x1c] sm:$0xf] %v3709
        %3742 = vst [vmem:[%s210 + $0x20] sm:$0xf] %v3710
        %3743 = vst [vmem:[%s210 + $0x24] sm:$0xf] %v3711
        %3744 = vst [vmem:[%s210 + $0x28] sm:$0xf] %v3712
        %3745 = vst [vmem:[%s210 + $0x2c] sm:$0xf] %v3713
        %3746 = vst [vmem:[%s210 + $0x30] sm:$0xf] %v3714
        %3747 = vst [vmem:[%s210 + $0x34] sm:$0xf] %v3715
        %3748 = vst [vmem:[%s210 + $0x38] sm:$0xf] %v3716
        %3749 = vst [vmem:[%s210 + $0x3c] sm:$0xf] %v3717
        %3750 = vst [vmem:[%s210 + $0x40] sm:$0xf] %v3718
        %3751 = vst [vmem:[%s210 + $0x44] sm:$0xf] %v3719
        %3752 = vst [vmem:[%s210 + $0x48] sm:$0xf] %v3720
        %3753 = vst [vmem:[%s210 + $0x4c] sm:$0xf] %v3721
        %3754 = vst [vmem:[%s210 + $0x50] sm:$0xf] %v3722
        %3755 = vst [vmem:[%s210 + $0x54] sm:$0xf] %v3723
        %3756 = vst [vmem:[%s210 + $0x58] sm:$0xf] %v3724
        %3757 = vst [vmem:[%s210 + $0x5c] sm:$0xf] %v3725
        %3758 = vst [vmem:[%s210 + $0x60] sm:$0xf] %v3726
        %3759 = vst [vmem:[%s210 + $0x64] sm:$0xf] %v3727
        %3760 = vst [vmem:[%s210 + $0x68] sm:$0xf] %v3728
        %3761 = vst [vmem:[%s210 + $0x6c] sm:$0xf] %v3729
        %3762 = vst [vmem:[%s210 + $0x70] sm:$0xf] %v3730
        %3763 = vst [vmem:[%s210 + $0x74] sm:$0xf] %v3731
        %3764 = vst [vmem:[%s210 + $0x78] sm:$0xf] %v3732
        %3765 = vst [vmem:[%s210 + $0x7c] sm:$0xf] %v3733
        %s3766 = sand.u32 %s126, 1
        %s3767 = scalar_lea.sflag [#allocation4], %s3766
        %s3768 = sand.u32 %s126, 1
        %s3769 = smul.addr %s3768, 128
        %s3770 = scalar_lea.vmem [#allocation3], %s3769
        // Predicated region
        $region37: #{tpu_custom_call.1} parent=31 // pred_check
          %p3771 = pneg %p136
        $region38: #{tpu_custom_call.1} parent=31 // pred_check_branch
          %3773 = sbr.rel (%p3771) target = $region40
        $region39: #{tpu_custom_call.1} parent=31 // pred_region
          %s3774 = smul.u32 32, %s23
          %3776 = vsyncadd %s3767, 0
          %s3777 = sadd.s32 %s24, %s3774
          %s3778 = smul.addr %s22, 32
          %s3779 = sadd.s32 %s3777, %s3778
          %s3780 = smul.addr %s3779, 4
          %s3781 = scalar_lea.hbm %s3, %s3780
          %s3782 = sshll.u32 %s3770, 4
          %s3783 = int_to_ptr.vmem [resolvable:$true] %s3782
          %s3784 = sshll.u32 %s3781, 4
          %s3785 = int_to_ptr.hbm [resolvable:$true] %s3784
          %3790 = dma.vmem_to_hbm [thread:$0]  %s3783, 2048, %s3785, %s3767, 64, 64, 4
        $region40: #{tpu_custom_call.1} parent=31 // pred_fallthru
          _
      $region32: #{tpu_custom_call.1} parent=5 // pred_fallthru
        _
      %p3791 = scmp.le.s32.totalorder 2, %s12
      // Predicated region
      $region41: #{tpu_custom_call.1} parent=5 // pred_check
        %p3792 = pneg %p3791
      $region42: #{tpu_custom_call.1} parent=5 // pred_check_branch
        %3794 = sbr.rel (%p3792) target = $region44
      $region43: #{tpu_custom_call.1} parent=5 // pred_region
        %s3795 = ssub.s32 %s12, 2
        // Predicated region
        $region45: #{tpu_custom_call.1} parent=43 // pred_check
          %p3796 = pneg %p142
        $region46: #{tpu_custom_call.1} parent=43 // pred_check_branch
          %3798 = sbr.rel (%p3796) target = $region48
        $region47: #{tpu_custom_call.1} parent=43 // pred_region
          %s3799 = sand.u32 %s127, 1
          %s3800 = scalar_lea.sflag [#allocation4], %s3799
          %s3801 = sand.u32 %s127, 1
          %s3802 = smul.addr %s3801, 128
          %s3803 = scalar_lea.vmem [#allocation3], %s3802
          %3805 = dma.done %s3800, 2048
        $region48: #{tpu_custom_call.1} parent=43 // pred_fallthru
          _
      $region44: #{tpu_custom_call.1} parent=5 // pred_fallthru
        _
    $region6: #{tpu_custom_call.1} parent=1 // loop_footer
      %s16 = sadd.s32 1, %s12
    $region7: #{tpu_custom_call.1} parent=1 // loop_footer_branch
      %11 = sbr.rel target = $region3
    $region8: #{tpu_custom_call.1} parent=1 // loop_exit
      _
    %3806 = vsyncpa [#allocation4], 1
    %s3807 = scalar_lea.sflag [#allocation4], 1
    %3808 = vsyncpa %s3807, 1

</llo_original>
